<compile_context>
chip_gen: v7x
topology: tpu7x:2x2x1
jax: 0.10.0
libtpu: 0.0.40
codegen_flags: <defaults>
</compile_context>

<pallas_src>
import functools
import math

import jax
import jax.numpy as jnp
from jax.experimental import pallas as pl
from jax.experimental.pallas import tpu as pltpu

N_CHROM = 23  # hard-coded in the original DEC.forward


def _static_pow(q, p):
    """q ** p with a static python-float exponent; small integer powers become
    plain VPU multiplies instead of exp(log(.)) transcendentals."""
    p = float(p)
    if p == int(p) and 1 <= int(p) <= 8:
        n = int(p)
        r = q
        for _ in range(n - 1):
            r = r * q
        return r
    return q ** p


# ----------------------------------------------------------------------------
# Fused kernel: two block-diagonal encoder matmuls + Student-t soft assignment,
# all in VMEM, lane-dense outputs, one store per output per tile.
# ----------------------------------------------------------------------------
def dec_kernel(x_ref, w1_ref, b1_ref, w2_ref, b2_ref, mu_t_ref, mu2_ref,
               z_ref, q_ref, *, alpha):
    # Layer 1 for all 23 chromosomes at once: (TB, 23*Din) @ (23*Din, 23*H).
    h = jnp.dot(x_ref[...], w1_ref[...], preferred_element_type=jnp.float32)
    h = jnp.maximum(h + b1_ref[...], 0.0).astype(w2_ref.dtype)   # ReLU
    # Layer 2: (TB, 23*H) @ (23*H, 23*Zd) -> lane-dense z slab, directly.
    z = jnp.dot(h, w2_ref[...], preferred_element_type=jnp.float32) + b2_ref[...]
    z_ref[...] = z.astype(z_ref.dtype)                           # single wide store

    # Student-t soft assignment.  Squared distance via MXU:
    #   d2 = ||z||^2 + ||mu||^2 - 2 z mu^T   (clamped at 0 against cancellation)
    z2 = jnp.sum(z * z, axis=1, keepdims=True)                   # (TB, 1)
    cross = jnp.dot(z, mu_t_ref[...], preferred_element_type=jnp.float32)  # (TB, K)
    d2 = jnp.maximum(z2 + mu2_ref[...] - 2.0 * cross, 0.0)
    q = pl.reciprocal(1.0 + d2 * (1.0 / alpha), approx=True)     # EUP reciprocal
    q = _static_pow(q, alpha + 1.0)                              # alpha=1 -> q*q
    # NOTE: the reference "/ 2.0" cancels exactly in the row normalization below.
    q = q / jnp.sum(q, axis=1, keepdims=True)                    # exact normalize
    q_ref[...] = q.astype(q_ref.dtype)


# ----------------------------------------------------------------------------
# DEC forward wrapper.
# ----------------------------------------------------------------------------
def dec_forward(x, params, alpha=1.0, block_b=512, compute_dtype=jnp.float32):
    """x: (B, 23, input_dim) float32. Returns (z, q)."""
    b, n_chrom, din = x.shape
    assert n_chrom == N_CHROM
    w1, b1, w2, b2, mu = (params["w1"], params["b1"], params["w2"],
                          params["b2"], params["mu"])
    hidden = w1.shape[1]
    zd = w2.shape[1]
    k = mu.shape[0]
    d_in = n_chrom * din        # 23*Din
    d_h = n_chrom * hidden      # 23*H
    d_z = n_chrom * zd          # 23*Zd

    # ---- batch tile selection -------------------------------------------------
    # Big tiles amortize the ~0.35us/step overhead; >=2 tiles whenever B >= 16 so
    # the "parallel" batch axis can be sharded over both v7x TensorCores.
    tb = min(block_b, b)
    if b >= 16:
        tb = min(tb, pl.cdiv(b, 2))
    tb = (tb // 8) * 8 if tb >= 8 else b        # multiple of 8, or full batch
    grid_b = pl.cdiv(b, tb)

    # ---- expand shared weights to block-diagonal (wrapper-side, tiny) ---------
    eye = jnp.eye(n_chrom, dtype=w1.dtype)
    w1bd = jnp.kron(eye, w1)                        # (23*Din, 23*H), block-diag
    w2bd = jnp.kron(eye, w2)                        # (23*H,  23*Zd), block-diag
    b1bd = jnp.tile(b1.reshape(1, hidden), (1, n_chrom))   # (1, 23*H)
    b2bd = jnp.tile(b2.reshape(1, zd), (1, n_chrom))        # (1, 23*Zd)

    x2 = x.reshape(b, d_in)                         # contiguous reshape (free)
    mu_t = mu.T                                     # (23*Zd, K) for the cross term
    mu2 = jnp.sum(mu * mu, axis=1)[None, :]         # (1, K), hoisted out of kernel

    if compute_dtype != jnp.float32:
        # Optional bf16 MXU path (f32 accumulation kept in-kernel).
        x2 = x2.astype(compute_dtype)
        w1bd = w1bd.astype(compute_dtype)
        w2bd = w2bd.astype(compute_dtype)

    kernel = functools.partial(dec_kernel, alpha=float(alpha))

    z, q = pl.pallas_call(
        kernel,
        out_shape=(jax.ShapeDtypeStruct((b, d_z), jnp.float32),
                   jax.ShapeDtypeStruct((b, k), jnp.float32)),
        grid_spec=pltpu.PrefetchScalarGridSpec(
            num_scalar_prefetch=0,
            grid=(grid_b,),
            in_specs=[
                pl.BlockSpec((tb, d_in), lambda i: (i, 0)),    # x tile (streamed)
                pl.BlockSpec((d_in, d_h), lambda i: (0, 0)),   # W1_bd (resident)
                pl.BlockSpec((1, d_h), lambda i: (0, 0)),      # b1_bd
                pl.BlockSpec((d_h, d_z), lambda i: (0, 0)),    # W2_bd (resident)
                pl.BlockSpec((1, d_z), lambda i: (0, 0)),      # b2_bd
                pl.BlockSpec((d_z, k), lambda i: (0, 0)),      # mu^T
                pl.BlockSpec((1, k), lambda i: (0, 0)),        # ||mu||^2
            ],
            out_specs=[
                pl.BlockSpec((tb, d_z), lambda i: (i, 0)),     # z (lane-dense slab)
                pl.BlockSpec((tb, k), lambda i: (i, 0)),       # q
            ],
        ),
        compiler_params=pltpu.CompilerParams(
            dimension_semantics=("parallel",),      # megacore / 2-TC batch sharding
            vmem_limit_bytes=32 * 1024 * 1024,      # safe on v5e/v6e/v7x
        ),
    )(x2, w1bd, b1bd, w2bd, b2bd, mu_t, mu2)
    return z, q


# ----------------------------------------------------------------------------
# Deterministic parameter init (PyTorch nn.Linear style uniform).
# ----------------------------------------------------------------------------
def init_params(key, input_dim, hidden, z_dim, n_clusters):
    k1, k2, k3, k4, k5 = jax.random.split(key, 5)
    lim1 = 1.0 / math.sqrt(input_dim)
    lim2 = 1.0 / math.sqrt(hidden)
    return {
        "w1": jax.random.uniform(k1, (input_dim, hidden), jnp.float32, -lim1, lim1),
        "b1": jax.random.uniform(k2, (1, hidden), jnp.float32, -lim1, lim1),
        "w2": jax.random.uniform(k3, (hidden, z_dim), jnp.float32, -lim2, lim2),
        "b2": jax.random.uniform(k4, (1, z_dim), jnp.float32, -lim2, lim2),
        # self.mu = Parameter(torch.Tensor(n_clusters, 23*z_dim)) is uninitialized
        # in PyTorch; here deterministically initialized with a normal draw.
        "mu": jax.random.normal(k5, (n_clusters, N_CHROM * z_dim), jnp.float32),
    }


# ----------------------------------------------------------------------------
# Pure-JAX reference (mirrors the PyTorch forward, incl. the "/ 2.0" quirk).
# ----------------------------------------------------------------------------
def dec_forward_ref(x, params, alpha=1.0):
    zs = []
    for i in range(N_CHROM):
        xi = x[:, i]
        h = jnp.maximum(xi @ params["w1"] + params["b1"], 0.0)
        zs.append(h @ params["w2"] + params["b2"])
    z = jnp.concatenate(zs, axis=1)
    d2 = jnp.sum((z[:, None, :] - params["mu"][None, :, :]) ** 2, axis=2)
    q = 1.0 / (1.0 + d2 / alpha)
    q = (q ** (alpha + 1.0)) / 2.0
    q = q / jnp.sum(q, axis=1, keepdims=True)
    return z, q


if __name__ == "__main__":
    input_dim = 64
    hidden = 32
    z_dim = 8
    n_clusters = 4
    alpha = 1.0

    key = jax.random.PRNGKey(0)
    kx, kp, kx2 = jax.random.split(key, 3)
    params = init_params(kp, input_dim, hidden, z_dim, n_clusters)

    # Case 1: tiny batch (single tile, tb == B).
    x = jax.random.normal(kx, (2, N_CHROM, input_dim), jnp.float32)
    z, q = jax.block_until_ready(dec_forward(x, params, alpha))
    z_ref, q_ref = dec_forward_ref(x, params, alpha)
    assert z.shape == (2, N_CHROM * z_dim)
    assert q.shape == (2, n_clusters)
    assert jnp.allclose(z, z_ref, atol=1e-4, rtol=1e-4)
    # q tolerance accounts for the approximate EUP reciprocal in the Student-t term.
    assert jnp.allclose(q, q_ref, atol=2e-3, rtol=2e-3)

    # Case 2: exercises the batch grid (>=2 tiles, partial final block).
    x_big = jax.random.normal(kx2, (40, N_CHROM, input_dim), jnp.float32)
    z2, q2 = jax.block_until_ready(dec_forward(x_big, params, alpha))
    z2_ref, q2_ref = dec_forward_ref(x_big, params, alpha)
    assert jnp.allclose(z2, z2_ref, atol=1e-4, rtol=1e-4)
    assert jnp.allclose(q2, q2_ref, atol=2e-3, rtol=2e-3)

    print("KERNEL_OK")
</pallas_src>

<mosaic_0001>
module attributes {stable_mosaic.version = 11 : i64} {
  func.func @dec_kernel(%arg0: i32, %arg1: memref<2x1472xf32, #tpu.memory_space<vmem>>, %arg2: memref<1472x736xf32, #tpu.memory_space<vmem>>, %arg3: memref<1x736xf32, #tpu.memory_space<vmem>>, %arg4: memref<736x184xf32, #tpu.memory_space<vmem>>, %arg5: memref<1x184xf32, #tpu.memory_space<vmem>>, %arg6: memref<184x4xf32, #tpu.memory_space<vmem>>, %arg7: memref<1x4xf32, #tpu.memory_space<vmem>>, %arg8: memref<2x184xf32, #tpu.memory_space<vmem>>, %arg9: memref<2x4xf32, #tpu.memory_space<vmem>>) attributes {dimension_semantics = [#tpu.dimension_semantics<parallel>], iteration_bounds = array<i64: 1>, scalar_prefetch = 0 : i64, scratch_operands = 0 : i64, tpu.core_type = #tpu.core_type<tc>, window_params = [{transform_indices = @transform_0, window_bounds = array<i64: 2, 1472>}, {pipeline_mode = #tpu.pipeline_mode<synchronous>, transform_indices = @transform_1, window_bounds = array<i64: 1472, 736>}, {pipeline_mode = #tpu.pipeline_mode<synchronous>, transform_indices = @transform_2, window_bounds = array<i64: 1, 736>}, {pipeline_mode = #tpu.pipeline_mode<synchronous>, transform_indices = @transform_3, window_bounds = array<i64: 736, 184>}, {pipeline_mode = #tpu.pipeline_mode<synchronous>, transform_indices = @transform_4, window_bounds = array<i64: 1, 184>}, {pipeline_mode = #tpu.pipeline_mode<synchronous>, transform_indices = @transform_5, window_bounds = array<i64: 184, 4>}, {pipeline_mode = #tpu.pipeline_mode<synchronous>, transform_indices = @transform_6, window_bounds = array<i64: 1, 4>}, {transform_indices = @transform_7, window_bounds = array<i64: 2, 184>}, {transform_indices = @transform_8, window_bounds = array<i64: 2, 4>}]} {
    %c0 = arith.constant 0 : index
    %c0_0 = arith.constant 0 : index
    %0 = vector.load %arg1[%c0, %c0_0] : memref<2x1472xf32, #tpu.memory_space<vmem>>, vector<2x1472xf32>
    %c0_1 = arith.constant 0 : index
    %c0_2 = arith.constant 0 : index
    %1 = vector.load %arg2[%c0_1, %c0_2] : memref<1472x736xf32, #tpu.memory_space<vmem>>, vector<1472x736xf32>
    %cst = arith.constant dense<0.000000e+00> : vector<2x736xf32>
    %2 = tpu.matmul %0, %1, %cst {dimension_numbers = #tpu.dot_dimension_numbers<[1], [0], [0], [1], [0, 0, 1, 1], [], []>} : vector<2x1472xf32>, vector<1472x736xf32>, vector<2x736xf32> -> vector<2x736xf32>
    %c0_3 = arith.constant 0 : index
    %c0_4 = arith.constant 0 : index
    %3 = vector.load %arg3[%c0_3, %c0_4] : memref<1x736xf32, #tpu.memory_space<vmem>>, vector<1x736xf32>
    %4 = vector.broadcast %3 : vector<1x736xf32> to vector<2x736xf32>
    %5 = arith.addf %2, %4 : vector<2x736xf32>
    %cst_5 = arith.constant 0.000000e+00 : f32
    %6 = vector.broadcast %cst_5 : f32 to vector<2x736xf32>
    %7 = arith.maximumf %5, %6 : vector<2x736xf32>
    %c0_6 = arith.constant 0 : index
    %c0_7 = arith.constant 0 : index
    %8 = vector.load %arg4[%c0_6, %c0_7] : memref<736x184xf32, #tpu.memory_space<vmem>>, vector<736x184xf32>
    %cst_8 = arith.constant dense<0.000000e+00> : vector<2x184xf32>
    %9 = tpu.matmul %7, %8, %cst_8 {dimension_numbers = #tpu.dot_dimension_numbers<[1], [0], [0], [1], [0, 0, 1, 1], [], []>} : vector<2x736xf32>, vector<736x184xf32>, vector<2x184xf32> -> vector<2x184xf32>
    %c0_9 = arith.constant 0 : index
    %c0_10 = arith.constant 0 : index
    %10 = vector.load %arg5[%c0_9, %c0_10] : memref<1x184xf32, #tpu.memory_space<vmem>>, vector<1x184xf32>
    %11 = vector.broadcast %10 : vector<1x184xf32> to vector<2x184xf32>
    %12 = arith.addf %9, %11 : vector<2x184xf32>
    %c0_11 = arith.constant 0 : index
    %c0_12 = arith.constant 0 : index
    %13 = vector.load %arg8[%c0_11, %c0_12] : memref<2x184xf32, #tpu.memory_space<vmem>>, vector<2x184xf32>
    tpu.vector_store %arg8[%c0_11, %c0_12], %12 {strides = array<i32>} : memref<2x184xf32, #tpu.memory_space<vmem>>, vector<2x184xf32>,
    %14 = arith.mulf %12, %12 : vector<2x184xf32>
    %cst_13 = arith.constant dense<0.000000e+00> : vector<2xf32>
    %15 = vector.multi_reduction <add>, %14, %cst_13 [1] : vector<2x184xf32> to vector<2xf32>
    %16 = vector.shape_cast %15 : vector<2xf32> to vector<2x1xf32>
    %c0_14 = arith.constant 0 : index
    %c0_15 = arith.constant 0 : index
    %17 = vector.load %arg6[%c0_14, %c0_15] : memref<184x4xf32, #tpu.memory_space<vmem>>, vector<184x4xf32>
    %cst_16 = arith.constant dense<0.000000e+00> : vector<2x4xf32>
    %18 = tpu.matmul %12, %17, %cst_16 {dimension_numbers = #tpu.dot_dimension_numbers<[1], [0], [0], [1], [0, 0, 1, 1], [], []>} : vector<2x184xf32>, vector<184x4xf32>, vector<2x4xf32> -> vector<2x4xf32>
    %c0_17 = arith.constant 0 : index
    %c0_18 = arith.constant 0 : index
    %19 = vector.load %arg7[%c0_17, %c0_18] : memref<1x4xf32, #tpu.memory_space<vmem>>, vector<1x4xf32>
    %20 = vector.broadcast %16 : vector<2x1xf32> to vector<2x4xf32>
    %21 = vector.broadcast %19 : vector<1x4xf32> to vector<2x4xf32>
    %22 = arith.addf %20, %21 : vector<2x4xf32>
    %cst_19 = arith.constant 2.000000e+00 : f32
    %23 = vector.broadcast %cst_19 : f32 to vector<2x4xf32>
    %24 = arith.mulf %23, %18 : vector<2x4xf32>
    %25 = arith.subf %22, %24 : vector<2x4xf32>
    %cst_20 = arith.constant 0.000000e+00 : f32
    %26 = vector.broadcast %cst_20 : f32 to vector<2x4xf32>
    %27 = arith.maximumf %25, %26 : vector<2x4xf32>
    %cst_21 = arith.constant 1.000000e+00 : f32
    %28 = vector.broadcast %cst_21 : f32 to vector<2x4xf32>
    %29 = arith.mulf %27, %28 : vector<2x4xf32>
    %cst_22 = arith.constant 1.000000e+00 : f32
    %30 = vector.broadcast %cst_22 : f32 to vector<2x4xf32>
    %31 = arith.addf %30, %29 : vector<2x4xf32>
    %32 = tpu.reciprocal %31 {approx = true} : vector<2x4xf32> -> vector<2x4xf32>
    %33 = arith.mulf %32, %32 : vector<2x4xf32>
    %cst_23 = arith.constant dense<0.000000e+00> : vector<2xf32>
    %34 = vector.multi_reduction <add>, %33, %cst_23 [1] : vector<2x4xf32> to vector<2xf32>
    %35 = vector.shape_cast %34 : vector<2xf32> to vector<2x1xf32>
    %36 = vector.broadcast %35 : vector<2x1xf32> to vector<2x4xf32>
    %37 = arith.divf %33, %36 : vector<2x4xf32>
    %c0_24 = arith.constant 0 : index
    %c0_25 = arith.constant 0 : index
    %38 = vector.load %arg9[%c0_24, %c0_25] : memref<2x4xf32, #tpu.memory_space<vmem>>, vector<2x4xf32>
    tpu.vector_store %arg9[%c0_24, %c0_25], %37 {strides = array<i32>} : memref<2x4xf32, #tpu.memory_space<vmem>>, vector<2x4xf32>,
    return
  }
  func.func @transform_0(%arg0: i32) -> (i32, i32) {
    %c0_i32 = arith.constant 0 : i32
    %c0_i32_0 = arith.constant 0 : i32
    return %arg0, %c0_i32 : i32, i32
  }
  func.func @transform_1(%arg0: i32) -> (i32, i32) {
    %c0_i32 = arith.constant 0 : i32
    %c0_i32_0 = arith.constant 0 : i32
    %c0_i32_1 = arith.constant 0 : i32
    return %c0_i32, %c0_i32_0 : i32, i32
  }
  func.func @transform_2(%arg0: i32) -> (i32, i32) {
    %c0_i32 = arith.constant 0 : i32
    %c0_i32_0 = arith.constant 0 : i32
    %c0_i32_1 = arith.constant 0 : i32
    return %c0_i32, %c0_i32_0 : i32, i32
  }
  func.func @transform_3(%arg0: i32) -> (i32, i32) {
    %c0_i32 = arith.constant 0 : i32
    %c0_i32_0 = arith.constant 0 : i32
    %c0_i32_1 = arith.constant 0 : i32
    return %c0_i32, %c0_i32_0 : i32, i32
  }
  func.func @transform_4(%arg0: i32) -> (i32, i32) {
    %c0_i32 = arith.constant 0 : i32
    %c0_i32_0 = arith.constant 0 : i32
    %c0_i32_1 = arith.constant 0 : i32
    return %c0_i32, %c0_i32_0 : i32, i32
  }
  func.func @transform_5(%arg0: i32) -> (i32, i32) {
    %c0_i32 = arith.constant 0 : i32
    %c0_i32_0 = arith.constant 0 : i32
    %c0_i32_1 = arith.constant 0 : i32
    return %c0_i32, %c0_i32_0 : i32, i32
  }
  func.func @transform_6(%arg0: i32) -> (i32, i32) {
    %c0_i32 = arith.constant 0 : i32
    %c0_i32_0 = arith.constant 0 : i32
    %c0_i32_1 = arith.constant 0 : i32
    return %c0_i32, %c0_i32_0 : i32, i32
  }
  func.func @transform_7(%arg0: i32) -> (i32, i32) {
    %c0_i32 = arith.constant 0 : i32
    %c0_i32_0 = arith.constant 0 : i32
    return %arg0, %c0_i32 : i32, i32
  }
  func.func @transform_8(%arg0: i32) -> (i32, i32) {
    %c0_i32 = arith.constant 0 : i32
    %c0_i32_0 = arith.constant 0 : i32
    return %arg0, %c0_i32 : i32, i32
  }
}

</mosaic_0001>

<llo_original>
// kernel: tpu_custom_call.1
$region0: #{tpu_custom_call.1}
  #allocation0 [shape = 'u32[]', space=smem, size = 0x4, offset = 0x4, fixed_abs, tag = 'smem constant byte address 0x4 - core index']
  #allocation1 [shape = 'u32[144,128]{1,0:T(1,128)}', space=vmem, size = 0x12000, scoped, tag = 'internal scratch']
  %s0 = inlined_call_operand.hbm [shape: f32[2,1472], index: 0, kind: input, shape index: {}]
  %s1 = inlined_call_operand.hbm [shape: f32[1472,736], index: 1, kind: input, shape index: {}]
  %s2 = inlined_call_operand.hbm [shape: f32[1,736], index: 2, kind: input, shape index: {}]
  %s3 = inlined_call_operand.vmem [shape: f32[736,184], index: 3, kind: input, shape index: {}]
  %s4 = inlined_call_operand.hbm [shape: f32[1,184], index: 4, kind: input, shape index: {}]
  %s5 = inlined_call_operand.vmem [shape: f32[184,4], index: 5, kind: input, shape index: {}]
  %s6 = inlined_call_operand.hbm [shape: f32[1,4], index: 6, kind: input, shape index: {}]
  %s7 = inlined_call_operand.hbm [shape: f32[2,184], index: 7, kind: output, shape index: {0}]
  %s8 = inlined_call_operand.hbm [shape: f32[2,4], index: 8, kind: output, shape index: {1}]
  %9 = xla_tuple %s7, %s8
  %s10 = sld [smem:[#allocation0]]
  $region66: #{tpu_custom_call.1} parent=0
    _
  %s12 = ssub.s32 1, %s10
  %s13 = scalar_select 0, %s12, %s10
  $region1: #{tpu_custom_call.1} parent=0
    #allocation2 [shape = 'u8[12288]{0}', space=vmem, size = 0x3000, scoped, tag = 'input window, operand 0, single buffered']
    #allocation3 [shape = 's32[1]{0}', space=sflag, size = 0x4, scoped, tag = 'scoped memory for tpu_custom_call.1']
    #allocation4 [shape = 's32[1]{0}', space=sflag, size = 0x4, scoped, tag = 'scoped memory for tpu_custom_call.1']
    #allocation5 [shape = 'u8[4521984]{0}', space=vmem, size = 0x450000, scoped, tag = 'input window, operand 1, single buffered']
    #allocation6 [shape = 's32[1]{0}', space=sflag, size = 0x4, scoped, tag = 'scoped memory for tpu_custom_call.1']
    #allocation7 [shape = 'u8[3072]{0}', space=vmem, size = 0xc00, scoped, tag = 'input window, operand 2, single buffered']
    #allocation8 [shape = 'u8[1024]{0}', space=vmem, size = 0x400, scoped, tag = 'input window, operand 4, single buffered']
    #allocation9 [shape = 's32[1]{0}', space=sflag, size = 0x4, scoped, tag = 'scoped memory for tpu_custom_call.1']
    #allocation10 [shape = 'u8[512]{0}', space=vmem, size = 0x400, scoped, tag = 'input window, operand 6, single buffered']
    #allocation11 [shape = 'u8[2048]{0}', space=vmem, size = 0x800, scoped, tag = 'output window, operand 0, single buffered']
    #allocation12 [shape = 'u8[1024]{0}', space=vmem, size = 0x400, scoped, tag = 'output window, operand 1, single buffered']
    #allocation13 [shape = 's32[1]{0}', space=sflag, size = 0x4, scoped, tag = 'scoped memory for tpu_custom_call.1']
    %14 = vsyncpa [#allocation3], 0
    %15 = vsyncpa [#allocation6], 0
    %16 = vsyncpa [#allocation9], 0
    %17 = vsyncpa [#allocation4], 0
    %18 = vsyncpa [#allocation13], 0
    // Predicated region
    $region2: #{tpu_custom_call.1} parent=1 // pred_check
      _
    $region3: #{tpu_custom_call.1} parent=1 // pred_check_branch
      %20 = sbr.rel (0) target = $region5
    $region4: #{tpu_custom_call.1} parent=1 // pred_region
      %s22 = ssub.s32 384, 384
      %23 = vsyncadd [#allocation3], %s22
      %s25 = sshll.u32 [#allocation2], 4
      %s26 = int_to_ptr.vmem [resolvable:$true] %s25
      %28 = dma.hbm_to_vmem [thread:$0]  %s0, 384, %s26, [#allocation3]
    $region5: #{tpu_custom_call.1} parent=1 // pred_fallthru
      _
    // Predicated region
    $region6: #{tpu_custom_call.1} parent=1 // pred_check
      _
    $region7: #{tpu_custom_call.1} parent=1 // pred_check_branch
      %30 = sbr.rel (0) target = $region9
    $region8: #{tpu_custom_call.1} parent=1 // pred_region
      %s32 = ssub.s32 141312, 141312
      %33 = vsyncadd [#allocation6], %s32
      %s34 = sshll.u32 [#allocation5], 4
      %s35 = int_to_ptr.vmem [resolvable:$true] %s34
      %40 = dma.hbm_to_vmem [thread:$0]  %s1, 141312, %s35, [#allocation6], 768, 768, 48
    $region9: #{tpu_custom_call.1} parent=1 // pred_fallthru
      _
    // Predicated region
    $region10: #{tpu_custom_call.1} parent=1 // pred_check
      _
    $region11: #{tpu_custom_call.1} parent=1 // pred_check_branch
      %42 = sbr.rel (0) target = $region13
    $region12: #{tpu_custom_call.1} parent=1 // pred_region
      %s44 = ssub.s32 96, 96
      %45 = vsyncadd [#allocation6], %s44
      %s47 = sshll.u32 [#allocation7], 4
      %s48 = int_to_ptr.vmem [resolvable:$true] %s47
      %50 = dma.hbm_to_vmem [thread:$0]  %s2, 96, %s48, [#allocation6]
    $region13: #{tpu_custom_call.1} parent=1 // pred_fallthru
      _
    // Predicated region
    $region14: #{tpu_custom_call.1} parent=1 // pred_check
      _
    $region15: #{tpu_custom_call.1} parent=1 // pred_check_branch
      %52 = sbr.rel (0) target = $region17
    $region16: #{tpu_custom_call.1} parent=1 // pred_region
      _
    $region17: #{tpu_custom_call.1} parent=1 // pred_fallthru
      _
    // Predicated region
    $region18: #{tpu_custom_call.1} parent=1 // pred_check
      _
    $region19: #{tpu_custom_call.1} parent=1 // pred_check_branch
      %54 = sbr.rel (0) target = $region21
    $region20: #{tpu_custom_call.1} parent=1 // pred_region
      %s56 = ssub.s32 32, 32
      %57 = vsyncadd [#allocation9], %s56
      %s59 = sshll.u32 [#allocation8], 4
      %s60 = int_to_ptr.vmem [resolvable:$true] %s59
      %62 = dma.hbm_to_vmem [thread:$0]  %s4, 32, %s60, [#allocation9]
    $region21: #{tpu_custom_call.1} parent=1 // pred_fallthru
      _
    // Predicated region
    $region22: #{tpu_custom_call.1} parent=1 // pred_check
      _
    $region23: #{tpu_custom_call.1} parent=1 // pred_check_branch
      %64 = sbr.rel (0) target = $region25
    $region24: #{tpu_custom_call.1} parent=1 // pred_region
      _
    $region25: #{tpu_custom_call.1} parent=1 // pred_fallthru
      _
    // Predicated region
    $region26: #{tpu_custom_call.1} parent=1 // pred_check
      _
    $region27: #{tpu_custom_call.1} parent=1 // pred_check_branch
      %66 = sbr.rel (0) target = $region29
    $region28: #{tpu_custom_call.1} parent=1 // pred_region
      %s68 = ssub.s32 16, 16
      %69 = vsyncadd [#allocation9], %s68
      %s71 = sshll.u32 [#allocation10], 4
      %s72 = int_to_ptr.vmem [resolvable:$true] %s71
      %74 = dma.hbm_to_vmem [thread:$0]  %s6, 16, %s72, [#allocation9]
    $region29: #{tpu_custom_call.1} parent=1 // pred_fallthru
      _
    // Predicated region
    $region30: #{tpu_custom_call.1} parent=1 // pred_check
      _
    $region31: #{tpu_custom_call.1} parent=1 // pred_check_branch
      %76 = sbr.rel (0) target = $region33
    $region32: #{tpu_custom_call.1} parent=1 // pred_region
      %77 = dma.done [#allocation3], 384
    $region33: #{tpu_custom_call.1} parent=1 // pred_fallthru
      _
    // Predicated region
    $region34: #{tpu_custom_call.1} parent=1 // pred_check
      _
    $region35: #{tpu_custom_call.1} parent=1 // pred_check_branch
      %79 = sbr.rel (0) target = $region37
    $region36: #{tpu_custom_call.1} parent=1 // pred_region
      %80 = dma.done [#allocation6], 141312
    $region37: #{tpu_custom_call.1} parent=1 // pred_fallthru
      _
    // Predicated region
    $region38: #{tpu_custom_call.1} parent=1 // pred_check
      _
    $region39: #{tpu_custom_call.1} parent=1 // pred_check_branch
      %82 = sbr.rel (0) target = $region41
    $region40: #{tpu_custom_call.1} parent=1 // pred_region
      %83 = dma.done [#allocation6], 96
    $region41: #{tpu_custom_call.1} parent=1 // pred_fallthru
      _
    // Predicated region
    $region42: #{tpu_custom_call.1} parent=1 // pred_check
      _
    $region43: #{tpu_custom_call.1} parent=1 // pred_check_branch
      %85 = sbr.rel (0) target = $region45
    $region44: #{tpu_custom_call.1} parent=1 // pred_region
      %86 = dma.done [#allocation9], 32
    $region45: #{tpu_custom_call.1} parent=1 // pred_fallthru
      _
    // Predicated region
    $region46: #{tpu_custom_call.1} parent=1 // pred_check
      _
    $region47: #{tpu_custom_call.1} parent=1 // pred_check_branch
      %88 = sbr.rel (0) target = $region49
    $region48: #{tpu_custom_call.1} parent=1 // pred_region
      %89 = dma.done [#allocation9], 16
    $region49: #{tpu_custom_call.1} parent=1 // pred_fallthru
      _
    %v90 = vld [vmem:[#allocation2] sm:$0xff]
    %v91 = vld [vmem:[#allocation2 + $0x8] sm:$0xff]
    %v92 = vld [vmem:[#allocation2 + $0x10] sm:$0xff]
    %v93 = vld [vmem:[#allocation5] sm:$0xff]
    %v94 = vld [vmem:[#allocation5 + $0x8] sm:$0xff]
    %v95 = vld [vmem:[#allocation5 + $0x10] sm:$0xff]
    %v96 = vld [vmem:[#allocation5 + $0x18] sm:$0xff]
    %v97 = vld [vmem:[#allocation5 + $0x20] sm:$0xff]
    %v98 = vld [vmem:[#allocation5 + $0x28] sm:$0xff]
    %v99 = vld [vmem:[#allocation5 + $0x30] sm:$0xff]
    %v100 = vld [vmem:[#allocation5 + $0x38] sm:$0xff]
    %v101 = vld [vmem:[#allocation5 + $0x40] sm:$0xff]
    %v102 = vld [vmem:[#allocation5 + $0x48] sm:$0xff]
    %v103 = vld [vmem:[#allocation5 + $0x50] sm:$0xff]
    %v104 = vld [vmem:[#allocation5 + $0x58] sm:$0xff]
    %v105 = vld [vmem:[#allocation5 + $0x60] sm:$0xff]
    %v106 = vld [vmem:[#allocation5 + $0x68] sm:$0xff]
    %v107 = vld [vmem:[#allocation5 + $0x70] sm:$0xff]
    %v108 = vld [vmem:[#allocation5 + $0x78] sm:$0xff]
    %v109 = vld [vmem:[#allocation5 + $0x80] sm:$0xff]
    %v110 = vld [vmem:[#allocation5 + $0x88] sm:$0xff]
    %v111 = vld [vmem:[#allocation5 + $0x90] sm:$0xff]
    %v112 = vld [vmem:[#allocation5 + $0x98] sm:$0xff]
    %v113 = vld [vmem:[#allocation5 + $0xa0] sm:$0xff]
    %v114 = vld [vmem:[#allocation5 + $0xa8] sm:$0xff]
    %v115 = vld [vmem:[#allocation5 + $0xb0] sm:$0xff]
    %v116 = vld [vmem:[#allocation5 + $0xb8] sm:$0xff]
    %v117 = vld [vmem:[#allocation5 + $0xc0] sm:$0xff]
    %v118 = vld [vmem:[#allocation5 + $0xc8] sm:$0xff]
    %v119 = vld [vmem:[#allocation5 + $0xd0] sm:$0xff]
    %v120 = vld [vmem:[#allocation5 + $0xd8] sm:$0xff]
    %v121 = vld [vmem:[#allocation5 + $0xe0] sm:$0xff]
    %v122 = vld [vmem:[#allocation5 + $0xe8] sm:$0xff]
    %v123 = vld [vmem:[#allocation5 + $0xf0] sm:$0xff]
    %v124 = vld [vmem:[#allocation5 + $0xf8] sm:$0xff]
    %v125 = vld [vmem:[#allocation5 + $0x100] sm:$0xff]
    %v126 = vld [vmem:[#allocation5 + $0x108] sm:$0xff]
    %v127 = vld [vmem:[#allocation5 + $0x110] sm:$0xff]
    %v128 = vld [vmem:[#allocation5 + $0x118] sm:$0xff]
    %v129 = vld [vmem:[#allocation5 + $0x120] sm:$0xff]
    %v130 = vld [vmem:[#allocation5 + $0x128] sm:$0xff]
    %v131 = vld [vmem:[#allocation5 + $0x130] sm:$0xff]
    %v132 = vld [vmem:[#allocation5 + $0x138] sm:$0xff]
    %v133 = vld [vmem:[#allocation5 + $0x140] sm:$0xff]
    %v134 = vld [vmem:[#allocation5 + $0x148] sm:$0xff]
    %v135 = vld [vmem:[#allocation5 + $0x150] sm:$0xff]
    %v136 = vld [vmem:[#allocation5 + $0x158] sm:$0xff]
    %v137 = vld [vmem:[#allocation5 + $0x160] sm:$0xff]
    %v138 = vld [vmem:[#allocation5 + $0x168] sm:$0xff]
    %v139 = vld [vmem:[#allocation5 + $0x170] sm:$0xff]
    %v140 = vld [vmem:[#allocation5 + $0x178] sm:$0xff]
    %v141 = vld [vmem:[#allocation5 + $0x180] sm:$0xff]
    %v142 = vld [vmem:[#allocation5 + $0x188] sm:$0xff]
    %v143 = vld [vmem:[#allocation5 + $0x190] sm:$0xff]
    %v144 = vld [vmem:[#allocation5 + $0x198] sm:$0xff]
    %v145 = vld [vmem:[#allocation5 + $0x1a0] sm:$0xff]
    %v146 = vld [vmem:[#allocation5 + $0x1a8] sm:$0xff]
    %v147 = vld [vmem:[#allocation5 + $0x1b0] sm:$0xff]
    %v148 = vld [vmem:[#allocation5 + $0x1b8] sm:$0xff]
    %v149 = vld [vmem:[#allocation5 + $0x1c0] sm:$0xff]
    %v150 = vld [vmem:[#allocation5 + $0x1c8] sm:$0xff]
    %v151 = vld [vmem:[#allocation5 + $0x1d0] sm:$0xff]
    %v152 = vld [vmem:[#allocation5 + $0x1d8] sm:$0xff]
    %v153 = vld [vmem:[#allocation5 + $0x1e0] sm:$0xff]
    %v154 = vld [vmem:[#allocation5 + $0x1e8] sm:$0xff]
    %v155 = vld [vmem:[#allocation5 + $0x1f0] sm:$0xff]
    %v156 = vld [vmem:[#allocation5 + $0x1f8] sm:$0xff]
    %v157 = vld [vmem:[#allocation5 + $0x200] sm:$0xff]
    %v158 = vld [vmem:[#allocation5 + $0x208] sm:$0xff]
    %v159 = vld [vmem:[#allocation5 + $0x210] sm:$0xff]
    %v160 = vld [vmem:[#allocation5 + $0x218] sm:$0xff]
    %v161 = vld [vmem:[#allocation5 + $0x220] sm:$0xff]
    %v162 = vld [vmem:[#allocation5 + $0x228] sm:$0xff]
    %v163 = vld [vmem:[#allocation5 + $0x230] sm:$0xff]
    %v164 = vld [vmem:[#allocation5 + $0x238] sm:$0xff]
    %v165 = vld [vmem:[#allocation5 + $0x240] sm:$0xff]
    %v166 = vld [vmem:[#allocation5 + $0x248] sm:$0xff]
    %v167 = vld [vmem:[#allocation5 + $0x250] sm:$0xff]
    %v168 = vld [vmem:[#allocation5 + $0x258] sm:$0xff]
    %v169 = vld [vmem:[#allocation5 + $0x260] sm:$0xff]
    %v170 = vld [vmem:[#allocation5 + $0x268] sm:$0xff]
    %v171 = vld [vmem:[#allocation5 + $0x270] sm:$0xff]
    %v172 = vld [vmem:[#allocation5 + $0x278] sm:$0xff]
    %v173 = vld [vmem:[#allocation5 + $0x280] sm:$0xff]
    %v174 = vld [vmem:[#allocation5 + $0x288] sm:$0xff]
    %v175 = vld [vmem:[#allocation5 + $0x290] sm:$0xff]
    %v176 = vld [vmem:[#allocation5 + $0x298] sm:$0xff]
    %v177 = vld [vmem:[#allocation5 + $0x2a0] sm:$0xff]
    %v178 = vld [vmem:[#allocation5 + $0x2a8] sm:$0xff]
    %v179 = vld [vmem:[#allocation5 + $0x2b0] sm:$0xff]
    %v180 = vld [vmem:[#allocation5 + $0x2b8] sm:$0xff]
    %v181 = vld [vmem:[#allocation5 + $0x2c0] sm:$0xff]
    %v182 = vld [vmem:[#allocation5 + $0x2c8] sm:$0xff]
    %v183 = vld [vmem:[#allocation5 + $0x2d0] sm:$0xff]
    %v184 = vld [vmem:[#allocation5 + $0x2d8] sm:$0xff]
    %v185 = vld [vmem:[#allocation5 + $0x2e0] sm:$0xff]
    %v186 = vld [vmem:[#allocation5 + $0x2e8] sm:$0xff]
    %v187 = vld [vmem:[#allocation5 + $0x2f0] sm:$0xff]
    %v188 = vld [vmem:[#allocation5 + $0x2f8] sm:$0xff]
    %v189 = vld [vmem:[#allocation5 + $0x300] sm:$0xff]
    %v190 = vld [vmem:[#allocation5 + $0x308] sm:$0xff]
    %v191 = vld [vmem:[#allocation5 + $0x310] sm:$0xff]
    %v192 = vld [vmem:[#allocation5 + $0x318] sm:$0xff]
    %v193 = vld [vmem:[#allocation5 + $0x320] sm:$0xff]
    %v194 = vld [vmem:[#allocation5 + $0x328] sm:$0xff]
    %v195 = vld [vmem:[#allocation5 + $0x330] sm:$0xff]
    %v196 = vld [vmem:[#allocation5 + $0x338] sm:$0xff]
    %v197 = vld [vmem:[#allocation5 + $0x340] sm:$0xff]
    %v198 = vld [vmem:[#allocation5 + $0x348] sm:$0xff]
    %v199 = vld [vmem:[#allocation5 + $0x350] sm:$0xff]
    %v200 = vld [vmem:[#allocation5 + $0x358] sm:$0xff]
    %v201 = vld [vmem:[#allocation5 + $0x360] sm:$0xff]
    %v202 = vld [vmem:[#allocation5 + $0x368] sm:$0xff]
    %v203 = vld [vmem:[#allocation5 + $0x370] sm:$0xff]
    %v204 = vld [vmem:[#allocation5 + $0x378] sm:$0xff]
    %v205 = vld [vmem:[#allocation5 + $0x380] sm:$0xff]
    %v206 = vld [vmem:[#allocation5 + $0x388] sm:$0xff]
    %v207 = vld [vmem:[#allocation5 + $0x390] sm:$0xff]
    %v208 = vld [vmem:[#allocation5 + $0x398] sm:$0xff]
    %v209 = vld [vmem:[#allocation5 + $0x3a0] sm:$0xff]
    %v210 = vld [vmem:[#allocation5 + $0x3a8] sm:$0xff]
    %v211 = vld [vmem:[#allocation5 + $0x3b0] sm:$0xff]
    %v212 = vld [vmem:[#allocation5 + $0x3b8] sm:$0xff]
    %v213 = vld [vmem:[#allocation5 + $0x3c0] sm:$0xff]
    %v214 = vld [vmem:[#allocation5 + $0x3c8] sm:$0xff]
    %v215 = vld [vmem:[#allocation5 + $0x3d0] sm:$0xff]
    %v216 = vld [vmem:[#allocation5 + $0x3d8] sm:$0xff]
    %v217 = vld [vmem:[#allocation5 + $0x3e0] sm:$0xff]
    %v218 = vld [vmem:[#allocation5 + $0x3e8] sm:$0xff]
    %v219 = vld [vmem:[#allocation5 + $0x3f0] sm:$0xff]
    %v220 = vld [vmem:[#allocation5 + $0x3f8] sm:$0xff]
    %v221 = vld [vmem:[#allocation5 + $0x400] sm:$0xff]
    %v222 = vld [vmem:[#allocation5 + $0x408] sm:$0xff]
    %v223 = vld [vmem:[#allocation5 + $0x410] sm:$0xff]
    %v224 = vld [vmem:[#allocation5 + $0x418] sm:$0xff]
    %v225 = vld [vmem:[#allocation5 + $0x420] sm:$0xff]
    %v226 = vld [vmem:[#allocation5 + $0x428] sm:$0xff]
    %v227 = vld [vmem:[#allocation5 + $0x430] sm:$0xff]
    %v228 = vld [vmem:[#allocation5 + $0x438] sm:$0xff]
    %v229 = vld [vmem:[#allocation5 + $0x440] sm:$0xff]
    %v230 = vld [vmem:[#allocation5 + $0x448] sm:$0xff]
    %v231 = vld [vmem:[#allocation5 + $0x450] sm:$0xff]
    %v232 = vld [vmem:[#allocation5 + $0x458] sm:$0xff]
    %v233 = vld [vmem:[#allocation5 + $0x460] sm:$0xff]
    %v234 = vld [vmem:[#allocation5 + $0x468] sm:$0xff]
    %v235 = vld [vmem:[#allocation5 + $0x470] sm:$0xff]
    %v236 = vld [vmem:[#allocation5 + $0x478] sm:$0xff]
    %v237 = vld [vmem:[#allocation5 + $0x480] sm:$0xff]
    %v238 = vld [vmem:[#allocation5 + $0x488] sm:$0xff]
    %v239 = vld [vmem:[#allocation5 + $0x490] sm:$0xff]
    %v240 = vld [vmem:[#allocation5 + $0x498] sm:$0xff]
    %v241 = vld [vmem:[#allocation5 + $0x4a0] sm:$0xff]
    %v242 = vld [vmem:[#allocation5 + $0x4a8] sm:$0xff]
    %v243 = vld [vmem:[#allocation5 + $0x4b0] sm:$0xff]
    %v244 = vld [vmem:[#allocation5 + $0x4b8] sm:$0xff]
    %v245 = vld [vmem:[#allocation5 + $0x4c0] sm:$0xff]
    %v246 = vld [vmem:[#allocation5 + $0x4c8] sm:$0xff]
    %v247 = vld [vmem:[#allocation5 + $0x4d0] sm:$0xff]
    %v248 = vld [vmem:[#allocation5 + $0x4d8] sm:$0xff]
    %v249 = vld [vmem:[#allocation5 + $0x4e0] sm:$0xff]
    %v250 = vld [vmem:[#allocation5 + $0x4e8] sm:$0xff]
    %v251 = vld [vmem:[#allocation5 + $0x4f0] sm:$0xff]
    %v252 = vld [vmem:[#allocation5 + $0x4f8] sm:$0xff]
    %v253 = vld [vmem:[#allocation5 + $0x500] sm:$0xff]
    %v254 = vld [vmem:[#allocation5 + $0x508] sm:$0xff]
    %v255 = vld [vmem:[#allocation5 + $0x510] sm:$0xff]
    %v256 = vld [vmem:[#allocation5 + $0x518] sm:$0xff]
    %v257 = vld [vmem:[#allocation5 + $0x520] sm:$0xff]
    %v258 = vld [vmem:[#allocation5 + $0x528] sm:$0xff]
    %v259 = vld [vmem:[#allocation5 + $0x530] sm:$0xff]
    %v260 = vld [vmem:[#allocation5 + $0x538] sm:$0xff]
    %v261 = vld [vmem:[#allocation5 + $0x540] sm:$0xff]
    %v262 = vld [vmem:[#allocation5 + $0x548] sm:$0xff]
    %v263 = vld [vmem:[#allocation5 + $0x550] sm:$0xff]
    %v264 = vld [vmem:[#allocation5 + $0x558] sm:$0xff]
    %v265 = vld [vmem:[#allocation5 + $0x560] sm:$0xff]
    %v266 = vld [vmem:[#allocation5 + $0x568] sm:$0xff]
    %v267 = vld [vmem:[#allocation5 + $0x570] sm:$0xff]
    %v268 = vld [vmem:[#allocation5 + $0x578] sm:$0xff]
    %v269 = vld [vmem:[#allocation5 + $0x580] sm:$0xff]
    %v270 = vld [vmem:[#allocation5 + $0x588] sm:$0xff]
    %v271 = vld [vmem:[#allocation5 + $0x590] sm:$0xff]
    %v272 = vld [vmem:[#allocation5 + $0x598] sm:$0xff]
    %v273 = vld [vmem:[#allocation5 + $0x5a0] sm:$0xff]
    %v274 = vld [vmem:[#allocation5 + $0x5a8] sm:$0xff]
    %v275 = vld [vmem:[#allocation5 + $0x5b0] sm:$0xff]
    %v276 = vld [vmem:[#allocation5 + $0x5b8] sm:$0xff]
    %v277 = vld [vmem:[#allocation5 + $0x5c0] sm:$0xff]
    %v278 = vld [vmem:[#allocation5 + $0x5c8] sm:$0xff]
    %v279 = vld [vmem:[#allocation5 + $0x5d0] sm:$0xff]
    %v280 = vld [vmem:[#allocation5 + $0x5d8] sm:$0xff]
    %v281 = vld [vmem:[#allocation5 + $0x5e0] sm:$0xff]
    %v282 = vld [vmem:[#allocation5 + $0x5e8] sm:$0xff]
    %v283 = vld [vmem:[#allocation5 + $0x5f0] sm:$0xff]
    %v284 = vld [vmem:[#allocation5 + $0x5f8] sm:$0xff]
    %v285 = vld [vmem:[#allocation5 + $0x600] sm:$0xff]
    %v286 = vld [vmem:[#allocation5 + $0x608] sm:$0xff]
    %v287 = vld [vmem:[#allocation5 + $0x610] sm:$0xff]
    %v288 = vld [vmem:[#allocation5 + $0x618] sm:$0xff]
    %v289 = vld [vmem:[#allocation5 + $0x620] sm:$0xff]
    %v290 = vld [vmem:[#allocation5 + $0x628] sm:$0xff]
    %v291 = vld [vmem:[#allocation5 + $0x630] sm:$0xff]
    %v292 = vld [vmem:[#allocation5 + $0x638] sm:$0xff]
    %v293 = vld [vmem:[#allocation5 + $0x640] sm:$0xff]
    %v294 = vld [vmem:[#allocation5 + $0x648] sm:$0xff]
    %v295 = vld [vmem:[#allocation5 + $0x650] sm:$0xff]
    %v296 = vld [vmem:[#allocation5 + $0x658] sm:$0xff]
    %v297 = vld [vmem:[#allocation5 + $0x660] sm:$0xff]
    %v298 = vld [vmem:[#allocation5 + $0x668] sm:$0xff]
    %v299 = vld [vmem:[#allocation5 + $0x670] sm:$0xff]
    %v300 = vld [vmem:[#allocation5 + $0x678] sm:$0xff]
    %v301 = vld [vmem:[#allocation5 + $0x680] sm:$0xff]
    %v302 = vld [vmem:[#allocation5 + $0x688] sm:$0xff]
    %v303 = vld [vmem:[#allocation5 + $0x690] sm:$0xff]
    %v304 = vld [vmem:[#allocation5 + $0x698] sm:$0xff]
    %v305 = vld [vmem:[#allocation5 + $0x6a0] sm:$0xff]
    %v306 = vld [vmem:[#allocation5 + $0x6a8] sm:$0xff]
    %v307 = vld [vmem:[#allocation5 + $0x6b0] sm:$0xff]
    %v308 = vld [vmem:[#allocation5 + $0x6b8] sm:$0xff]
    %v309 = vld [vmem:[#allocation5 + $0x6c0] sm:$0xff]
    %v310 = vld [vmem:[#allocation5 + $0x6c8] sm:$0xff]
    %v311 = vld [vmem:[#allocation5 + $0x6d0] sm:$0xff]
    %v312 = vld [vmem:[#allocation5 + $0x6d8] sm:$0xff]
    %v313 = vld [vmem:[#allocation5 + $0x6e0] sm:$0xff]
    %v314 = vld [vmem:[#allocation5 + $0x6e8] sm:$0xff]
    %v315 = vld [vmem:[#allocation5 + $0x6f0] sm:$0xff]
    %v316 = vld [vmem:[#allocation5 + $0x6f8] sm:$0xff]
    %v317 = vld [vmem:[#allocation5 + $0x700] sm:$0xff]
    %v318 = vld [vmem:[#allocation5 + $0x708] sm:$0xff]
    %v319 = vld [vmem:[#allocation5 + $0x710] sm:$0xff]
    %v320 = vld [vmem:[#allocation5 + $0x718] sm:$0xff]
    %v321 = vld [vmem:[#allocation5 + $0x720] sm:$0xff]
    %v322 = vld [vmem:[#allocation5 + $0x728] sm:$0xff]
    %v323 = vld [vmem:[#allocation5 + $0x730] sm:$0xff]
    %v324 = vld [vmem:[#allocation5 + $0x738] sm:$0xff]
    %v325 = vld [vmem:[#allocation5 + $0x740] sm:$0xff]
    %v326 = vld [vmem:[#allocation5 + $0x748] sm:$0xff]
    %v327 = vld [vmem:[#allocation5 + $0x750] sm:$0xff]
    %v328 = vld [vmem:[#allocation5 + $0x758] sm:$0xff]
    %v329 = vld [vmem:[#allocation5 + $0x760] sm:$0xff]
    %v330 = vld [vmem:[#allocation5 + $0x768] sm:$0xff]
    %v331 = vld [vmem:[#allocation5 + $0x770] sm:$0xff]
    %v332 = vld [vmem:[#allocation5 + $0x778] sm:$0xff]
    %v333 = vld [vmem:[#allocation5 + $0x780] sm:$0xff]
    %v334 = vld [vmem:[#allocation5 + $0x788] sm:$0xff]
    %v335 = vld [vmem:[#allocation5 + $0x790] sm:$0xff]
    %v336 = vld [vmem:[#allocation5 + $0x798] sm:$0xff]
    %v337 = vld [vmem:[#allocation5 + $0x7a0] sm:$0xff]
    %v338 = vld [vmem:[#allocation5 + $0x7a8] sm:$0xff]
    %v339 = vld [vmem:[#allocation5 + $0x7b0] sm:$0xff]
    %v340 = vld [vmem:[#allocation5 + $0x7b8] sm:$0xff]
    %v341 = vld [vmem:[#allocation5 + $0x7c0] sm:$0xff]
    %v342 = vld [vmem:[#allocation5 + $0x7c8] sm:$0xff]
    %v343 = vld [vmem:[#allocation5 + $0x7d0] sm:$0xff]
    %v344 = vld [vmem:[#allocation5 + $0x7d8] sm:$0xff]
    %v345 = vld [vmem:[#allocation5 + $0x7e0] sm:$0xff]
    %v346 = vld [vmem:[#allocation5 + $0x7e8] sm:$0xff]
    %v347 = vld [vmem:[#allocation5 + $0x7f0] sm:$0xff]
    %v348 = vld [vmem:[#allocation5 + $0x7f8] sm:$0xff]
    %v349 = vld [vmem:[#allocation5 + $0x800] sm:$0xff]
    %v350 = vld [vmem:[#allocation5 + $0x808] sm:$0xff]
    %v351 = vld [vmem:[#allocation5 + $0x810] sm:$0xff]
    %v352 = vld [vmem:[#allocation5 + $0x818] sm:$0xff]
    %v353 = vld [vmem:[#allocation5 + $0x820] sm:$0xff]
    %v354 = vld [vmem:[#allocation5 + $0x828] sm:$0xff]
    %v355 = vld [vmem:[#allocation5 + $0x830] sm:$0xff]
    %v356 = vld [vmem:[#allocation5 + $0x838] sm:$0xff]
    %v357 = vld [vmem:[#allocation5 + $0x840] sm:$0xff]
    %v358 = vld [vmem:[#allocation5 + $0x848] sm:$0xff]
    %v359 = vld [vmem:[#allocation5 + $0x850] sm:$0xff]
    %v360 = vld [vmem:[#allocation5 + $0x858] sm:$0xff]
    %v361 = vld [vmem:[#allocation5 + $0x860] sm:$0xff]
    %v362 = vld [vmem:[#allocation5 + $0x868] sm:$0xff]
    %v363 = vld [vmem:[#allocation5 + $0x870] sm:$0xff]
    %v364 = vld [vmem:[#allocation5 + $0x878] sm:$0xff]
    %v365 = vld [vmem:[#allocation5 + $0x880] sm:$0xff]
    %v366 = vld [vmem:[#allocation5 + $0x888] sm:$0xff]
    %v367 = vld [vmem:[#allocation5 + $0x890] sm:$0xff]
    %v368 = vld [vmem:[#allocation5 + $0x898] sm:$0xff]
    %v369 = vld [vmem:[#allocation5 + $0x8a0] sm:$0xff]
    %v370 = vld [vmem:[#allocation5 + $0x8a8] sm:$0xff]
    %v371 = vld [vmem:[#allocation5 + $0x8b0] sm:$0xff]
    %v372 = vld [vmem:[#allocation5 + $0x8b8] sm:$0xff]
    %v373 = vld [vmem:[#allocation5 + $0x8c0] sm:$0xff]
    %v374 = vld [vmem:[#allocation5 + $0x8c8] sm:$0xff]
    %v375 = vld [vmem:[#allocation5 + $0x8d0] sm:$0xff]
    %v376 = vld [vmem:[#allocation5 + $0x8d8] sm:$0xff]
    %v377 = vld [vmem:[#allocation5 + $0x8e0] sm:$0xff]
    %v378 = vld [vmem:[#allocation5 + $0x8e8] sm:$0xff]
    %v379 = vld [vmem:[#allocation5 + $0x8f0] sm:$0xff]
    %v380 = vld [vmem:[#allocation5 + $0x8f8] sm:$0xff]
    %v381 = vld [vmem:[#allocation5 + $0x900] sm:$0xff]
    %v382 = vld [vmem:[#allocation5 + $0x908] sm:$0xff]
    %v383 = vld [vmem:[#allocation5 + $0x910] sm:$0xff]
    %v384 = vld [vmem:[#allocation5 + $0x918] sm:$0xff]
    %v385 = vld [vmem:[#allocation5 + $0x920] sm:$0xff]
    %v386 = vld [vmem:[#allocation5 + $0x928] sm:$0xff]
    %v387 = vld [vmem:[#allocation5 + $0x930] sm:$0xff]
    %v388 = vld [vmem:[#allocation5 + $0x938] sm:$0xff]
    %v389 = vld [vmem:[#allocation5 + $0x940] sm:$0xff]
    %v390 = vld [vmem:[#allocation5 + $0x948] sm:$0xff]
    %v391 = vld [vmem:[#allocation5 + $0x950] sm:$0xff]
    %v392 = vld [vmem:[#allocation5 + $0x958] sm:$0xff]
    %v393 = vld [vmem:[#allocation5 + $0x960] sm:$0xff]
    %v394 = vld [vmem:[#allocation5 + $0x968] sm:$0xff]
    %v395 = vld [vmem:[#allocation5 + $0x970] sm:$0xff]
    %v396 = vld [vmem:[#allocation5 + $0x978] sm:$0xff]
    %v397 = vld [vmem:[#allocation5 + $0x980] sm:$0xff]
    %v398 = vld [vmem:[#allocation5 + $0x988] sm:$0xff]
    %v399 = vld [vmem:[#allocation5 + $0x990] sm:$0xff]
    %v400 = vld [vmem:[#allocation5 + $0x998] sm:$0xff]
    %v401 = vld [vmem:[#allocation5 + $0x9a0] sm:$0xff]
    %v402 = vld [vmem:[#allocation5 + $0x9a8] sm:$0xff]
    %v403 = vld [vmem:[#allocation5 + $0x9b0] sm:$0xff]
    %v404 = vld [vmem:[#allocation5 + $0x9b8] sm:$0xff]
    %v405 = vld [vmem:[#allocation5 + $0x9c0] sm:$0xff]
    %v406 = vld [vmem:[#allocation5 + $0x9c8] sm:$0xff]
    %v407 = vld [vmem:[#allocation5 + $0x9d0] sm:$0xff]
    %v408 = vld [vmem:[#allocation5 + $0x9d8] sm:$0xff]
    %v409 = vld [vmem:[#allocation5 + $0x9e0] sm:$0xff]
    %v410 = vld [vmem:[#allocation5 + $0x9e8] sm:$0xff]
    %v411 = vld [vmem:[#allocation5 + $0x9f0] sm:$0xff]
    %v412 = vld [vmem:[#allocation5 + $0x9f8] sm:$0xff]
    %v413 = vld [vmem:[#allocation5 + $0xa00] sm:$0xff]
    %v414 = vld [vmem:[#allocation5 + $0xa08] sm:$0xff]
    %v415 = vld [vmem:[#allocation5 + $0xa10] sm:$0xff]
    %v416 = vld [vmem:[#allocation5 + $0xa18] sm:$0xff]
    %v417 = vld [vmem:[#allocation5 + $0xa20] sm:$0xff]
    %v418 = vld [vmem:[#allocation5 + $0xa28] sm:$0xff]
    %v419 = vld [vmem:[#allocation5 + $0xa30] sm:$0xff]
    %v420 = vld [vmem:[#allocation5 + $0xa38] sm:$0xff]
    %v421 = vld [vmem:[#allocation5 + $0xa40] sm:$0xff]
    %v422 = vld [vmem:[#allocation5 + $0xa48] sm:$0xff]
    %v423 = vld [vmem:[#allocation5 + $0xa50] sm:$0xff]
    %v424 = vld [vmem:[#allocation5 + $0xa58] sm:$0xff]
    %v425 = vld [vmem:[#allocation5 + $0xa60] sm:$0xff]
    %v426 = vld [vmem:[#allocation5 + $0xa68] sm:$0xff]
    %v427 = vld [vmem:[#allocation5 + $0xa70] sm:$0xff]
    %v428 = vld [vmem:[#allocation5 + $0xa78] sm:$0xff]
    %v429 = vld [vmem:[#allocation5 + $0xa80] sm:$0xff]
    %v430 = vld [vmem:[#allocation5 + $0xa88] sm:$0xff]
    %v431 = vld [vmem:[#allocation5 + $0xa90] sm:$0xff]
    %v432 = vld [vmem:[#allocation5 + $0xa98] sm:$0xff]
    %v433 = vld [vmem:[#allocation5 + $0xaa0] sm:$0xff]
    %v434 = vld [vmem:[#allocation5 + $0xaa8] sm:$0xff]
    %v435 = vld [vmem:[#allocation5 + $0xab0] sm:$0xff]
    %v436 = vld [vmem:[#allocation5 + $0xab8] sm:$0xff]
    %v437 = vld [vmem:[#allocation5 + $0xac0] sm:$0xff]
    %v438 = vld [vmem:[#allocation5 + $0xac8] sm:$0xff]
    %v439 = vld [vmem:[#allocation5 + $0xad0] sm:$0xff]
    %v440 = vld [vmem:[#allocation5 + $0xad8] sm:$0xff]
    %v441 = vld [vmem:[#allocation5 + $0xae0] sm:$0xff]
    %v442 = vld [vmem:[#allocation5 + $0xae8] sm:$0xff]
    %v443 = vld [vmem:[#allocation5 + $0xaf0] sm:$0xff]
    %v444 = vld [vmem:[#allocation5 + $0xaf8] sm:$0xff]
    %v445 = vld [vmem:[#allocation5 + $0xb00] sm:$0xff]
    %v446 = vld [vmem:[#allocation5 + $0xb08] sm:$0xff]
    %v447 = vld [vmem:[#allocation5 + $0xb10] sm:$0xff]
    %v448 = vld [vmem:[#allocation5 + $0xb18] sm:$0xff]
    %v449 = vld [vmem:[#allocation5 + $0xb20] sm:$0xff]
    %v450 = vld [vmem:[#allocation5 + $0xb28] sm:$0xff]
    %v451 = vld [vmem:[#allocation5 + $0xb30] sm:$0xff]
    %v452 = vld [vmem:[#allocation5 + $0xb38] sm:$0xff]
    %v453 = vld [vmem:[#allocation5 + $0xb40] sm:$0xff]
    %v454 = vld [vmem:[#allocation5 + $0xb48] sm:$0xff]
    %v455 = vld [vmem:[#allocation5 + $0xb50] sm:$0xff]
    %v456 = vld [vmem:[#allocation5 + $0xb58] sm:$0xff]
    %v457 = vld [vmem:[#allocation5 + $0xb60] sm:$0xff]
    %v458 = vld [vmem:[#allocation5 + $0xb68] sm:$0xff]
    %v459 = vld [vmem:[#allocation5 + $0xb70] sm:$0xff]
    %v460 = vld [vmem:[#allocation5 + $0xb78] sm:$0xff]
    %v461 = vld [vmem:[#allocation5 + $0xb80] sm:$0xff]
    %v462 = vld [vmem:[#allocation5 + $0xb88] sm:$0xff]
    %v463 = vld [vmem:[#allocation5 + $0xb90] sm:$0xff]
    %v464 = vld [vmem:[#allocation5 + $0xb98] sm:$0xff]
    %v465 = vld [vmem:[#allocation5 + $0xba0] sm:$0xff]
    %v466 = vld [vmem:[#allocation5 + $0xba8] sm:$0xff]
    %v467 = vld [vmem:[#allocation5 + $0xbb0] sm:$0xff]
    %v468 = vld [vmem:[#allocation5 + $0xbb8] sm:$0xff]
    %v469 = vld [vmem:[#allocation5 + $0xbc0] sm:$0xff]
    %v470 = vld [vmem:[#allocation5 + $0xbc8] sm:$0xff]
    %v471 = vld [vmem:[#allocation5 + $0xbd0] sm:$0xff]
    %v472 = vld [vmem:[#allocation5 + $0xbd8] sm:$0xff]
    %v473 = vld [vmem:[#allocation5 + $0xbe0] sm:$0xff]
    %v474 = vld [vmem:[#allocation5 + $0xbe8] sm:$0xff]
    %v475 = vld [vmem:[#allocation5 + $0xbf0] sm:$0xff]
    %v476 = vld [vmem:[#allocation5 + $0xbf8] sm:$0xff]
    %v477 = vld [vmem:[#allocation5 + $0xc00] sm:$0xff]
    %v478 = vld [vmem:[#allocation5 + $0xc08] sm:$0xff]
    %v479 = vld [vmem:[#allocation5 + $0xc10] sm:$0xff]
    %v480 = vld [vmem:[#allocation5 + $0xc18] sm:$0xff]
    %v481 = vld [vmem:[#allocation5 + $0xc20] sm:$0xff]
    %v482 = vld [vmem:[#allocation5 + $0xc28] sm:$0xff]
    %v483 = vld [vmem:[#allocation5 + $0xc30] sm:$0xff]
    %v484 = vld [vmem:[#allocation5 + $0xc38] sm:$0xff]
    %v485 = vld [vmem:[#allocation5 + $0xc40] sm:$0xff]
    %v486 = vld [vmem:[#allocation5 + $0xc48] sm:$0xff]
    %v487 = vld [vmem:[#allocation5 + $0xc50] sm:$0xff]
    %v488 = vld [vmem:[#allocation5 + $0xc58] sm:$0xff]
    %v489 = vld [vmem:[#allocation5 + $0xc60] sm:$0xff]
    %v490 = vld [vmem:[#allocation5 + $0xc68] sm:$0xff]
    %v491 = vld [vmem:[#allocation5 + $0xc70] sm:$0xff]
    %v492 = vld [vmem:[#allocation5 + $0xc78] sm:$0xff]
    %v493 = vld [vmem:[#allocation5 + $0xc80] sm:$0xff]
    %v494 = vld [vmem:[#allocation5 + $0xc88] sm:$0xff]
    %v495 = vld [vmem:[#allocation5 + $0xc90] sm:$0xff]
    %v496 = vld [vmem:[#allocation5 + $0xc98] sm:$0xff]
    %v497 = vld [vmem:[#allocation5 + $0xca0] sm:$0xff]
    %v498 = vld [vmem:[#allocation5 + $0xca8] sm:$0xff]
    %v499 = vld [vmem:[#allocation5 + $0xcb0] sm:$0xff]
    %v500 = vld [vmem:[#allocation5 + $0xcb8] sm:$0xff]
    %v501 = vld [vmem:[#allocation5 + $0xcc0] sm:$0xff]
    %v502 = vld [vmem:[#allocation5 + $0xcc8] sm:$0xff]
    %v503 = vld [vmem:[#allocation5 + $0xcd0] sm:$0xff]
    %v504 = vld [vmem:[#allocation5 + $0xcd8] sm:$0xff]
    %v505 = vld [vmem:[#allocation5 + $0xce0] sm:$0xff]
    %v506 = vld [vmem:[#allocation5 + $0xce8] sm:$0xff]
    %v507 = vld [vmem:[#allocation5 + $0xcf0] sm:$0xff]
    %v508 = vld [vmem:[#allocation5 + $0xcf8] sm:$0xff]
    %v509 = vld [vmem:[#allocation5 + $0xd00] sm:$0xff]
    %v510 = vld [vmem:[#allocation5 + $0xd08] sm:$0xff]
    %v511 = vld [vmem:[#allocation5 + $0xd10] sm:$0xff]
    %v512 = vld [vmem:[#allocation5 + $0xd18] sm:$0xff]
    %v513 = vld [vmem:[#allocation5 + $0xd20] sm:$0xff]
    %v514 = vld [vmem:[#allocation5 + $0xd28] sm:$0xff]
    %v515 = vld [vmem:[#allocation5 + $0xd30] sm:$0xff]
    %v516 = vld [vmem:[#allocation5 + $0xd38] sm:$0xff]
    %v517 = vld [vmem:[#allocation5 + $0xd40] sm:$0xff]
    %v518 = vld [vmem:[#allocation5 + $0xd48] sm:$0xff]
    %v519 = vld [vmem:[#allocation5 + $0xd50] sm:$0xff]
    %v520 = vld [vmem:[#allocation5 + $0xd58] sm:$0xff]
    %v521 = vld [vmem:[#allocation5 + $0xd60] sm:$0xff]
    %v522 = vld [vmem:[#allocation5 + $0xd68] sm:$0xff]
    %v523 = vld [vmem:[#allocation5 + $0xd70] sm:$0xff]
    %v524 = vld [vmem:[#allocation5 + $0xd78] sm:$0xff]
    %v525 = vld [vmem:[#allocation5 + $0xd80] sm:$0xff]
    %v526 = vld [vmem:[#allocation5 + $0xd88] sm:$0xff]
    %v527 = vld [vmem:[#allocation5 + $0xd90] sm:$0xff]
    %v528 = vld [vmem:[#allocation5 + $0xd98] sm:$0xff]
    %v529 = vld [vmem:[#allocation5 + $0xda0] sm:$0xff]
    %v530 = vld [vmem:[#allocation5 + $0xda8] sm:$0xff]
    %v531 = vld [vmem:[#allocation5 + $0xdb0] sm:$0xff]
    %v532 = vld [vmem:[#allocation5 + $0xdb8] sm:$0xff]
    %v533 = vld [vmem:[#allocation5 + $0xdc0] sm:$0xff]
    %v534 = vld [vmem:[#allocation5 + $0xdc8] sm:$0xff]
    %v535 = vld [vmem:[#allocation5 + $0xdd0] sm:$0xff]
    %v536 = vld [vmem:[#allocation5 + $0xdd8] sm:$0xff]
    %v537 = vld [vmem:[#allocation5 + $0xde0] sm:$0xff]
    %v538 = vld [vmem:[#allocation5 + $0xde8] sm:$0xff]
    %v539 = vld [vmem:[#allocation5 + $0xdf0] sm:$0xff]
    %v540 = vld [vmem:[#allocation5 + $0xdf8] sm:$0xff]
    %v541 = vld [vmem:[#allocation5 + $0xe00] sm:$0xff]
    %v542 = vld [vmem:[#allocation5 + $0xe08] sm:$0xff]
    %v543 = vld [vmem:[#allocation5 + $0xe10] sm:$0xff]
    %v544 = vld [vmem:[#allocation5 + $0xe18] sm:$0xff]
    %v545 = vld [vmem:[#allocation5 + $0xe20] sm:$0xff]
    %v546 = vld [vmem:[#allocation5 + $0xe28] sm:$0xff]
    %v547 = vld [vmem:[#allocation5 + $0xe30] sm:$0xff]
    %v548 = vld [vmem:[#allocation5 + $0xe38] sm:$0xff]
    %v549 = vld [vmem:[#allocation5 + $0xe40] sm:$0xff]
    %v550 = vld [vmem:[#allocation5 + $0xe48] sm:$0xff]
    %v551 = vld [vmem:[#allocation5 + $0xe50] sm:$0xff]
    %v552 = vld [vmem:[#allocation5 + $0xe58] sm:$0xff]
    %v553 = vld [vmem:[#allocation5 + $0xe60] sm:$0xff]
    %v554 = vld [vmem:[#allocation5 + $0xe68] sm:$0xff]
    %v555 = vld [vmem:[#allocation5 + $0xe70] sm:$0xff]
    %v556 = vld [vmem:[#allocation5 + $0xe78] sm:$0xff]
    %v557 = vld [vmem:[#allocation5 + $0xe80] sm:$0xff]
    %v558 = vld [vmem:[#allocation5 + $0xe88] sm:$0xff]
    %v559 = vld [vmem:[#allocation5 + $0xe90] sm:$0xff]
    %v560 = vld [vmem:[#allocation5 + $0xe98] sm:$0xff]
    %v561 = vld [vmem:[#allocation5 + $0xea0] sm:$0xff]
    %v562 = vld [vmem:[#allocation5 + $0xea8] sm:$0xff]
    %v563 = vld [vmem:[#allocation5 + $0xeb0] sm:$0xff]
    %v564 = vld [vmem:[#allocation5 + $0xeb8] sm:$0xff]
    %v565 = vld [vmem:[#allocation5 + $0xec0] sm:$0xff]
    %v566 = vld [vmem:[#allocation5 + $0xec8] sm:$0xff]
    %v567 = vld [vmem:[#allocation5 + $0xed0] sm:$0xff]
    %v568 = vld [vmem:[#allocation5 + $0xed8] sm:$0xff]
    %v569 = vld [vmem:[#allocation5 + $0xee0] sm:$0xff]
    %v570 = vld [vmem:[#allocation5 + $0xee8] sm:$0xff]
    %v571 = vld [vmem:[#allocation5 + $0xef0] sm:$0xff]
    %v572 = vld [vmem:[#allocation5 + $0xef8] sm:$0xff]
    %v573 = vld [vmem:[#allocation5 + $0xf00] sm:$0xff]
    %v574 = vld [vmem:[#allocation5 + $0xf08] sm:$0xff]
    %v575 = vld [vmem:[#allocation5 + $0xf10] sm:$0xff]
    %v576 = vld [vmem:[#allocation5 + $0xf18] sm:$0xff]
    %v577 = vld [vmem:[#allocation5 + $0xf20] sm:$0xff]
    %v578 = vld [vmem:[#allocation5 + $0xf28] sm:$0xff]
    %v579 = vld [vmem:[#allocation5 + $0xf30] sm:$0xff]
    %v580 = vld [vmem:[#allocation5 + $0xf38] sm:$0xff]
    %v581 = vld [vmem:[#allocation5 + $0xf40] sm:$0xff]
    %v582 = vld [vmem:[#allocation5 + $0xf48] sm:$0xff]
    %v583 = vld [vmem:[#allocation5 + $0xf50] sm:$0xff]
    %v584 = vld [vmem:[#allocation5 + $0xf58] sm:$0xff]
    %v585 = vld [vmem:[#allocation5 + $0xf60] sm:$0xff]
    %v586 = vld [vmem:[#allocation5 + $0xf68] sm:$0xff]
    %v587 = vld [vmem:[#allocation5 + $0xf70] sm:$0xff]
    %v588 = vld [vmem:[#allocation5 + $0xf78] sm:$0xff]
    %v589 = vld [vmem:[#allocation5 + $0xf80] sm:$0xff]
    %v590 = vld [vmem:[#allocation5 + $0xf88] sm:$0xff]
    %v591 = vld [vmem:[#allocation5 + $0xf90] sm:$0xff]
    %v592 = vld [vmem:[#allocation5 + $0xf98] sm:$0xff]
    %v593 = vld [vmem:[#allocation5 + $0xfa0] sm:$0xff]
    %v594 = vld [vmem:[#allocation5 + $0xfa8] sm:$0xff]
    %v595 = vld [vmem:[#allocation5 + $0xfb0] sm:$0xff]
    %v596 = vld [vmem:[#allocation5 + $0xfb8] sm:$0xff]
    %v597 = vld [vmem:[#allocation5 + $0xfc0] sm:$0xff]
    %v598 = vld [vmem:[#allocation5 + $0xfc8] sm:$0xff]
    %v599 = vld [vmem:[#allocation5 + $0xfd0] sm:$0xff]
    %v600 = vld [vmem:[#allocation5 + $0xfd8] sm:$0xff]
    %v601 = vld [vmem:[#allocation5 + $0xfe0] sm:$0xff]
    %v602 = vld [vmem:[#allocation5 + $0xfe8] sm:$0xff]
    %v603 = vld [vmem:[#allocation5 + $0xff0] sm:$0xff]
    %v604 = vld [vmem:[#allocation5 + $0xff8] sm:$0xff]
    %v605 = vld [vmem:[#allocation5 + $0x1000] sm:$0xff]
    %v606 = vld [vmem:[#allocation5 + $0x1008] sm:$0xff]
    %v607 = vld [vmem:[#allocation5 + $0x1010] sm:$0xff]
    %v608 = vld [vmem:[#allocation5 + $0x1018] sm:$0xff]
    %v609 = vld [vmem:[#allocation5 + $0x1020] sm:$0xff]
    %v610 = vld [vmem:[#allocation5 + $0x1028] sm:$0xff]
    %v611 = vld [vmem:[#allocation5 + $0x1030] sm:$0xff]
    %v612 = vld [vmem:[#allocation5 + $0x1038] sm:$0xff]
    %v613 = vld [vmem:[#allocation5 + $0x1040] sm:$0xff]
    %v614 = vld [vmem:[#allocation5 + $0x1048] sm:$0xff]
    %v615 = vld [vmem:[#allocation5 + $0x1050] sm:$0xff]
    %v616 = vld [vmem:[#allocation5 + $0x1058] sm:$0xff]
    %v617 = vld [vmem:[#allocation5 + $0x1060] sm:$0xff]
    %v618 = vld [vmem:[#allocation5 + $0x1068] sm:$0xff]
    %v619 = vld [vmem:[#allocation5 + $0x1070] sm:$0xff]
    %v620 = vld [vmem:[#allocation5 + $0x1078] sm:$0xff]
    %v621 = vld [vmem:[#allocation5 + $0x1080] sm:$0xff]
    %v622 = vld [vmem:[#allocation5 + $0x1088] sm:$0xff]
    %v623 = vld [vmem:[#allocation5 + $0x1090] sm:$0xff]
    %v624 = vld [vmem:[#allocation5 + $0x1098] sm:$0xff]
    %v625 = vld [vmem:[#allocation5 + $0x10a0] sm:$0xff]
    %v626 = vld [vmem:[#allocation5 + $0x10a8] sm:$0xff]
    %v627 = vld [vmem:[#allocation5 + $0x10b0] sm:$0xff]
    %v628 = vld [vmem:[#allocation5 + $0x10b8] sm:$0xff]
    %v629 = vld [vmem:[#allocation5 + $0x10c0] sm:$0xff]
    %v630 = vld [vmem:[#allocation5 + $0x10c8] sm:$0xff]
    %v631 = vld [vmem:[#allocation5 + $0x10d0] sm:$0xff]
    %v632 = vld [vmem:[#allocation5 + $0x10d8] sm:$0xff]
    %v633 = vld [vmem:[#allocation5 + $0x10e0] sm:$0xff]
    %v634 = vld [vmem:[#allocation5 + $0x10e8] sm:$0xff]
    %v635 = vld [vmem:[#allocation5 + $0x10f0] sm:$0xff]
    %v636 = vld [vmem:[#allocation5 + $0x10f8] sm:$0xff]
    %v637 = vld [vmem:[#allocation5 + $0x1100] sm:$0xff]
    %v638 = vld [vmem:[#allocation5 + $0x1108] sm:$0xff]
    %v639 = vld [vmem:[#allocation5 + $0x1110] sm:$0xff]
    %v640 = vld [vmem:[#allocation5 + $0x1118] sm:$0xff]
    %v641 = vld [vmem:[#allocation5 + $0x1120] sm:$0xff]
    %v642 = vld [vmem:[#allocation5 + $0x1128] sm:$0xff]
    %v643 = vld [vmem:[#allocation5 + $0x1130] sm:$0xff]
    %v644 = vld [vmem:[#allocation5 + $0x1138] sm:$0xff]
    %v645 = vld [vmem:[#allocation5 + $0x1140] sm:$0xff]
    %v646 = vld [vmem:[#allocation5 + $0x1148] sm:$0xff]
    %v647 = vld [vmem:[#allocation5 + $0x1150] sm:$0xff]
    %v648 = vld [vmem:[#allocation5 + $0x1158] sm:$0xff]
    %v649 = vld [vmem:[#allocation5 + $0x1160] sm:$0xff]
    %v650 = vld [vmem:[#allocation5 + $0x1168] sm:$0xff]
    %v651 = vld [vmem:[#allocation5 + $0x1170] sm:$0xff]
    %v652 = vld [vmem:[#allocation5 + $0x1178] sm:$0xff]
    %v653 = vld [vmem:[#allocation5 + $0x1180] sm:$0xff]
    %v654 = vld [vmem:[#allocation5 + $0x1188] sm:$0xff]
    %v655 = vld [vmem:[#allocation5 + $0x1190] sm:$0xff]
    %v656 = vld [vmem:[#allocation5 + $0x1198] sm:$0xff]
    %v657 = vld [vmem:[#allocation5 + $0x11a0] sm:$0xff]
    %v658 = vld [vmem:[#allocation5 + $0x11a8] sm:$0xff]
    %v659 = vld [vmem:[#allocation5 + $0x11b0] sm:$0xff]
    %v660 = vld [vmem:[#allocation5 + $0x11b8] sm:$0xff]
    %v661 = vld [vmem:[#allocation5 + $0x11c0] sm:$0xff]
    %v662 = vld [vmem:[#allocation5 + $0x11c8] sm:$0xff]
    %v663 = vld [vmem:[#allocation5 + $0x11d0] sm:$0xff]
    %v664 = vld [vmem:[#allocation5 + $0x11d8] sm:$0xff]
    %v665 = vld [vmem:[#allocation5 + $0x11e0] sm:$0xff]
    %v666 = vld [vmem:[#allocation5 + $0x11e8] sm:$0xff]
    %v667 = vld [vmem:[#allocation5 + $0x11f0] sm:$0xff]
    %v668 = vld [vmem:[#allocation5 + $0x11f8] sm:$0xff]
    %v669 = vld [vmem:[#allocation5 + $0x1200] sm:$0xff]
    %v670 = vld [vmem:[#allocation5 + $0x1208] sm:$0xff]
    %v671 = vld [vmem:[#allocation5 + $0x1210] sm:$0xff]
    %v672 = vld [vmem:[#allocation5 + $0x1218] sm:$0xff]
    %v673 = vld [vmem:[#allocation5 + $0x1220] sm:$0xff]
    %v674 = vld [vmem:[#allocation5 + $0x1228] sm:$0xff]
    %v675 = vld [vmem:[#allocation5 + $0x1230] sm:$0xff]
    %v676 = vld [vmem:[#allocation5 + $0x1238] sm:$0xff]
    %v677 = vld [vmem:[#allocation5 + $0x1240] sm:$0xff]
    %v678 = vld [vmem:[#allocation5 + $0x1248] sm:$0xff]
    %v679 = vld [vmem:[#allocation5 + $0x1250] sm:$0xff]
    %v680 = vld [vmem:[#allocation5 + $0x1258] sm:$0xff]
    %v681 = vld [vmem:[#allocation5 + $0x1260] sm:$0xff]
    %v682 = vld [vmem:[#allocation5 + $0x1268] sm:$0xff]
    %v683 = vld [vmem:[#allocation5 + $0x1270] sm:$0xff]
    %v684 = vld [vmem:[#allocation5 + $0x1278] sm:$0xff]
    %v685 = vld [vmem:[#allocation5 + $0x1280] sm:$0xff]
    %v686 = vld [vmem:[#allocation5 + $0x1288] sm:$0xff]
    %v687 = vld [vmem:[#allocation5 + $0x1290] sm:$0xff]
    %v688 = vld [vmem:[#allocation5 + $0x1298] sm:$0xff]
    %v689 = vld [vmem:[#allocation5 + $0x12a0] sm:$0xff]
    %v690 = vld [vmem:[#allocation5 + $0x12a8] sm:$0xff]
    %v691 = vld [vmem:[#allocation5 + $0x12b0] sm:$0xff]
    %v692 = vld [vmem:[#allocation5 + $0x12b8] sm:$0xff]
    %v693 = vld [vmem:[#allocation5 + $0x12c0] sm:$0xff]
    %v694 = vld [vmem:[#allocation5 + $0x12c8] sm:$0xff]
    %v695 = vld [vmem:[#allocation5 + $0x12d0] sm:$0xff]
    %v696 = vld [vmem:[#allocation5 + $0x12d8] sm:$0xff]
    %v697 = vld [vmem:[#allocation5 + $0x12e0] sm:$0xff]
    %v698 = vld [vmem:[#allocation5 + $0x12e8] sm:$0xff]
    %v699 = vld [vmem:[#allocation5 + $0x12f0] sm:$0xff]
    %v700 = vld [vmem:[#allocation5 + $0x12f8] sm:$0xff]
    %v701 = vld [vmem:[#allocation5 + $0x1300] sm:$0xff]
    %v702 = vld [vmem:[#allocation5 + $0x1308] sm:$0xff]
    %v703 = vld [vmem:[#allocation5 + $0x1310] sm:$0xff]
    %v704 = vld [vmem:[#allocation5 + $0x1318] sm:$0xff]
    %v705 = vld [vmem:[#allocation5 + $0x1320] sm:$0xff]
    %v706 = vld [vmem:[#allocation5 + $0x1328] sm:$0xff]
    %v707 = vld [vmem:[#allocation5 + $0x1330] sm:$0xff]
    %v708 = vld [vmem:[#allocation5 + $0x1338] sm:$0xff]
    %v709 = vld [vmem:[#allocation5 + $0x1340] sm:$0xff]
    %v710 = vld [vmem:[#allocation5 + $0x1348] sm:$0xff]
    %v711 = vld [vmem:[#allocation5 + $0x1350] sm:$0xff]
    %v712 = vld [vmem:[#allocation5 + $0x1358] sm:$0xff]
    %v713 = vld [vmem:[#allocation5 + $0x1360] sm:$0xff]
    %v714 = vld [vmem:[#allocation5 + $0x1368] sm:$0xff]
    %v715 = vld [vmem:[#allocation5 + $0x1370] sm:$0xff]
    %v716 = vld [vmem:[#allocation5 + $0x1378] sm:$0xff]
    %v717 = vld [vmem:[#allocation5 + $0x1380] sm:$0xff]
    %v718 = vld [vmem:[#allocation5 + $0x1388] sm:$0xff]
    %v719 = vld [vmem:[#allocation5 + $0x1390] sm:$0xff]
    %v720 = vld [vmem:[#allocation5 + $0x1398] sm:$0xff]
    %v721 = vld [vmem:[#allocation5 + $0x13a0] sm:$0xff]
    %v722 = vld [vmem:[#allocation5 + $0x13a8] sm:$0xff]
    %v723 = vld [vmem:[#allocation5 + $0x13b0] sm:$0xff]
    %v724 = vld [vmem:[#allocation5 + $0x13b8] sm:$0xff]
    %v725 = vld [vmem:[#allocation5 + $0x13c0] sm:$0xff]
    %v726 = vld [vmem:[#allocation5 + $0x13c8] sm:$0xff]
    %v727 = vld [vmem:[#allocation5 + $0x13d0] sm:$0xff]
    %v728 = vld [vmem:[#allocation5 + $0x13d8] sm:$0xff]
    %v729 = vld [vmem:[#allocation5 + $0x13e0] sm:$0xff]
    %v730 = vld [vmem:[#allocation5 + $0x13e8] sm:$0xff]
    %v731 = vld [vmem:[#allocation5 + $0x13f0] sm:$0xff]
    %v732 = vld [vmem:[#allocation5 + $0x13f8] sm:$0xff]
    %v733 = vld [vmem:[#allocation5 + $0x1400] sm:$0xff]
    %v734 = vld [vmem:[#allocation5 + $0x1408] sm:$0xff]
    %v735 = vld [vmem:[#allocation5 + $0x1410] sm:$0xff]
    %v736 = vld [vmem:[#allocation5 + $0x1418] sm:$0xff]
    %v737 = vld [vmem:[#allocation5 + $0x1420] sm:$0xff]
    %v738 = vld [vmem:[#allocation5 + $0x1428] sm:$0xff]
    %v739 = vld [vmem:[#allocation5 + $0x1430] sm:$0xff]
    %v740 = vld [vmem:[#allocation5 + $0x1438] sm:$0xff]
    %v741 = vld [vmem:[#allocation5 + $0x1440] sm:$0xff]
    %v742 = vld [vmem:[#allocation5 + $0x1448] sm:$0xff]
    %v743 = vld [vmem:[#allocation5 + $0x1450] sm:$0xff]
    %v744 = vld [vmem:[#allocation5 + $0x1458] sm:$0xff]
    %v745 = vld [vmem:[#allocation5 + $0x1460] sm:$0xff]
    %v746 = vld [vmem:[#allocation5 + $0x1468] sm:$0xff]
    %v747 = vld [vmem:[#allocation5 + $0x1470] sm:$0xff]
    %v748 = vld [vmem:[#allocation5 + $0x1478] sm:$0xff]
    %v749 = vld [vmem:[#allocation5 + $0x1480] sm:$0xff]
    %v750 = vld [vmem:[#allocation5 + $0x1488] sm:$0xff]
    %v751 = vld [vmem:[#allocation5 + $0x1490] sm:$0xff]
    %v752 = vld [vmem:[#allocation5 + $0x1498] sm:$0xff]
    %v753 = vld [vmem:[#allocation5 + $0x14a0] sm:$0xff]
    %v754 = vld [vmem:[#allocation5 + $0x14a8] sm:$0xff]
    %v755 = vld [vmem:[#allocation5 + $0x14b0] sm:$0xff]
    %v756 = vld [vmem:[#allocation5 + $0x14b8] sm:$0xff]
    %v757 = vld [vmem:[#allocation5 + $0x14c0] sm:$0xff]
    %v758 = vld [vmem:[#allocation5 + $0x14c8] sm:$0xff]
    %v759 = vld [vmem:[#allocation5 + $0x14d0] sm:$0xff]
    %v760 = vld [vmem:[#allocation5 + $0x14d8] sm:$0xff]
    %v761 = vld [vmem:[#allocation5 + $0x14e0] sm:$0xff]
    %v762 = vld [vmem:[#allocation5 + $0x14e8] sm:$0xff]
    %v763 = vld [vmem:[#allocation5 + $0x14f0] sm:$0xff]
    %v764 = vld [vmem:[#allocation5 + $0x14f8] sm:$0xff]
    %v765 = vld [vmem:[#allocation5 + $0x1500] sm:$0xff]
    %v766 = vld [vmem:[#allocation5 + $0x1508] sm:$0xff]
    %v767 = vld [vmem:[#allocation5 + $0x1510] sm:$0xff]
    %v768 = vld [vmem:[#allocation5 + $0x1518] sm:$0xff]
    %v769 = vld [vmem:[#allocation5 + $0x1520] sm:$0xff]
    %v770 = vld [vmem:[#allocation5 + $0x1528] sm:$0xff]
    %v771 = vld [vmem:[#allocation5 + $0x1530] sm:$0xff]
    %v772 = vld [vmem:[#allocation5 + $0x1538] sm:$0xff]
    %v773 = vld [vmem:[#allocation5 + $0x1540] sm:$0xff]
    %v774 = vld [vmem:[#allocation5 + $0x1548] sm:$0xff]
    %v775 = vld [vmem:[#allocation5 + $0x1550] sm:$0xff]
    %v776 = vld [vmem:[#allocation5 + $0x1558] sm:$0xff]
    %v777 = vld [vmem:[#allocation5 + $0x1560] sm:$0xff]
    %v778 = vld [vmem:[#allocation5 + $0x1568] sm:$0xff]
    %v779 = vld [vmem:[#allocation5 + $0x1570] sm:$0xff]
    %v780 = vld [vmem:[#allocation5 + $0x1578] sm:$0xff]
    %v781 = vld [vmem:[#allocation5 + $0x1580] sm:$0xff]
    %v782 = vld [vmem:[#allocation5 + $0x1588] sm:$0xff]
    %v783 = vld [vmem:[#allocation5 + $0x1590] sm:$0xff]
    %v784 = vld [vmem:[#allocation5 + $0x1598] sm:$0xff]
    %v785 = vld [vmem:[#allocation5 + $0x15a0] sm:$0xff]
    %v786 = vld [vmem:[#allocation5 + $0x15a8] sm:$0xff]
    %v787 = vld [vmem:[#allocation5 + $0x15b0] sm:$0xff]
    %v788 = vld [vmem:[#allocation5 + $0x15b8] sm:$0xff]
    %v789 = vld [vmem:[#allocation5 + $0x15c0] sm:$0xff]
    %v790 = vld [vmem:[#allocation5 + $0x15c8] sm:$0xff]
    %v791 = vld [vmem:[#allocation5 + $0x15d0] sm:$0xff]
    %v792 = vld [vmem:[#allocation5 + $0x15d8] sm:$0xff]
    %v793 = vld [vmem:[#allocation5 + $0x15e0] sm:$0xff]
    %v794 = vld [vmem:[#allocation5 + $0x15e8] sm:$0xff]
    %v795 = vld [vmem:[#allocation5 + $0x15f0] sm:$0xff]
    %v796 = vld [vmem:[#allocation5 + $0x15f8] sm:$0xff]
    %v797 = vld [vmem:[#allocation5 + $0x1600] sm:$0xff]
    %v798 = vld [vmem:[#allocation5 + $0x1608] sm:$0xff]
    %v799 = vld [vmem:[#allocation5 + $0x1610] sm:$0xff]
    %v800 = vld [vmem:[#allocation5 + $0x1618] sm:$0xff]
    %v801 = vld [vmem:[#allocation5 + $0x1620] sm:$0xff]
    %v802 = vld [vmem:[#allocation5 + $0x1628] sm:$0xff]
    %v803 = vld [vmem:[#allocation5 + $0x1630] sm:$0xff]
    %v804 = vld [vmem:[#allocation5 + $0x1638] sm:$0xff]
    %v805 = vld [vmem:[#allocation5 + $0x1640] sm:$0xff]
    %v806 = vld [vmem:[#allocation5 + $0x1648] sm:$0xff]
    %v807 = vld [vmem:[#allocation5 + $0x1650] sm:$0xff]
    %v808 = vld [vmem:[#allocation5 + $0x1658] sm:$0xff]
    %v809 = vld [vmem:[#allocation5 + $0x1660] sm:$0xff]
    %v810 = vld [vmem:[#allocation5 + $0x1668] sm:$0xff]
    %v811 = vld [vmem:[#allocation5 + $0x1670] sm:$0xff]
    %v812 = vld [vmem:[#allocation5 + $0x1678] sm:$0xff]
    %v813 = vld [vmem:[#allocation5 + $0x1680] sm:$0xff]
    %v814 = vld [vmem:[#allocation5 + $0x1688] sm:$0xff]
    %v815 = vld [vmem:[#allocation5 + $0x1690] sm:$0xff]
    %v816 = vld [vmem:[#allocation5 + $0x1698] sm:$0xff]
    %v817 = vld [vmem:[#allocation5 + $0x16a0] sm:$0xff]
    %v818 = vld [vmem:[#allocation5 + $0x16a8] sm:$0xff]
    %v819 = vld [vmem:[#allocation5 + $0x16b0] sm:$0xff]
    %v820 = vld [vmem:[#allocation5 + $0x16b8] sm:$0xff]
    %v821 = vld [vmem:[#allocation5 + $0x16c0] sm:$0xff]
    %v822 = vld [vmem:[#allocation5 + $0x16c8] sm:$0xff]
    %v823 = vld [vmem:[#allocation5 + $0x16d0] sm:$0xff]
    %v824 = vld [vmem:[#allocation5 + $0x16d8] sm:$0xff]
    %v825 = vld [vmem:[#allocation5 + $0x16e0] sm:$0xff]
    %v826 = vld [vmem:[#allocation5 + $0x16e8] sm:$0xff]
    %v827 = vld [vmem:[#allocation5 + $0x16f0] sm:$0xff]
    %v828 = vld [vmem:[#allocation5 + $0x16f8] sm:$0xff]
    %v829 = vld [vmem:[#allocation5 + $0x1700] sm:$0xff]
    %v830 = vld [vmem:[#allocation5 + $0x1708] sm:$0xff]
    %v831 = vld [vmem:[#allocation5 + $0x1710] sm:$0xff]
    %v832 = vld [vmem:[#allocation5 + $0x1718] sm:$0xff]
    %v833 = vld [vmem:[#allocation5 + $0x1720] sm:$0xff]
    %v834 = vld [vmem:[#allocation5 + $0x1728] sm:$0xff]
    %v835 = vld [vmem:[#allocation5 + $0x1730] sm:$0xff]
    %v836 = vld [vmem:[#allocation5 + $0x1738] sm:$0xff]
    %v837 = vld [vmem:[#allocation5 + $0x1740] sm:$0xff]
    %v838 = vld [vmem:[#allocation5 + $0x1748] sm:$0xff]
    %v839 = vld [vmem:[#allocation5 + $0x1750] sm:$0xff]
    %v840 = vld [vmem:[#allocation5 + $0x1758] sm:$0xff]
    %v841 = vld [vmem:[#allocation5 + $0x1760] sm:$0xff]
    %v842 = vld [vmem:[#allocation5 + $0x1768] sm:$0xff]
    %v843 = vld [vmem:[#allocation5 + $0x1770] sm:$0xff]
    %v844 = vld [vmem:[#allocation5 + $0x1778] sm:$0xff]
    %v845 = vld [vmem:[#allocation5 + $0x1780] sm:$0xff]
    %v846 = vld [vmem:[#allocation5 + $0x1788] sm:$0xff]
    %v847 = vld [vmem:[#allocation5 + $0x1790] sm:$0xff]
    %v848 = vld [vmem:[#allocation5 + $0x1798] sm:$0xff]
    %v849 = vld [vmem:[#allocation5 + $0x17a0] sm:$0xff]
    %v850 = vld [vmem:[#allocation5 + $0x17a8] sm:$0xff]
    %v851 = vld [vmem:[#allocation5 + $0x17b0] sm:$0xff]
    %v852 = vld [vmem:[#allocation5 + $0x17b8] sm:$0xff]
    %v853 = vld [vmem:[#allocation5 + $0x17c0] sm:$0xff]
    %v854 = vld [vmem:[#allocation5 + $0x17c8] sm:$0xff]
    %v855 = vld [vmem:[#allocation5 + $0x17d0] sm:$0xff]
    %v856 = vld [vmem:[#allocation5 + $0x17d8] sm:$0xff]
    %v857 = vld [vmem:[#allocation5 + $0x17e0] sm:$0xff]
    %v858 = vld [vmem:[#allocation5 + $0x17e8] sm:$0xff]
    %v859 = vld [vmem:[#allocation5 + $0x17f0] sm:$0xff]
    %v860 = vld [vmem:[#allocation5 + $0x17f8] sm:$0xff]
    %v861 = vld [vmem:[#allocation5 + $0x1800] sm:$0xff]
    %v862 = vld [vmem:[#allocation5 + $0x1808] sm:$0xff]
    %v863 = vld [vmem:[#allocation5 + $0x1810] sm:$0xff]
    %v864 = vld [vmem:[#allocation5 + $0x1818] sm:$0xff]
    %v865 = vld [vmem:[#allocation5 + $0x1820] sm:$0xff]
    %v866 = vld [vmem:[#allocation5 + $0x1828] sm:$0xff]
    %v867 = vld [vmem:[#allocation5 + $0x1830] sm:$0xff]
    %v868 = vld [vmem:[#allocation5 + $0x1838] sm:$0xff]
    %v869 = vld [vmem:[#allocation5 + $0x1840] sm:$0xff]
    %v870 = vld [vmem:[#allocation5 + $0x1848] sm:$0xff]
    %v871 = vld [vmem:[#allocation5 + $0x1850] sm:$0xff]
    %v872 = vld [vmem:[#allocation5 + $0x1858] sm:$0xff]
    %v873 = vld [vmem:[#allocation5 + $0x1860] sm:$0xff]
    %v874 = vld [vmem:[#allocation5 + $0x1868] sm:$0xff]
    %v875 = vld [vmem:[#allocation5 + $0x1870] sm:$0xff]
    %v876 = vld [vmem:[#allocation5 + $0x1878] sm:$0xff]
    %v877 = vld [vmem:[#allocation5 + $0x1880] sm:$0xff]
    %v878 = vld [vmem:[#allocation5 + $0x1888] sm:$0xff]
    %v879 = vld [vmem:[#allocation5 + $0x1890] sm:$0xff]
    %v880 = vld [vmem:[#allocation5 + $0x1898] sm:$0xff]
    %v881 = vld [vmem:[#allocation5 + $0x18a0] sm:$0xff]
    %v882 = vld [vmem:[#allocation5 + $0x18a8] sm:$0xff]
    %v883 = vld [vmem:[#allocation5 + $0x18b0] sm:$0xff]
    %v884 = vld [vmem:[#allocation5 + $0x18b8] sm:$0xff]
    %v885 = vld [vmem:[#allocation5 + $0x18c0] sm:$0xff]
    %v886 = vld [vmem:[#allocation5 + $0x18c8] sm:$0xff]
    %v887 = vld [vmem:[#allocation5 + $0x18d0] sm:$0xff]
    %v888 = vld [vmem:[#allocation5 + $0x18d8] sm:$0xff]
    %v889 = vld [vmem:[#allocation5 + $0x18e0] sm:$0xff]
    %v890 = vld [vmem:[#allocation5 + $0x18e8] sm:$0xff]
    %v891 = vld [vmem:[#allocation5 + $0x18f0] sm:$0xff]
    %v892 = vld [vmem:[#allocation5 + $0x18f8] sm:$0xff]
    %v893 = vld [vmem:[#allocation5 + $0x1900] sm:$0xff]
    %v894 = vld [vmem:[#allocation5 + $0x1908] sm:$0xff]
    %v895 = vld [vmem:[#allocation5 + $0x1910] sm:$0xff]
    %v896 = vld [vmem:[#allocation5 + $0x1918] sm:$0xff]
    %v897 = vld [vmem:[#allocation5 + $0x1920] sm:$0xff]
    %v898 = vld [vmem:[#allocation5 + $0x1928] sm:$0xff]
    %v899 = vld [vmem:[#allocation5 + $0x1930] sm:$0xff]
    %v900 = vld [vmem:[#allocation5 + $0x1938] sm:$0xff]
    %v901 = vld [vmem:[#allocation5 + $0x1940] sm:$0xff]
    %v902 = vld [vmem:[#allocation5 + $0x1948] sm:$0xff]
    %v903 = vld [vmem:[#allocation5 + $0x1950] sm:$0xff]
    %v904 = vld [vmem:[#allocation5 + $0x1958] sm:$0xff]
    %v905 = vld [vmem:[#allocation5 + $0x1960] sm:$0xff]
    %v906 = vld [vmem:[#allocation5 + $0x1968] sm:$0xff]
    %v907 = vld [vmem:[#allocation5 + $0x1970] sm:$0xff]
    %v908 = vld [vmem:[#allocation5 + $0x1978] sm:$0xff]
    %v909 = vld [vmem:[#allocation5 + $0x1980] sm:$0xff]
    %v910 = vld [vmem:[#allocation5 + $0x1988] sm:$0xff]
    %v911 = vld [vmem:[#allocation5 + $0x1990] sm:$0xff]
    %v912 = vld [vmem:[#allocation5 + $0x1998] sm:$0xff]
    %v913 = vld [vmem:[#allocation5 + $0x19a0] sm:$0xff]
    %v914 = vld [vmem:[#allocation5 + $0x19a8] sm:$0xff]
    %v915 = vld [vmem:[#allocation5 + $0x19b0] sm:$0xff]
    %v916 = vld [vmem:[#allocation5 + $0x19b8] sm:$0xff]
    %v917 = vld [vmem:[#allocation5 + $0x19c0] sm:$0xff]
    %v918 = vld [vmem:[#allocation5 + $0x19c8] sm:$0xff]
    %v919 = vld [vmem:[#allocation5 + $0x19d0] sm:$0xff]
    %v920 = vld [vmem:[#allocation5 + $0x19d8] sm:$0xff]
    %v921 = vld [vmem:[#allocation5 + $0x19e0] sm:$0xff]
    %v922 = vld [vmem:[#allocation5 + $0x19e8] sm:$0xff]
    %v923 = vld [vmem:[#allocation5 + $0x19f0] sm:$0xff]
    %v924 = vld [vmem:[#allocation5 + $0x19f8] sm:$0xff]
    %v925 = vld [vmem:[#allocation5 + $0x1a00] sm:$0xff]
    %v926 = vld [vmem:[#allocation5 + $0x1a08] sm:$0xff]
    %v927 = vld [vmem:[#allocation5 + $0x1a10] sm:$0xff]
    %v928 = vld [vmem:[#allocation5 + $0x1a18] sm:$0xff]
    %v929 = vld [vmem:[#allocation5 + $0x1a20] sm:$0xff]
    %v930 = vld [vmem:[#allocation5 + $0x1a28] sm:$0xff]
    %v931 = vld [vmem:[#allocation5 + $0x1a30] sm:$0xff]
    %v932 = vld [vmem:[#allocation5 + $0x1a38] sm:$0xff]
    %v933 = vld [vmem:[#allocation5 + $0x1a40] sm:$0xff]
    %v934 = vld [vmem:[#allocation5 + $0x1a48] sm:$0xff]
    %v935 = vld [vmem:[#allocation5 + $0x1a50] sm:$0xff]
    %v936 = vld [vmem:[#allocation5 + $0x1a58] sm:$0xff]
    %v937 = vld [vmem:[#allocation5 + $0x1a60] sm:$0xff]
    %v938 = vld [vmem:[#allocation5 + $0x1a68] sm:$0xff]
    %v939 = vld [vmem:[#allocation5 + $0x1a70] sm:$0xff]
    %v940 = vld [vmem:[#allocation5 + $0x1a78] sm:$0xff]
    %v941 = vld [vmem:[#allocation5 + $0x1a80] sm:$0xff]
    %v942 = vld [vmem:[#allocation5 + $0x1a88] sm:$0xff]
    %v943 = vld [vmem:[#allocation5 + $0x1a90] sm:$0xff]
    %v944 = vld [vmem:[#allocation5 + $0x1a98] sm:$0xff]
    %v945 = vld [vmem:[#allocation5 + $0x1aa0] sm:$0xff]
    %v946 = vld [vmem:[#allocation5 + $0x1aa8] sm:$0xff]
    %v947 = vld [vmem:[#allocation5 + $0x1ab0] sm:$0xff]
    %v948 = vld [vmem:[#allocation5 + $0x1ab8] sm:$0xff]
    %v949 = vld [vmem:[#allocation5 + $0x1ac0] sm:$0xff]
    %v950 = vld [vmem:[#allocation5 + $0x1ac8] sm:$0xff]
    %v951 = vld [vmem:[#allocation5 + $0x1ad0] sm:$0xff]
    %v952 = vld [vmem:[#allocation5 + $0x1ad8] sm:$0xff]
    %v953 = vld [vmem:[#allocation5 + $0x1ae0] sm:$0xff]
    %v954 = vld [vmem:[#allocation5 + $0x1ae8] sm:$0xff]
    %v955 = vld [vmem:[#allocation5 + $0x1af0] sm:$0xff]
    %v956 = vld [vmem:[#allocation5 + $0x1af8] sm:$0xff]
    %v957 = vld [vmem:[#allocation5 + $0x1b00] sm:$0xff]
    %v958 = vld [vmem:[#allocation5 + $0x1b08] sm:$0xff]
    %v959 = vld [vmem:[#allocation5 + $0x1b10] sm:$0xff]
    %v960 = vld [vmem:[#allocation5 + $0x1b18] sm:$0xff]
    %v961 = vld [vmem:[#allocation5 + $0x1b20] sm:$0xff]
    %v962 = vld [vmem:[#allocation5 + $0x1b28] sm:$0xff]
    %v963 = vld [vmem:[#allocation5 + $0x1b30] sm:$0xff]
    %v964 = vld [vmem:[#allocation5 + $0x1b38] sm:$0xff]
    %v965 = vld [vmem:[#allocation5 + $0x1b40] sm:$0xff]
    %v966 = vld [vmem:[#allocation5 + $0x1b48] sm:$0xff]
    %v967 = vld [vmem:[#allocation5 + $0x1b50] sm:$0xff]
    %v968 = vld [vmem:[#allocation5 + $0x1b58] sm:$0xff]
    %v969 = vld [vmem:[#allocation5 + $0x1b60] sm:$0xff]
    %v970 = vld [vmem:[#allocation5 + $0x1b68] sm:$0xff]
    %v971 = vld [vmem:[#allocation5 + $0x1b70] sm:$0xff]
    %v972 = vld [vmem:[#allocation5 + $0x1b78] sm:$0xff]
    %v973 = vld [vmem:[#allocation5 + $0x1b80] sm:$0xff]
    %v974 = vld [vmem:[#allocation5 + $0x1b88] sm:$0xff]
    %v975 = vld [vmem:[#allocation5 + $0x1b90] sm:$0xff]
    %v976 = vld [vmem:[#allocation5 + $0x1b98] sm:$0xff]
    %v977 = vld [vmem:[#allocation5 + $0x1ba0] sm:$0xff]
    %v978 = vld [vmem:[#allocation5 + $0x1ba8] sm:$0xff]
    %v979 = vld [vmem:[#allocation5 + $0x1bb0] sm:$0xff]
    %v980 = vld [vmem:[#allocation5 + $0x1bb8] sm:$0xff]
    %v981 = vld [vmem:[#allocation5 + $0x1bc0] sm:$0xff]
    %v982 = vld [vmem:[#allocation5 + $0x1bc8] sm:$0xff]
    %v983 = vld [vmem:[#allocation5 + $0x1bd0] sm:$0xff]
    %v984 = vld [vmem:[#allocation5 + $0x1bd8] sm:$0xff]
    %v985 = vld [vmem:[#allocation5 + $0x1be0] sm:$0xff]
    %v986 = vld [vmem:[#allocation5 + $0x1be8] sm:$0xff]
    %v987 = vld [vmem:[#allocation5 + $0x1bf0] sm:$0xff]
    %v988 = vld [vmem:[#allocation5 + $0x1bf8] sm:$0xff]
    %v989 = vld [vmem:[#allocation5 + $0x1c00] sm:$0xff]
    %v990 = vld [vmem:[#allocation5 + $0x1c08] sm:$0xff]
    %v991 = vld [vmem:[#allocation5 + $0x1c10] sm:$0xff]
    %v992 = vld [vmem:[#allocation5 + $0x1c18] sm:$0xff]
    %v993 = vld [vmem:[#allocation5 + $0x1c20] sm:$0xff]
    %v994 = vld [vmem:[#allocation5 + $0x1c28] sm:$0xff]
    %v995 = vld [vmem:[#allocation5 + $0x1c30] sm:$0xff]
    %v996 = vld [vmem:[#allocation5 + $0x1c38] sm:$0xff]
    %v997 = vld [vmem:[#allocation5 + $0x1c40] sm:$0xff]
    %v998 = vld [vmem:[#allocation5 + $0x1c48] sm:$0xff]
    %v999 = vld [vmem:[#allocation5 + $0x1c50] sm:$0xff]
    %v1000 = vld [vmem:[#allocation5 + $0x1c58] sm:$0xff]
    %v1001 = vld [vmem:[#allocation5 + $0x1c60] sm:$0xff]
    %v1002 = vld [vmem:[#allocation5 + $0x1c68] sm:$0xff]
    %v1003 = vld [vmem:[#allocation5 + $0x1c70] sm:$0xff]
    %v1004 = vld [vmem:[#allocation5 + $0x1c78] sm:$0xff]
    %v1005 = vld [vmem:[#allocation5 + $0x1c80] sm:$0xff]
    %v1006 = vld [vmem:[#allocation5 + $0x1c88] sm:$0xff]
    %v1007 = vld [vmem:[#allocation5 + $0x1c90] sm:$0xff]
    %v1008 = vld [vmem:[#allocation5 + $0x1c98] sm:$0xff]
    %v1009 = vld [vmem:[#allocation5 + $0x1ca0] sm:$0xff]
    %v1010 = vld [vmem:[#allocation5 + $0x1ca8] sm:$0xff]
    %v1011 = vld [vmem:[#allocation5 + $0x1cb0] sm:$0xff]
    %v1012 = vld [vmem:[#allocation5 + $0x1cb8] sm:$0xff]
    %v1013 = vld [vmem:[#allocation5 + $0x1cc0] sm:$0xff]
    %v1014 = vld [vmem:[#allocation5 + $0x1cc8] sm:$0xff]
    %v1015 = vld [vmem:[#allocation5 + $0x1cd0] sm:$0xff]
    %v1016 = vld [vmem:[#allocation5 + $0x1cd8] sm:$0xff]
    %v1017 = vld [vmem:[#allocation5 + $0x1ce0] sm:$0xff]
    %v1018 = vld [vmem:[#allocation5 + $0x1ce8] sm:$0xff]
    %v1019 = vld [vmem:[#allocation5 + $0x1cf0] sm:$0xff]
    %v1020 = vld [vmem:[#allocation5 + $0x1cf8] sm:$0xff]
    %v1021 = vld [vmem:[#allocation5 + $0x1d00] sm:$0xff]
    %v1022 = vld [vmem:[#allocation5 + $0x1d08] sm:$0xff]
    %v1023 = vld [vmem:[#allocation5 + $0x1d10] sm:$0xff]
    %v1024 = vld [vmem:[#allocation5 + $0x1d18] sm:$0xff]
    %v1025 = vld [vmem:[#allocation5 + $0x1d20] sm:$0xff]
    %v1026 = vld [vmem:[#allocation5 + $0x1d28] sm:$0xff]
    %v1027 = vld [vmem:[#allocation5 + $0x1d30] sm:$0xff]
    %v1028 = vld [vmem:[#allocation5 + $0x1d38] sm:$0xff]
    %v1029 = vld [vmem:[#allocation5 + $0x1d40] sm:$0xff]
    %v1030 = vld [vmem:[#allocation5 + $0x1d48] sm:$0xff]
    %v1031 = vld [vmem:[#allocation5 + $0x1d50] sm:$0xff]
    %v1032 = vld [vmem:[#allocation5 + $0x1d58] sm:$0xff]
    %v1033 = vld [vmem:[#allocation5 + $0x1d60] sm:$0xff]
    %v1034 = vld [vmem:[#allocation5 + $0x1d68] sm:$0xff]
    %v1035 = vld [vmem:[#allocation5 + $0x1d70] sm:$0xff]
    %v1036 = vld [vmem:[#allocation5 + $0x1d78] sm:$0xff]
    %v1037 = vld [vmem:[#allocation5 + $0x1d80] sm:$0xff]
    %v1038 = vld [vmem:[#allocation5 + $0x1d88] sm:$0xff]
    %v1039 = vld [vmem:[#allocation5 + $0x1d90] sm:$0xff]
    %v1040 = vld [vmem:[#allocation5 + $0x1d98] sm:$0xff]
    %v1041 = vld [vmem:[#allocation5 + $0x1da0] sm:$0xff]
    %v1042 = vld [vmem:[#allocation5 + $0x1da8] sm:$0xff]
    %v1043 = vld [vmem:[#allocation5 + $0x1db0] sm:$0xff]
    %v1044 = vld [vmem:[#allocation5 + $0x1db8] sm:$0xff]
    %v1045 = vld [vmem:[#allocation5 + $0x1dc0] sm:$0xff]
    %v1046 = vld [vmem:[#allocation5 + $0x1dc8] sm:$0xff]
    %v1047 = vld [vmem:[#allocation5 + $0x1dd0] sm:$0xff]
    %v1048 = vld [vmem:[#allocation5 + $0x1dd8] sm:$0xff]
    %v1049 = vld [vmem:[#allocation5 + $0x1de0] sm:$0xff]
    %v1050 = vld [vmem:[#allocation5 + $0x1de8] sm:$0xff]
    %v1051 = vld [vmem:[#allocation5 + $0x1df0] sm:$0xff]
    %v1052 = vld [vmem:[#allocation5 + $0x1df8] sm:$0xff]
    %v1053 = vld [vmem:[#allocation5 + $0x1e00] sm:$0xff]
    %v1054 = vld [vmem:[#allocation5 + $0x1e08] sm:$0xff]
    %v1055 = vld [vmem:[#allocation5 + $0x1e10] sm:$0xff]
    %v1056 = vld [vmem:[#allocation5 + $0x1e18] sm:$0xff]
    %v1057 = vld [vmem:[#allocation5 + $0x1e20] sm:$0xff]
    %v1058 = vld [vmem:[#allocation5 + $0x1e28] sm:$0xff]
    %v1059 = vld [vmem:[#allocation5 + $0x1e30] sm:$0xff]
    %v1060 = vld [vmem:[#allocation5 + $0x1e38] sm:$0xff]
    %v1061 = vld [vmem:[#allocation5 + $0x1e40] sm:$0xff]
    %v1062 = vld [vmem:[#allocation5 + $0x1e48] sm:$0xff]
    %v1063 = vld [vmem:[#allocation5 + $0x1e50] sm:$0xff]
    %v1064 = vld [vmem:[#allocation5 + $0x1e58] sm:$0xff]
    %v1065 = vld [vmem:[#allocation5 + $0x1e60] sm:$0xff]
    %v1066 = vld [vmem:[#allocation5 + $0x1e68] sm:$0xff]
    %v1067 = vld [vmem:[#allocation5 + $0x1e70] sm:$0xff]
    %v1068 = vld [vmem:[#allocation5 + $0x1e78] sm:$0xff]
    %v1069 = vld [vmem:[#allocation5 + $0x1e80] sm:$0xff]
    %v1070 = vld [vmem:[#allocation5 + $0x1e88] sm:$0xff]
    %v1071 = vld [vmem:[#allocation5 + $0x1e90] sm:$0xff]
    %v1072 = vld [vmem:[#allocation5 + $0x1e98] sm:$0xff]
    %v1073 = vld [vmem:[#allocation5 + $0x1ea0] sm:$0xff]
    %v1074 = vld [vmem:[#allocation5 + $0x1ea8] sm:$0xff]
    %v1075 = vld [vmem:[#allocation5 + $0x1eb0] sm:$0xff]
    %v1076 = vld [vmem:[#allocation5 + $0x1eb8] sm:$0xff]
    %v1077 = vld [vmem:[#allocation5 + $0x1ec0] sm:$0xff]
    %v1078 = vld [vmem:[#allocation5 + $0x1ec8] sm:$0xff]
    %v1079 = vld [vmem:[#allocation5 + $0x1ed0] sm:$0xff]
    %v1080 = vld [vmem:[#allocation5 + $0x1ed8] sm:$0xff]
    %v1081 = vld [vmem:[#allocation5 + $0x1ee0] sm:$0xff]
    %v1082 = vld [vmem:[#allocation5 + $0x1ee8] sm:$0xff]
    %v1083 = vld [vmem:[#allocation5 + $0x1ef0] sm:$0xff]
    %v1084 = vld [vmem:[#allocation5 + $0x1ef8] sm:$0xff]
    %v1085 = vld [vmem:[#allocation5 + $0x1f00] sm:$0xff]
    %v1086 = vld [vmem:[#allocation5 + $0x1f08] sm:$0xff]
    %v1087 = vld [vmem:[#allocation5 + $0x1f10] sm:$0xff]
    %v1088 = vld [vmem:[#allocation5 + $0x1f18] sm:$0xff]
    %v1089 = vld [vmem:[#allocation5 + $0x1f20] sm:$0xff]
    %v1090 = vld [vmem:[#allocation5 + $0x1f28] sm:$0xff]
    %v1091 = vld [vmem:[#allocation5 + $0x1f30] sm:$0xff]
    %v1092 = vld [vmem:[#allocation5 + $0x1f38] sm:$0xff]
    %v1093 = vld [vmem:[#allocation5 + $0x1f40] sm:$0xff]
    %v1094 = vld [vmem:[#allocation5 + $0x1f48] sm:$0xff]
    %v1095 = vld [vmem:[#allocation5 + $0x1f50] sm:$0xff]
    %v1096 = vld [vmem:[#allocation5 + $0x1f58] sm:$0xff]
    %v1097 = vld [vmem:[#allocation5 + $0x1f60] sm:$0xff]
    %v1098 = vld [vmem:[#allocation5 + $0x1f68] sm:$0xff]
    %v1099 = vld [vmem:[#allocation5 + $0x1f70] sm:$0xff]
    %v1100 = vld [vmem:[#allocation5 + $0x1f78] sm:$0xff]
    %v1101 = vld [vmem:[#allocation5 + $0x1f80] sm:$0xff]
    %v1102 = vld [vmem:[#allocation5 + $0x1f88] sm:$0xff]
    %v1103 = vld [vmem:[#allocation5 + $0x1f90] sm:$0xff]
    %v1104 = vld [vmem:[#allocation5 + $0x1f98] sm:$0xff]
    %v1105 = vld [vmem:[#allocation5 + $0x1fa0] sm:$0xff]
    %v1106 = vld [vmem:[#allocation5 + $0x1fa8] sm:$0xff]
    %v1107 = vld [vmem:[#allocation5 + $0x1fb0] sm:$0xff]
    %v1108 = vld [vmem:[#allocation5 + $0x1fb8] sm:$0xff]
    %v1109 = vld [vmem:[#allocation5 + $0x1fc0] sm:$0xff]
    %v1110 = vld [vmem:[#allocation5 + $0x1fc8] sm:$0xff]
    %v1111 = vld [vmem:[#allocation5 + $0x1fd0] sm:$0xff]
    %v1112 = vld [vmem:[#allocation5 + $0x1fd8] sm:$0xff]
    %v1113 = vld [vmem:[#allocation5 + $0x1fe0] sm:$0xff]
    %v1114 = vld [vmem:[#allocation5 + $0x1fe8] sm:$0xff]
    %v1115 = vld [vmem:[#allocation5 + $0x1ff0] sm:$0xff]
    %v1116 = vld [vmem:[#allocation5 + $0x1ff8] sm:$0xff]
    %v1117 = vld [vmem:[#allocation5 + $0x2000] sm:$0xff]
    %v1118 = vld [vmem:[#allocation5 + $0x2008] sm:$0xff]
    %v1119 = vld [vmem:[#allocation5 + $0x2010] sm:$0xff]
    %v1120 = vld [vmem:[#allocation5 + $0x2018] sm:$0xff]
    %v1121 = vld [vmem:[#allocation5 + $0x2020] sm:$0xff]
    %v1122 = vld [vmem:[#allocation5 + $0x2028] sm:$0xff]
    %v1123 = vld [vmem:[#allocation5 + $0x2030] sm:$0xff]
    %v1124 = vld [vmem:[#allocation5 + $0x2038] sm:$0xff]
    %v1125 = vld [vmem:[#allocation5 + $0x2040] sm:$0xff]
    %v1126 = vld [vmem:[#allocation5 + $0x2048] sm:$0xff]
    %v1127 = vld [vmem:[#allocation5 + $0x2050] sm:$0xff]
    %v1128 = vld [vmem:[#allocation5 + $0x2058] sm:$0xff]
    %v1129 = vld [vmem:[#allocation5 + $0x2060] sm:$0xff]
    %v1130 = vld [vmem:[#allocation5 + $0x2068] sm:$0xff]
    %v1131 = vld [vmem:[#allocation5 + $0x2070] sm:$0xff]
    %v1132 = vld [vmem:[#allocation5 + $0x2078] sm:$0xff]
    %v1133 = vld [vmem:[#allocation5 + $0x2080] sm:$0xff]
    %v1134 = vld [vmem:[#allocation5 + $0x2088] sm:$0xff]
    %v1135 = vld [vmem:[#allocation5 + $0x2090] sm:$0xff]
    %v1136 = vld [vmem:[#allocation5 + $0x2098] sm:$0xff]
    %v1137 = vld [vmem:[#allocation5 + $0x20a0] sm:$0xff]
    %v1138 = vld [vmem:[#allocation5 + $0x20a8] sm:$0xff]
    %v1139 = vld [vmem:[#allocation5 + $0x20b0] sm:$0xff]
    %v1140 = vld [vmem:[#allocation5 + $0x20b8] sm:$0xff]
    %v1141 = vld [vmem:[#allocation5 + $0x20c0] sm:$0xff]
    %v1142 = vld [vmem:[#allocation5 + $0x20c8] sm:$0xff]
    %v1143 = vld [vmem:[#allocation5 + $0x20d0] sm:$0xff]
    %v1144 = vld [vmem:[#allocation5 + $0x20d8] sm:$0xff]
    %v1145 = vld [vmem:[#allocation5 + $0x20e0] sm:$0xff]
    %v1146 = vld [vmem:[#allocation5 + $0x20e8] sm:$0xff]
    %v1147 = vld [vmem:[#allocation5 + $0x20f0] sm:$0xff]
    %v1148 = vld [vmem:[#allocation5 + $0x20f8] sm:$0xff]
    %v1149 = vld [vmem:[#allocation5 + $0x2100] sm:$0xff]
    %v1150 = vld [vmem:[#allocation5 + $0x2108] sm:$0xff]
    %v1151 = vld [vmem:[#allocation5 + $0x2110] sm:$0xff]
    %v1152 = vld [vmem:[#allocation5 + $0x2118] sm:$0xff]
    %v1153 = vld [vmem:[#allocation5 + $0x2120] sm:$0xff]
    %v1154 = vld [vmem:[#allocation5 + $0x2128] sm:$0xff]
    %v1155 = vld [vmem:[#allocation5 + $0x2130] sm:$0xff]
    %v1156 = vld [vmem:[#allocation5 + $0x2138] sm:$0xff]
    %v1157 = vld [vmem:[#allocation5 + $0x2140] sm:$0xff]
    %v1158 = vld [vmem:[#allocation5 + $0x2148] sm:$0xff]
    %v1159 = vld [vmem:[#allocation5 + $0x2150] sm:$0xff]
    %v1160 = vld [vmem:[#allocation5 + $0x2158] sm:$0xff]
    %v1161 = vld [vmem:[#allocation5 + $0x2160] sm:$0xff]
    %v1162 = vld [vmem:[#allocation5 + $0x2168] sm:$0xff]
    %v1163 = vld [vmem:[#allocation5 + $0x2170] sm:$0xff]
    %v1164 = vld [vmem:[#allocation5 + $0x2178] sm:$0xff]
    %v1165 = vld [vmem:[#allocation5 + $0x2180] sm:$0xff]
    %v1166 = vld [vmem:[#allocation5 + $0x2188] sm:$0xff]
    %v1167 = vld [vmem:[#allocation5 + $0x2190] sm:$0xff]
    %v1168 = vld [vmem:[#allocation5 + $0x2198] sm:$0xff]
    %v1169 = vld [vmem:[#allocation5 + $0x21a0] sm:$0xff]
    %v1170 = vld [vmem:[#allocation5 + $0x21a8] sm:$0xff]
    %v1171 = vld [vmem:[#allocation5 + $0x21b0] sm:$0xff]
    %v1172 = vld [vmem:[#allocation5 + $0x21b8] sm:$0xff]
    %v1173 = vld [vmem:[#allocation5 + $0x21c0] sm:$0xff]
    %v1174 = vld [vmem:[#allocation5 + $0x21c8] sm:$0xff]
    %v1175 = vld [vmem:[#allocation5 + $0x21d0] sm:$0xff]
    %v1176 = vld [vmem:[#allocation5 + $0x21d8] sm:$0xff]
    %v1177 = vld [vmem:[#allocation5 + $0x21e0] sm:$0xff]
    %v1178 = vld [vmem:[#allocation5 + $0x21e8] sm:$0xff]
    %v1179 = vld [vmem:[#allocation5 + $0x21f0] sm:$0xff]
    %v1180 = vld [vmem:[#allocation5 + $0x21f8] sm:$0xff]
    %v1181 = vld [vmem:[#allocation5 + $0x2200] sm:$0xff]
    %v1182 = vld [vmem:[#allocation5 + $0x2208] sm:$0xff]
    %v1183 = vld [vmem:[#allocation5 + $0x2210] sm:$0xff]
    %v1184 = vld [vmem:[#allocation5 + $0x2218] sm:$0xff]
    %v1185 = vld [vmem:[#allocation5 + $0x2220] sm:$0xff]
    %v1186 = vld [vmem:[#allocation5 + $0x2228] sm:$0xff]
    %v1187 = vld [vmem:[#allocation5 + $0x2230] sm:$0xff]
    %v1188 = vld [vmem:[#allocation5 + $0x2238] sm:$0xff]
    %v1189 = vld [vmem:[#allocation5 + $0x2240] sm:$0xff]
    %v1190 = vld [vmem:[#allocation5 + $0x2248] sm:$0xff]
    %v1191 = vld [vmem:[#allocation5 + $0x2250] sm:$0xff]
    %v1192 = vld [vmem:[#allocation5 + $0x2258] sm:$0xff]
    %v1193 = vld [vmem:[#allocation5 + $0x2260] sm:$0xff]
    %v1194 = vld [vmem:[#allocation5 + $0x2268] sm:$0xff]
    %v1195 = vld [vmem:[#allocation5 + $0x2270] sm:$0xff]
    %v1196 = vld [vmem:[#allocation5 + $0x2278] sm:$0xff]
    %v1197 = vld [vmem:[#allocation7] sm:$0x3f]
    %v1199 = vlaneseq
    %v1200 = vshrl.u32 %v1199, 7
    %v1201 = vsub.s32 0, %v1200
    %v1202 = vrot.slane %v1197, %v1201
    %v1203 = vlaneseq
    %v1204 = vshrl.u32 %v1203, 7
    %v1205 = vsub.s32 1, %v1204
    %v1206 = vrot.slane %v1197, %v1205
    %v1207 = vlaneseq
    %v1208 = vshrl.u32 %v1207, 7
    %v1209 = vsub.s32 2, %v1208
    %v1210 = vrot.slane %v1197, %v1209
    %v1211 = vlaneseq
    %v1212 = vshrl.u32 %v1211, 7
    %v1213 = vsub.s32 3, %v1212
    %v1214 = vrot.slane %v1197, %v1213
    %v1215 = vlaneseq
    %v1216 = vshrl.u32 %v1215, 7
    %v1217 = vsub.s32 4, %v1216
    %v1218 = vrot.slane %v1197, %v1217
    %v1219 = vlaneseq
    %v1220 = vshrl.u32 %v1219, 7
    %v1221 = vsub.s32 5, %v1220
    %v1222 = vrot.slane %v1197, %v1221
    %v1232 = vcombine.high %v90, %v90
    %v1234 = vunpack.c.l.s4 1983009808
    %v1235 = vunpack.c.0.s8 %v1234
    %v1236 = vlaneseq
    %v1237 = vshrl.u32 %v1236, 7
    %v1238 = vsub.s32 %v1235, %v1237
    %v1239 = vrot.slane %v90, %v1238
    %v1241 = vunpack.c.l.s4 1983009808
    %v1242 = vunpack.c.0.s8 %v1241
    %v1243 = vlaneseq
    %v1244 = vshrl.u32 %v1243, 7
    %v1245 = vsub.s32 %v1242, %v1244
    %v1246 = vrot.slane %v1232, %v1245
    %v1247 = vcombine.high %v1239, %v1239
    %v1248 = vcombine.high %v1246, %v1246
    %v1249 = vcombine.high %v91, %v91
    %v1251 = vunpack.c.l.s4 1983009808
    %v1252 = vunpack.c.0.s8 %v1251
    %v1253 = vlaneseq
    %v1254 = vshrl.u32 %v1253, 7
    %v1255 = vsub.s32 %v1252, %v1254
    %v1256 = vrot.slane %v91, %v1255
    %v1258 = vunpack.c.l.s4 1983009808
    %v1259 = vunpack.c.0.s8 %v1258
    %v1260 = vlaneseq
    %v1261 = vshrl.u32 %v1260, 7
    %v1262 = vsub.s32 %v1259, %v1261
    %v1263 = vrot.slane %v1249, %v1262
    %v1264 = vcombine.high %v1256, %v1256
    %v1265 = vcombine.high %v1263, %v1263
    %v1266 = vcombine.high %v92, %v92
    %v1268 = vunpack.c.l.s4 1983009808
    %v1269 = vunpack.c.0.s8 %v1268
    %v1270 = vlaneseq
    %v1271 = vshrl.u32 %v1270, 7
    %v1272 = vsub.s32 %v1269, %v1271
    %v1273 = vrot.slane %v92, %v1272
    %v1275 = vunpack.c.l.s4 1983009808
    %v1276 = vunpack.c.0.s8 %v1275
    %v1277 = vlaneseq
    %v1278 = vshrl.u32 %v1277, 7
    %v1279 = vsub.s32 %v1276, %v1278
    %v1280 = vrot.slane %v1266, %v1279
    %v1281 = vcombine.high %v1273, %v1273
    %v1282 = vcombine.high %v1280, %v1280
    %vm1294 = vcmask 523264
    %v1295 = vsel %vm1294, %v1282, 0
    %1297 = vmatprep.subr.mxu0 %v94
    %1298 = vmatpush1.msra.mxu0 %v93
    %1299 = vmatprep.subr.mxu0 %v100
    %1300 = vmatpush1.msra.mxu0 %v99
    %1301 = vmatprep.subr.mxu0 %v106
    %1302 = vmatpush1.msra.mxu0 %v105
    %1303 = vmatprep.subr.mxu0 %v112
    %1304 = vmatpush1.msra.mxu0 %v111
    %1305 = vmatprep.subr.mxu0 %v118
    %1306 = vmatpush1.msra.mxu0 %v117
    %1307 = vmatprep.subr.mxu0 %v124
    %1308 = vmatpush1.msra.mxu0 %v123
    %1309 = vmatprep.subr.mxu0 %v130
    %1310 = vmatpush1.msra.mxu0 %v129
    %1311 = vmatprep.subr.mxu0 %v136
    %1312 = vmatpush1.msra.mxu0 %v135
    %1313 = vmatprep.subr.mxu0 %v142
    %1314 = vmatpush1.msra.mxu0 %v141
    %1315 = vmatprep.subr.mxu0 %v148
    %1316 = vmatpush1.msra.mxu0 %v147
    %1317 = vmatprep.subr.mxu0 %v154
    %1318 = vmatpush1.msra.mxu0 %v153
    %1319 = vmatprep.subr.mxu0 %v160
    %1320 = vmatpush1.msra.mxu0 %v159
    %1321 = vmatprep.subr.mxu0 %v166
    %1322 = vmatpush1.msra.mxu0 %v165
    %1323 = vmatprep.subr.mxu0 %v172
    %1324 = vmatpush1.msra.mxu0 %v171
    %1325 = vmatprep.subr.mxu0 %v178
    %1326 = vmatpush1.msra.mxu0 %v177
    %1327 = vmatprep.subr.mxu0 %v184
    %1328 = vmatpush1.msra.mxu0 %v183
    %1329 = vmatprep.subr.mxu0 %v190
    %1330 = vmatpush1.msra.mxu0 %v189
    %1331 = vmatprep.subr.mxu0 %v196
    %1332 = vmatpush1.msra.mxu0 %v195
    %1333 = vmatprep.subr.mxu0 %v202
    %1334 = vmatpush1.msra.mxu0 %v201
    %1335 = vmatprep.subr.mxu0 %v208
    %1336 = vmatpush1.msra.mxu0 %v207
    %1337 = vmatprep.subr.mxu0 %v214
    %1338 = vmatpush1.msra.mxu0 %v213
    %1339 = vmatprep.subr.mxu0 %v220
    %1340 = vmatpush1.msra.mxu0 %v219
    %1341 = vmatprep.subr.mxu0 %v226
    %1342 = vmatpush1.msra.mxu0 %v225
    %1343 = vmatprep.subr.mxu0 %v232
    %1344 = vmatpush1.msra.mxu0 %v231
    %1345 = vmatprep.subr.mxu0 %v238
    %1346 = vmatpush1.msra.mxu0 %v237
    %1347 = vmatprep.subr.mxu0 %v244
    %1348 = vmatpush1.msra.mxu0 %v243
    %1349 = vmatprep.subr.mxu0 %v250
    %1350 = vmatpush1.msra.mxu0 %v249
    %1351 = vmatprep.subr.mxu0 %v256
    %1352 = vmatpush1.msra.mxu0 %v255
    %1353 = vmatprep.subr.mxu0 %v262
    %1354 = vmatpush1.msra.mxu0 %v261
    %1355 = vmatprep.subr.mxu0 %v268
    %1356 = vmatpush1.msra.mxu0 %v267
    %1357 = vmatprep.subr.mxu0 %v274
    %1358 = vmatpush1.msra.mxu0 %v273
    %1359 = vmatprep.subr.mxu0 %v280
    %1360 = vmatpush1.msra.mxu0 %v279
    %1361 = vmatprep.mubr.f32.mxu0 %v1247
    %1362 = vmatmul.mubr.f32.gmra.mrb[0].mxu0 %v1239
    %v1363 = vpop.f32.mrb[0].mxu0
    %v1364 = vadd.f32 %v1202, %v1363
    %v1365 = vpop.f32.mrb[0].mxu0
    %v1366 = vadd.f32 %v1206, %v1365
    %1367 = vdwg.mxu0
    %1368 = vmatprep.subr.mxu0 %v286
    %1369 = vmatpush1.msra.mxu0 %v285
    %1370 = vmatprep.subr.mxu0 %v292
    %1371 = vmatpush1.msra.mxu0 %v291
    %1372 = vmatprep.subr.mxu0 %v298
    %1373 = vmatpush1.msra.mxu0 %v297
    %1374 = vmatprep.subr.mxu0 %v304
    %1375 = vmatpush1.msra.mxu0 %v303
    %1376 = vmatprep.subr.mxu0 %v310
    %1377 = vmatpush1.msra.mxu0 %v309
    %1378 = vmatprep.subr.mxu0 %v316
    %1379 = vmatpush1.msra.mxu0 %v315
    %1380 = vmatprep.subr.mxu0 %v322
    %1381 = vmatpush1.msra.mxu0 %v321
    %1382 = vmatprep.subr.mxu0 %v328
    %1383 = vmatpush1.msra.mxu0 %v327
    %1384 = vmatprep.subr.mxu0 %v334
    %1385 = vmatpush1.msra.mxu0 %v333
    %1386 = vmatprep.subr.mxu0 %v340
    %1387 = vmatpush1.msra.mxu0 %v339
    %1388 = vmatprep.subr.mxu0 %v346
    %1389 = vmatpush1.msra.mxu0 %v345
    %1390 = vmatprep.subr.mxu0 %v352
    %1391 = vmatpush1.msra.mxu0 %v351
    %1392 = vmatprep.subr.mxu0 %v358
    %1393 = vmatpush1.msra.mxu0 %v357
    %1394 = vmatprep.subr.mxu0 %v364
    %1395 = vmatpush1.msra.mxu0 %v363
    %1396 = vmatprep.subr.mxu0 %v370
    %1397 = vmatpush1.msra.mxu0 %v369
    %1398 = vmatprep.subr.mxu0 %v376
    %1399 = vmatpush1.msra.mxu0 %v375
    %1400 = vmatprep.subr.mxu0 %v382
    %1401 = vmatpush1.msra.mxu0 %v381
    %1402 = vmatprep.subr.mxu0 %v388
    %1403 = vmatpush1.msra.mxu0 %v387
    %1404 = vmatprep.subr.mxu0 %v394
    %1405 = vmatpush1.msra.mxu0 %v393
    %1406 = vmatprep.subr.mxu0 %v400
    %1407 = vmatpush1.msra.mxu0 %v399
    %1408 = vmatprep.subr.mxu0 %v406
    %1409 = vmatpush1.msra.mxu0 %v405
    %1410 = vmatprep.subr.mxu0 %v412
    %1411 = vmatpush1.msra.mxu0 %v411
    %1412 = vmatprep.subr.mxu0 %v418
    %1413 = vmatpush1.msra.mxu0 %v417
    %1414 = vmatprep.subr.mxu0 %v424
    %1415 = vmatpush1.msra.mxu0 %v423
    %1416 = vmatprep.subr.mxu0 %v430
    %1417 = vmatpush1.msra.mxu0 %v429
    %1418 = vmatprep.subr.mxu0 %v436
    %1419 = vmatpush1.msra.mxu0 %v435
    %1420 = vmatprep.subr.mxu0 %v442
    %1421 = vmatpush1.msra.mxu0 %v441
    %1422 = vmatprep.subr.mxu0 %v448
    %1423 = vmatpush1.msra.mxu0 %v447
    %1424 = vmatprep.subr.mxu0 %v454
    %1425 = vmatpush1.msra.mxu0 %v453
    %1426 = vmatprep.subr.mxu0 %v460
    %1427 = vmatpush1.msra.mxu0 %v459
    %1428 = vmatprep.subr.mxu0 %v466
    %1429 = vmatpush1.msra.mxu0 %v465
    %1430 = vmatprep.subr.mxu0 %v472
    %1431 = vmatpush1.msra.mxu0 %v471
    %1432 = vmatprep.mubr.f32.mxu0 %v1248
    %1433 = vmatmul.mubr.f32.gmra.mrb[0].mxu0 %v1246
    %v1434 = vpop.f32.mrb[0].mxu0
    %v1435 = vadd.f32 %v1364, %v1434
    %v1436 = vpop.f32.mrb[0].mxu0
    %v1437 = vadd.f32 %v1366, %v1436
    %1438 = vdwg.mxu0
    %1439 = vmatprep.subr.mxu0 %v478
    %1440 = vmatpush1.msra.mxu0 %v477
    %1441 = vmatprep.subr.mxu0 %v484
    %1442 = vmatpush1.msra.mxu0 %v483
    %1443 = vmatprep.subr.mxu0 %v490
    %1444 = vmatpush1.msra.mxu0 %v489
    %1445 = vmatprep.subr.mxu0 %v496
    %1446 = vmatpush1.msra.mxu0 %v495
    %1447 = vmatprep.subr.mxu0 %v502
    %1448 = vmatpush1.msra.mxu0 %v501
    %1449 = vmatprep.subr.mxu0 %v508
    %1450 = vmatpush1.msra.mxu0 %v507
    %1451 = vmatprep.subr.mxu0 %v514
    %1452 = vmatpush1.msra.mxu0 %v513
    %1453 = vmatprep.subr.mxu0 %v520
    %1454 = vmatpush1.msra.mxu0 %v519
    %1455 = vmatprep.subr.mxu0 %v526
    %1456 = vmatpush1.msra.mxu0 %v525
    %1457 = vmatprep.subr.mxu0 %v532
    %1458 = vmatpush1.msra.mxu0 %v531
    %1459 = vmatprep.subr.mxu0 %v538
    %1460 = vmatpush1.msra.mxu0 %v537
    %1461 = vmatprep.subr.mxu0 %v544
    %1462 = vmatpush1.msra.mxu0 %v543
    %1463 = vmatprep.subr.mxu0 %v550
    %1464 = vmatpush1.msra.mxu0 %v549
    %1465 = vmatprep.subr.mxu0 %v556
    %1466 = vmatpush1.msra.mxu0 %v555
    %1467 = vmatprep.subr.mxu0 %v562
    %1468 = vmatpush1.msra.mxu0 %v561
    %1469 = vmatprep.subr.mxu0 %v568
    %1470 = vmatpush1.msra.mxu0 %v567
    %1471 = vmatprep.subr.mxu0 %v574
    %1472 = vmatpush1.msra.mxu0 %v573
    %1473 = vmatprep.subr.mxu0 %v580
    %1474 = vmatpush1.msra.mxu0 %v579
    %1475 = vmatprep.subr.mxu0 %v586
    %1476 = vmatpush1.msra.mxu0 %v585
    %1477 = vmatprep.subr.mxu0 %v592
    %1478 = vmatpush1.msra.mxu0 %v591
    %1479 = vmatprep.subr.mxu0 %v598
    %1480 = vmatpush1.msra.mxu0 %v597
    %1481 = vmatprep.subr.mxu0 %v604
    %1482 = vmatpush1.msra.mxu0 %v603
    %1483 = vmatprep.subr.mxu0 %v610
    %1484 = vmatpush1.msra.mxu0 %v609
    %1485 = vmatprep.subr.mxu0 %v616
    %1486 = vmatpush1.msra.mxu0 %v615
    %1487 = vmatprep.subr.mxu0 %v622
    %1488 = vmatpush1.msra.mxu0 %v621
    %1489 = vmatprep.subr.mxu0 %v628
    %1490 = vmatpush1.msra.mxu0 %v627
    %1491 = vmatprep.subr.mxu0 %v634
    %1492 = vmatpush1.msra.mxu0 %v633
    %1493 = vmatprep.subr.mxu0 %v640
    %1494 = vmatpush1.msra.mxu0 %v639
    %1495 = vmatprep.subr.mxu0 %v646
    %1496 = vmatpush1.msra.mxu0 %v645
    %1497 = vmatprep.subr.mxu0 %v652
    %1498 = vmatpush1.msra.mxu0 %v651
    %1499 = vmatprep.subr.mxu0 %v658
    %1500 = vmatpush1.msra.mxu0 %v657
    %1501 = vmatprep.subr.mxu0 %v664
    %1502 = vmatpush1.msra.mxu0 %v663
    %1503 = vmatprep.mubr.f32.mxu0 %v1264
    %1504 = vmatmul.mubr.f32.gmra.mrb[0].mxu0 %v1256
    %v1505 = vpop.f32.mrb[0].mxu0
    %v1506 = vadd.f32 %v1435, %v1505
    %v1507 = vpop.f32.mrb[0].mxu0
    %v1508 = vadd.f32 %v1437, %v1507
    %1509 = vdwg.mxu0
    %1510 = vmatprep.subr.mxu0 %v670
    %1511 = vmatpush1.msra.mxu0 %v669
    %1512 = vmatprep.subr.mxu0 %v676
    %1513 = vmatpush1.msra.mxu0 %v675
    %1514 = vmatprep.subr.mxu0 %v682
    %1515 = vmatpush1.msra.mxu0 %v681
    %1516 = vmatprep.subr.mxu0 %v688
    %1517 = vmatpush1.msra.mxu0 %v687
    %1518 = vmatprep.subr.mxu0 %v694
    %1519 = vmatpush1.msra.mxu0 %v693
    %1520 = vmatprep.subr.mxu0 %v700
    %1521 = vmatpush1.msra.mxu0 %v699
    %1522 = vmatprep.subr.mxu0 %v706
    %1523 = vmatpush1.msra.mxu0 %v705
    %1524 = vmatprep.subr.mxu0 %v712
    %1525 = vmatpush1.msra.mxu0 %v711
    %1526 = vmatprep.subr.mxu0 %v718
    %1527 = vmatpush1.msra.mxu0 %v717
    %1528 = vmatprep.subr.mxu0 %v724
    %1529 = vmatpush1.msra.mxu0 %v723
    %1530 = vmatprep.subr.mxu0 %v730
    %1531 = vmatpush1.msra.mxu0 %v729
    %1532 = vmatprep.subr.mxu0 %v736
    %1533 = vmatpush1.msra.mxu0 %v735
    %1534 = vmatprep.subr.mxu0 %v742
    %1535 = vmatpush1.msra.mxu0 %v741
    %1536 = vmatprep.subr.mxu0 %v748
    %1537 = vmatpush1.msra.mxu0 %v747
    %1538 = vmatprep.subr.mxu0 %v754
    %1539 = vmatpush1.msra.mxu0 %v753
    %1540 = vmatprep.subr.mxu0 %v760
    %1541 = vmatpush1.msra.mxu0 %v759
    %1542 = vmatprep.subr.mxu0 %v766
    %1543 = vmatpush1.msra.mxu0 %v765
    %1544 = vmatprep.subr.mxu0 %v772
    %1545 = vmatpush1.msra.mxu0 %v771
    %1546 = vmatprep.subr.mxu0 %v778
    %1547 = vmatpush1.msra.mxu0 %v777
    %1548 = vmatprep.subr.mxu0 %v784
    %1549 = vmatpush1.msra.mxu0 %v783
    %1550 = vmatprep.subr.mxu0 %v790
    %1551 = vmatpush1.msra.mxu0 %v789
    %1552 = vmatprep.subr.mxu0 %v796
    %1553 = vmatpush1.msra.mxu0 %v795
    %1554 = vmatprep.subr.mxu0 %v802
    %1555 = vmatpush1.msra.mxu0 %v801
    %1556 = vmatprep.subr.mxu0 %v808
    %1557 = vmatpush1.msra.mxu0 %v807
    %1558 = vmatprep.subr.mxu0 %v814
    %1559 = vmatpush1.msra.mxu0 %v813
    %1560 = vmatprep.subr.mxu0 %v820
    %1561 = vmatpush1.msra.mxu0 %v819
    %1562 = vmatprep.subr.mxu0 %v826
    %1563 = vmatpush1.msra.mxu0 %v825
    %1564 = vmatprep.subr.mxu0 %v832
    %1565 = vmatpush1.msra.mxu0 %v831
    %1566 = vmatprep.subr.mxu0 %v838
    %1567 = vmatpush1.msra.mxu0 %v837
    %1568 = vmatprep.subr.mxu0 %v844
    %1569 = vmatpush1.msra.mxu0 %v843
    %1570 = vmatprep.subr.mxu0 %v850
    %1571 = vmatpush1.msra.mxu0 %v849
    %1572 = vmatprep.subr.mxu0 %v856
    %1573 = vmatpush1.msra.mxu0 %v855
    %1574 = vmatprep.mubr.f32.mxu0 %v1265
    %1575 = vmatmul.mubr.f32.gmra.mrb[0].mxu0 %v1263
    %v1576 = vpop.f32.mrb[0].mxu0
    %v1577 = vadd.f32 %v1506, %v1576
    %v1578 = vpop.f32.mrb[0].mxu0
    %v1579 = vadd.f32 %v1508, %v1578
    %1580 = vdwg.mxu0
    %1581 = vmatprep.subr.mxu0 %v862
    %1582 = vmatpush1.msra.mxu0 %v861
    %1583 = vmatprep.subr.mxu0 %v868
    %1584 = vmatpush1.msra.mxu0 %v867
    %1585 = vmatprep.subr.mxu0 %v874
    %1586 = vmatpush1.msra.mxu0 %v873
    %1587 = vmatprep.subr.mxu0 %v880
    %1588 = vmatpush1.msra.mxu0 %v879
    %1589 = vmatprep.subr.mxu0 %v886
    %1590 = vmatpush1.msra.mxu0 %v885
    %1591 = vmatprep.subr.mxu0 %v892
    %1592 = vmatpush1.msra.mxu0 %v891
    %1593 = vmatprep.subr.mxu0 %v898
    %1594 = vmatpush1.msra.mxu0 %v897
    %1595 = vmatprep.subr.mxu0 %v904
    %1596 = vmatpush1.msra.mxu0 %v903
    %1597 = vmatprep.subr.mxu0 %v910
    %1598 = vmatpush1.msra.mxu0 %v909
    %1599 = vmatprep.subr.mxu0 %v916
    %1600 = vmatpush1.msra.mxu0 %v915
    %1601 = vmatprep.subr.mxu0 %v922
    %1602 = vmatpush1.msra.mxu0 %v921
    %1603 = vmatprep.subr.mxu0 %v928
    %1604 = vmatpush1.msra.mxu0 %v927
    %1605 = vmatprep.subr.mxu0 %v934
    %1606 = vmatpush1.msra.mxu0 %v933
    %1607 = vmatprep.subr.mxu0 %v940
    %1608 = vmatpush1.msra.mxu0 %v939
    %1609 = vmatprep.subr.mxu0 %v946
    %1610 = vmatpush1.msra.mxu0 %v945
    %1611 = vmatprep.subr.mxu0 %v952
    %1612 = vmatpush1.msra.mxu0 %v951
    %1613 = vmatprep.subr.mxu0 %v958
    %1614 = vmatpush1.msra.mxu0 %v957
    %1615 = vmatprep.subr.mxu0 %v964
    %1616 = vmatpush1.msra.mxu0 %v963
    %1617 = vmatprep.subr.mxu0 %v970
    %1618 = vmatpush1.msra.mxu0 %v969
    %1619 = vmatprep.subr.mxu0 %v976
    %1620 = vmatpush1.msra.mxu0 %v975
    %1621 = vmatprep.subr.mxu0 %v982
    %1622 = vmatpush1.msra.mxu0 %v981
    %1623 = vmatprep.subr.mxu0 %v988
    %1624 = vmatpush1.msra.mxu0 %v987
    %1625 = vmatprep.subr.mxu0 %v994
    %1626 = vmatpush1.msra.mxu0 %v993
    %1627 = vmatprep.subr.mxu0 %v1000
    %1628 = vmatpush1.msra.mxu0 %v999
    %1629 = vmatprep.subr.mxu0 %v1006
    %1630 = vmatpush1.msra.mxu0 %v1005
    %1631 = vmatprep.subr.mxu0 %v1012
    %1632 = vmatpush1.msra.mxu0 %v1011
    %1633 = vmatprep.subr.mxu0 %v1018
    %1634 = vmatpush1.msra.mxu0 %v1017
    %1635 = vmatprep.subr.mxu0 %v1024
    %1636 = vmatpush1.msra.mxu0 %v1023
    %1637 = vmatprep.subr.mxu0 %v1030
    %1638 = vmatpush1.msra.mxu0 %v1029
    %1639 = vmatprep.subr.mxu0 %v1036
    %1640 = vmatpush1.msra.mxu0 %v1035
    %1641 = vmatprep.subr.mxu0 %v1042
    %1642 = vmatpush1.msra.mxu0 %v1041
    %1643 = vmatprep.subr.mxu0 %v1048
    %1644 = vmatpush1.msra.mxu0 %v1047
    %1645 = vmatprep.mubr.f32.mxu0 %v1281
    %1646 = vmatmul.mubr.f32.gmra.mrb[0].mxu0 %v1273
    %v1647 = vpop.f32.mrb[0].mxu0
    %v1648 = vadd.f32 %v1577, %v1647
    %v1649 = vpop.f32.mrb[0].mxu0
    %v1650 = vadd.f32 %v1579, %v1649
    %1651 = vdwg.mxu0
    %1652 = vmatprep.subr.mxu0 %v1054
    %1653 = vmatpush1.msra.mxu0 %v1053
    %1654 = vmatprep.subr.mxu0 %v1060
    %1655 = vmatpush1.msra.mxu0 %v1059
    %1656 = vmatprep.subr.mxu0 %v1066
    %1657 = vmatpush1.msra.mxu0 %v1065
    %1658 = vmatprep.subr.mxu0 %v1072
    %1659 = vmatpush1.msra.mxu0 %v1071
    %1660 = vmatprep.subr.mxu0 %v1078
    %1661 = vmatpush1.msra.mxu0 %v1077
    %1662 = vmatprep.subr.mxu0 %v1084
    %1663 = vmatpush1.msra.mxu0 %v1083
    %1664 = vmatprep.subr.mxu0 %v1090
    %1665 = vmatpush1.msra.mxu0 %v1089
    %1666 = vmatprep.subr.mxu0 %v1096
    %1667 = vmatpush1.msra.mxu0 %v1095
    %1668 = vmatprep.subr.mxu0 %v1102
    %1669 = vmatpush1.msra.mxu0 %v1101
    %1670 = vmatprep.subr.mxu0 %v1108
    %1671 = vmatpush1.msra.mxu0 %v1107
    %1672 = vmatprep.subr.mxu0 %v1114
    %1673 = vmatpush1.msra.mxu0 %v1113
    %1674 = vmatprep.subr.mxu0 %v1120
    %1675 = vmatpush1.msra.mxu0 %v1119
    %1676 = vmatprep.subr.mxu0 %v1126
    %1677 = vmatpush1.msra.mxu0 %v1125
    %1678 = vmatprep.subr.mxu0 %v1132
    %1679 = vmatpush1.msra.mxu0 %v1131
    %1680 = vmatprep.subr.mxu0 %v1138
    %1681 = vmatpush1.msra.mxu0 %v1137
    %1682 = vmatprep.subr.mxu0 %v1144
    %1683 = vmatpush1.msra.mxu0 %v1143
    %1684 = vmatprep.subr.mxu0 %v1150
    %1685 = vmatpush1.msra.mxu0 %v1149
    %1686 = vmatprep.subr.mxu0 %v1156
    %1687 = vmatpush1.msra.mxu0 %v1155
    %1688 = vmatprep.subr.mxu0 %v1162
    %1689 = vmatpush1.msra.mxu0 %v1161
    %1690 = vmatprep.subr.mxu0 %v1168
    %1691 = vmatpush1.msra.mxu0 %v1167
    %1692 = vmatprep.subr.mxu0 %v1174
    %1693 = vmatpush1.msra.mxu0 %v1173
    %1694 = vmatprep.subr.mxu0 %v1180
    %1695 = vmatpush1.msra.mxu0 %v1179
    %1696 = vmatprep.subr.mxu0 %v1186
    %1697 = vmatpush1.msra.mxu0 %v1185
    %1698 = vmatprep.subr.mxu0 %v1192
    %1699 = vmatpush1.msra.mxu0 %v1191
    %1700 = vmatprep.subr.mxu0 0.0
    %1701 = vmatpush1.msra.mxu0 0.0
    %1702 = vmatprep.subr.mxu0 0.0
    %1703 = vmatpush1.msra.mxu0 0.0
    %1704 = vmatprep.subr.mxu0 0.0
    %1705 = vmatpush1.msra.mxu0 0.0
    %1706 = vmatprep.subr.mxu0 0.0
    %1707 = vmatpush1.msra.mxu0 0.0
    %1708 = vmatprep.subr.mxu0 0.0
    %1709 = vmatpush1.msra.mxu0 0.0
    %1710 = vmatprep.subr.mxu0 0.0
    %1711 = vmatpush1.msra.mxu0 0.0
    %1712 = vmatprep.subr.mxu0 0.0
    %1713 = vmatpush1.msra.mxu0 0.0
    %1714 = vmatprep.subr.mxu0 0.0
    %1715 = vmatpush1.msra.mxu0 0.0
    %1716 = vmatprep.mubr.f32.mxu0 %v1295
    %1717 = vmatmul.mubr.f32.gmra.mrb[0].mxu0 %v1280
    %v1718 = vpop.f32.mrb[0].mxu0
    %v1719 = vadd.f32 %v1648, %v1718
    %v1720 = vpop.f32.mrb[0].mxu0
    %v1721 = vadd.f32 %v1650, %v1720
    %1722 = vdwg.mxu0
    %1723 = vmatprep.subr.mxu0 %v96
    %1724 = vmatpush1.msra.mxu0 %v95
    %1725 = vmatprep.subr.mxu0 %v102
    %1726 = vmatpush1.msra.mxu0 %v101
    %1727 = vmatprep.subr.mxu0 %v108
    %1728 = vmatpush1.msra.mxu0 %v107
    %1729 = vmatprep.subr.mxu0 %v114
    %1730 = vmatpush1.msra.mxu0 %v113
    %1731 = vmatprep.subr.mxu0 %v120
    %1732 = vmatpush1.msra.mxu0 %v119
    %1733 = vmatprep.subr.mxu0 %v126
    %1734 = vmatpush1.msra.mxu0 %v125
    %1735 = vmatprep.subr.mxu0 %v132
    %1736 = vmatpush1.msra.mxu0 %v131
    %1737 = vmatprep.subr.mxu0 %v138
    %1738 = vmatpush1.msra.mxu0 %v137
    %1739 = vmatprep.subr.mxu0 %v144
    %1740 = vmatpush1.msra.mxu0 %v143
    %1741 = vmatprep.subr.mxu0 %v150
    %1742 = vmatpush1.msra.mxu0 %v149
    %1743 = vmatprep.subr.mxu0 %v156
    %1744 = vmatpush1.msra.mxu0 %v155
    %1745 = vmatprep.subr.mxu0 %v162
    %1746 = vmatpush1.msra.mxu0 %v161
    %1747 = vmatprep.subr.mxu0 %v168
    %1748 = vmatpush1.msra.mxu0 %v167
    %1749 = vmatprep.subr.mxu0 %v174
    %1750 = vmatpush1.msra.mxu0 %v173
    %1751 = vmatprep.subr.mxu0 %v180
    %1752 = vmatpush1.msra.mxu0 %v179
    %1753 = vmatprep.subr.mxu0 %v186
    %1754 = vmatpush1.msra.mxu0 %v185
    %1755 = vmatprep.subr.mxu0 %v192
    %1756 = vmatpush1.msra.mxu0 %v191
    %1757 = vmatprep.subr.mxu0 %v198
    %1758 = vmatpush1.msra.mxu0 %v197
    %1759 = vmatprep.subr.mxu0 %v204
    %1760 = vmatpush1.msra.mxu0 %v203
    %1761 = vmatprep.subr.mxu0 %v210
    %1762 = vmatpush1.msra.mxu0 %v209
    %1763 = vmatprep.subr.mxu0 %v216
    %1764 = vmatpush1.msra.mxu0 %v215
    %1765 = vmatprep.subr.mxu0 %v222
    %1766 = vmatpush1.msra.mxu0 %v221
    %1767 = vmatprep.subr.mxu0 %v228
    %1768 = vmatpush1.msra.mxu0 %v227
    %1769 = vmatprep.subr.mxu0 %v234
    %1770 = vmatpush1.msra.mxu0 %v233
    %1771 = vmatprep.subr.mxu0 %v240
    %1772 = vmatpush1.msra.mxu0 %v239
    %1773 = vmatprep.subr.mxu0 %v246
    %1774 = vmatpush1.msra.mxu0 %v245
    %1775 = vmatprep.subr.mxu0 %v252
    %1776 = vmatpush1.msra.mxu0 %v251
    %1777 = vmatprep.subr.mxu0 %v258
    %1778 = vmatpush1.msra.mxu0 %v257
    %1779 = vmatprep.subr.mxu0 %v264
    %1780 = vmatpush1.msra.mxu0 %v263
    %1781 = vmatprep.subr.mxu0 %v270
    %1782 = vmatpush1.msra.mxu0 %v269
    %1783 = vmatprep.subr.mxu0 %v276
    %1784 = vmatpush1.msra.mxu0 %v275
    %1785 = vmatprep.subr.mxu0 %v282
    %1786 = vmatpush1.msra.mxu0 %v281
    %1787 = vmatprep.mubr.f32.mxu0 %v1247
    %1788 = vmatmul.mubr.f32.gmra.mrb[0].mxu0 %v1239
    %v1789 = vpop.f32.mrb[0].mxu0
    %v1790 = vadd.f32 %v1210, %v1789
    %v1791 = vpop.f32.mrb[0].mxu0
    %v1792 = vadd.f32 %v1214, %v1791
    %1793 = vdwg.mxu0
    %1794 = vmatprep.subr.mxu0 %v288
    %1795 = vmatpush1.msra.mxu0 %v287
    %1796 = vmatprep.subr.mxu0 %v294
    %1797 = vmatpush1.msra.mxu0 %v293
    %1798 = vmatprep.subr.mxu0 %v300
    %1799 = vmatpush1.msra.mxu0 %v299
    %1800 = vmatprep.subr.mxu0 %v306
    %1801 = vmatpush1.msra.mxu0 %v305
    %1802 = vmatprep.subr.mxu0 %v312
    %1803 = vmatpush1.msra.mxu0 %v311
    %1804 = vmatprep.subr.mxu0 %v318
    %1805 = vmatpush1.msra.mxu0 %v317
    %1806 = vmatprep.subr.mxu0 %v324
    %1807 = vmatpush1.msra.mxu0 %v323
    %1808 = vmatprep.subr.mxu0 %v330
    %1809 = vmatpush1.msra.mxu0 %v329
    %1810 = vmatprep.subr.mxu0 %v336
    %1811 = vmatpush1.msra.mxu0 %v335
    %1812 = vmatprep.subr.mxu0 %v342
    %1813 = vmatpush1.msra.mxu0 %v341
    %1814 = vmatprep.subr.mxu0 %v348
    %1815 = vmatpush1.msra.mxu0 %v347
    %1816 = vmatprep.subr.mxu0 %v354
    %1817 = vmatpush1.msra.mxu0 %v353
    %1818 = vmatprep.subr.mxu0 %v360
    %1819 = vmatpush1.msra.mxu0 %v359
    %1820 = vmatprep.subr.mxu0 %v366
    %1821 = vmatpush1.msra.mxu0 %v365
    %1822 = vmatprep.subr.mxu0 %v372
    %1823 = vmatpush1.msra.mxu0 %v371
    %1824 = vmatprep.subr.mxu0 %v378
    %1825 = vmatpush1.msra.mxu0 %v377
    %1826 = vmatprep.subr.mxu0 %v384
    %1827 = vmatpush1.msra.mxu0 %v383
    %1828 = vmatprep.subr.mxu0 %v390
    %1829 = vmatpush1.msra.mxu0 %v389
    %1830 = vmatprep.subr.mxu0 %v396
    %1831 = vmatpush1.msra.mxu0 %v395
    %1832 = vmatprep.subr.mxu0 %v402
    %1833 = vmatpush1.msra.mxu0 %v401
    %1834 = vmatprep.subr.mxu0 %v408
    %1835 = vmatpush1.msra.mxu0 %v407
    %1836 = vmatprep.subr.mxu0 %v414
    %1837 = vmatpush1.msra.mxu0 %v413
    %1838 = vmatprep.subr.mxu0 %v420
    %1839 = vmatpush1.msra.mxu0 %v419
    %1840 = vmatprep.subr.mxu0 %v426
    %1841 = vmatpush1.msra.mxu0 %v425
    %1842 = vmatprep.subr.mxu0 %v432
    %1843 = vmatpush1.msra.mxu0 %v431
    %1844 = vmatprep.subr.mxu0 %v438
    %1845 = vmatpush1.msra.mxu0 %v437
    %1846 = vmatprep.subr.mxu0 %v444
    %1847 = vmatpush1.msra.mxu0 %v443
    %1848 = vmatprep.subr.mxu0 %v450
    %1849 = vmatpush1.msra.mxu0 %v449
    %1850 = vmatprep.subr.mxu0 %v456
    %1851 = vmatpush1.msra.mxu0 %v455
    %1852 = vmatprep.subr.mxu0 %v462
    %1853 = vmatpush1.msra.mxu0 %v461
    %1854 = vmatprep.subr.mxu0 %v468
    %1855 = vmatpush1.msra.mxu0 %v467
    %1856 = vmatprep.subr.mxu0 %v474
    %1857 = vmatpush1.msra.mxu0 %v473
    %1858 = vmatprep.mubr.f32.mxu0 %v1248
    %1859 = vmatmul.mubr.f32.gmra.mrb[0].mxu0 %v1246
    %v1860 = vpop.f32.mrb[0].mxu0
    %v1861 = vadd.f32 %v1790, %v1860
    %v1862 = vpop.f32.mrb[0].mxu0
    %v1863 = vadd.f32 %v1792, %v1862
    %1864 = vdwg.mxu0
    %1865 = vmatprep.subr.mxu0 %v480
    %1866 = vmatpush1.msra.mxu0 %v479
    %1867 = vmatprep.subr.mxu0 %v486
    %1868 = vmatpush1.msra.mxu0 %v485
    %1869 = vmatprep.subr.mxu0 %v492
    %1870 = vmatpush1.msra.mxu0 %v491
    %1871 = vmatprep.subr.mxu0 %v498
    %1872 = vmatpush1.msra.mxu0 %v497
    %1873 = vmatprep.subr.mxu0 %v504
    %1874 = vmatpush1.msra.mxu0 %v503
    %1875 = vmatprep.subr.mxu0 %v510
    %1876 = vmatpush1.msra.mxu0 %v509
    %1877 = vmatprep.subr.mxu0 %v516
    %1878 = vmatpush1.msra.mxu0 %v515
    %1879 = vmatprep.subr.mxu0 %v522
    %1880 = vmatpush1.msra.mxu0 %v521
    %1881 = vmatprep.subr.mxu0 %v528
    %1882 = vmatpush1.msra.mxu0 %v527
    %1883 = vmatprep.subr.mxu0 %v534
    %1884 = vmatpush1.msra.mxu0 %v533
    %1885 = vmatprep.subr.mxu0 %v540
    %1886 = vmatpush1.msra.mxu0 %v539
    %1887 = vmatprep.subr.mxu0 %v546
    %1888 = vmatpush1.msra.mxu0 %v545
    %1889 = vmatprep.subr.mxu0 %v552
    %1890 = vmatpush1.msra.mxu0 %v551
    %1891 = vmatprep.subr.mxu0 %v558
    %1892 = vmatpush1.msra.mxu0 %v557
    %1893 = vmatprep.subr.mxu0 %v564
    %1894 = vmatpush1.msra.mxu0 %v563
    %1895 = vmatprep.subr.mxu0 %v570
    %1896 = vmatpush1.msra.mxu0 %v569
    %1897 = vmatprep.subr.mxu0 %v576
    %1898 = vmatpush1.msra.mxu0 %v575
    %1899 = vmatprep.subr.mxu0 %v582
    %1900 = vmatpush1.msra.mxu0 %v581
    %1901 = vmatprep.subr.mxu0 %v588
    %1902 = vmatpush1.msra.mxu0 %v587
    %1903 = vmatprep.subr.mxu0 %v594
    %1904 = vmatpush1.msra.mxu0 %v593
    %1905 = vmatprep.subr.mxu0 %v600
    %1906 = vmatpush1.msra.mxu0 %v599
    %1907 = vmatprep.subr.mxu0 %v606
    %1908 = vmatpush1.msra.mxu0 %v605
    %1909 = vmatprep.subr.mxu0 %v612
    %1910 = vmatpush1.msra.mxu0 %v611
    %1911 = vmatprep.subr.mxu0 %v618
    %1912 = vmatpush1.msra.mxu0 %v617
    %1913 = vmatprep.subr.mxu0 %v624
    %1914 = vmatpush1.msra.mxu0 %v623
    %1915 = vmatprep.subr.mxu0 %v630
    %1916 = vmatpush1.msra.mxu0 %v629
    %1917 = vmatprep.subr.mxu0 %v636
    %1918 = vmatpush1.msra.mxu0 %v635
    %1919 = vmatprep.subr.mxu0 %v642
    %1920 = vmatpush1.msra.mxu0 %v641
    %1921 = vmatprep.subr.mxu0 %v648
    %1922 = vmatpush1.msra.mxu0 %v647
    %1923 = vmatprep.subr.mxu0 %v654
    %1924 = vmatpush1.msra.mxu0 %v653
    %1925 = vmatprep.subr.mxu0 %v660
    %1926 = vmatpush1.msra.mxu0 %v659
    %1927 = vmatprep.subr.mxu0 %v666
    %1928 = vmatpush1.msra.mxu0 %v665
    %1929 = vmatprep.mubr.f32.mxu0 %v1264
    %1930 = vmatmul.mubr.f32.gmra.mrb[0].mxu0 %v1256
    %v1931 = vpop.f32.mrb[0].mxu0
    %v1932 = vadd.f32 %v1861, %v1931
    %v1933 = vpop.f32.mrb[0].mxu0
    %v1934 = vadd.f32 %v1863, %v1933
    %1935 = vdwg.mxu0
    %1936 = vmatprep.subr.mxu0 %v672
    %1937 = vmatpush1.msra.mxu0 %v671
    %1938 = vmatprep.subr.mxu0 %v678
    %1939 = vmatpush1.msra.mxu0 %v677
    %1940 = vmatprep.subr.mxu0 %v684
    %1941 = vmatpush1.msra.mxu0 %v683
    %1942 = vmatprep.subr.mxu0 %v690
    %1943 = vmatpush1.msra.mxu0 %v689
    %1944 = vmatprep.subr.mxu0 %v696
    %1945 = vmatpush1.msra.mxu0 %v695
    %1946 = vmatprep.subr.mxu0 %v702
    %1947 = vmatpush1.msra.mxu0 %v701
    %1948 = vmatprep.subr.mxu0 %v708
    %1949 = vmatpush1.msra.mxu0 %v707
    %1950 = vmatprep.subr.mxu0 %v714
    %1951 = vmatpush1.msra.mxu0 %v713
    %1952 = vmatprep.subr.mxu0 %v720
    %1953 = vmatpush1.msra.mxu0 %v719
    %1954 = vmatprep.subr.mxu0 %v726
    %1955 = vmatpush1.msra.mxu0 %v725
    %1956 = vmatprep.subr.mxu0 %v732
    %1957 = vmatpush1.msra.mxu0 %v731
    %1958 = vmatprep.subr.mxu0 %v738
    %1959 = vmatpush1.msra.mxu0 %v737
    %1960 = vmatprep.subr.mxu0 %v744
    %1961 = vmatpush1.msra.mxu0 %v743
    %1962 = vmatprep.subr.mxu0 %v750
    %1963 = vmatpush1.msra.mxu0 %v749
    %1964 = vmatprep.subr.mxu0 %v756
    %1965 = vmatpush1.msra.mxu0 %v755
    %1966 = vmatprep.subr.mxu0 %v762
    %1967 = vmatpush1.msra.mxu0 %v761
    %1968 = vmatprep.subr.mxu0 %v768
    %1969 = vmatpush1.msra.mxu0 %v767
    %1970 = vmatprep.subr.mxu0 %v774
    %1971 = vmatpush1.msra.mxu0 %v773
    %1972 = vmatprep.subr.mxu0 %v780
    %1973 = vmatpush1.msra.mxu0 %v779
    %1974 = vmatprep.subr.mxu0 %v786
    %1975 = vmatpush1.msra.mxu0 %v785
    %1976 = vmatprep.subr.mxu0 %v792
    %1977 = vmatpush1.msra.mxu0 %v791
    %1978 = vmatprep.subr.mxu0 %v798
    %1979 = vmatpush1.msra.mxu0 %v797
    %1980 = vmatprep.subr.mxu0 %v804
    %1981 = vmatpush1.msra.mxu0 %v803
    %1982 = vmatprep.subr.mxu0 %v810
    %1983 = vmatpush1.msra.mxu0 %v809
    %1984 = vmatprep.subr.mxu0 %v816
    %1985 = vmatpush1.msra.mxu0 %v815
    %1986 = vmatprep.subr.mxu0 %v822
    %1987 = vmatpush1.msra.mxu0 %v821
    %1988 = vmatprep.subr.mxu0 %v828
    %1989 = vmatpush1.msra.mxu0 %v827
    %1990 = vmatprep.subr.mxu0 %v834
    %1991 = vmatpush1.msra.mxu0 %v833
    %1992 = vmatprep.subr.mxu0 %v840
    %1993 = vmatpush1.msra.mxu0 %v839
    %1994 = vmatprep.subr.mxu0 %v846
    %1995 = vmatpush1.msra.mxu0 %v845
    %1996 = vmatprep.subr.mxu0 %v852
    %1997 = vmatpush1.msra.mxu0 %v851
    %1998 = vmatprep.subr.mxu0 %v858
    %1999 = vmatpush1.msra.mxu0 %v857
    %2000 = vmatprep.mubr.f32.mxu0 %v1265
    %2001 = vmatmul.mubr.f32.gmra.mrb[0].mxu0 %v1263
    %v2002 = vpop.f32.mrb[0].mxu0
    %v2003 = vadd.f32 %v1932, %v2002
    %v2004 = vpop.f32.mrb[0].mxu0
    %v2005 = vadd.f32 %v1934, %v2004
    %2006 = vdwg.mxu0
    %2007 = vmatprep.subr.mxu0 %v864
    %2008 = vmatpush1.msra.mxu0 %v863
    %2009 = vmatprep.subr.mxu0 %v870
    %2010 = vmatpush1.msra.mxu0 %v869
    %2011 = vmatprep.subr.mxu0 %v876
    %2012 = vmatpush1.msra.mxu0 %v875
    %2013 = vmatprep.subr.mxu0 %v882
    %2014 = vmatpush1.msra.mxu0 %v881
    %2015 = vmatprep.subr.mxu0 %v888
    %2016 = vmatpush1.msra.mxu0 %v887
    %2017 = vmatprep.subr.mxu0 %v894
    %2018 = vmatpush1.msra.mxu0 %v893
    %2019 = vmatprep.subr.mxu0 %v900
    %2020 = vmatpush1.msra.mxu0 %v899
    %2021 = vmatprep.subr.mxu0 %v906
    %2022 = vmatpush1.msra.mxu0 %v905
    %2023 = vmatprep.subr.mxu0 %v912
    %2024 = vmatpush1.msra.mxu0 %v911
    %2025 = vmatprep.subr.mxu0 %v918
    %2026 = vmatpush1.msra.mxu0 %v917
    %2027 = vmatprep.subr.mxu0 %v924
    %2028 = vmatpush1.msra.mxu0 %v923
    %2029 = vmatprep.subr.mxu0 %v930
    %2030 = vmatpush1.msra.mxu0 %v929
    %2031 = vmatprep.subr.mxu0 %v936
    %2032 = vmatpush1.msra.mxu0 %v935
    %2033 = vmatprep.subr.mxu0 %v942
    %2034 = vmatpush1.msra.mxu0 %v941
    %2035 = vmatprep.subr.mxu0 %v948
    %2036 = vmatpush1.msra.mxu0 %v947
    %2037 = vmatprep.subr.mxu0 %v954
    %2038 = vmatpush1.msra.mxu0 %v953
    %2039 = vmatprep.subr.mxu0 %v960
    %2040 = vmatpush1.msra.mxu0 %v959
    %2041 = vmatprep.subr.mxu0 %v966
    %2042 = vmatpush1.msra.mxu0 %v965
    %2043 = vmatprep.subr.mxu0 %v972
    %2044 = vmatpush1.msra.mxu0 %v971
    %2045 = vmatprep.subr.mxu0 %v978
    %2046 = vmatpush1.msra.mxu0 %v977
    %2047 = vmatprep.subr.mxu0 %v984
    %2048 = vmatpush1.msra.mxu0 %v983
    %2049 = vmatprep.subr.mxu0 %v990
    %2050 = vmatpush1.msra.mxu0 %v989
    %2051 = vmatprep.subr.mxu0 %v996
    %2052 = vmatpush1.msra.mxu0 %v995
    %2053 = vmatprep.subr.mxu0 %v1002
    %2054 = vmatpush1.msra.mxu0 %v1001
    %2055 = vmatprep.subr.mxu0 %v1008
    %2056 = vmatpush1.msra.mxu0 %v1007
    %2057 = vmatprep.subr.mxu0 %v1014
    %2058 = vmatpush1.msra.mxu0 %v1013
    %2059 = vmatprep.subr.mxu0 %v1020
    %2060 = vmatpush1.msra.mxu0 %v1019
    %2061 = vmatprep.subr.mxu0 %v1026
    %2062 = vmatpush1.msra.mxu0 %v1025
    %2063 = vmatprep.subr.mxu0 %v1032
    %2064 = vmatpush1.msra.mxu0 %v1031
    %2065 = vmatprep.subr.mxu0 %v1038
    %2066 = vmatpush1.msra.mxu0 %v1037
    %2067 = vmatprep.subr.mxu0 %v1044
    %2068 = vmatpush1.msra.mxu0 %v1043
    %2069 = vmatprep.subr.mxu0 %v1050
    %2070 = vmatpush1.msra.mxu0 %v1049
    %2071 = vmatprep.mubr.f32.mxu0 %v1281
    %2072 = vmatmul.mubr.f32.gmra.mrb[0].mxu0 %v1273
    %v2073 = vpop.f32.mrb[0].mxu0
    %v2074 = vadd.f32 %v2003, %v2073
    %v2075 = vpop.f32.mrb[0].mxu0
    %v2076 = vadd.f32 %v2005, %v2075
    %2077 = vdwg.mxu0
    %2078 = vmatprep.subr.mxu0 %v1056
    %2079 = vmatpush1.msra.mxu0 %v1055
    %2080 = vmatprep.subr.mxu0 %v1062
    %2081 = vmatpush1.msra.mxu0 %v1061
    %2082 = vmatprep.subr.mxu0 %v1068
    %2083 = vmatpush1.msra.mxu0 %v1067
    %2084 = vmatprep.subr.mxu0 %v1074
    %2085 = vmatpush1.msra.mxu0 %v1073
    %2086 = vmatprep.subr.mxu0 %v1080
    %2087 = vmatpush1.msra.mxu0 %v1079
    %2088 = vmatprep.subr.mxu0 %v1086
    %2089 = vmatpush1.msra.mxu0 %v1085
    %2090 = vmatprep.subr.mxu0 %v1092
    %2091 = vmatpush1.msra.mxu0 %v1091
    %2092 = vmatprep.subr.mxu0 %v1098
    %2093 = vmatpush1.msra.mxu0 %v1097
    %2094 = vmatprep.subr.mxu0 %v1104
    %2095 = vmatpush1.msra.mxu0 %v1103
    %2096 = vmatprep.subr.mxu0 %v1110
    %2097 = vmatpush1.msra.mxu0 %v1109
    %2098 = vmatprep.subr.mxu0 %v1116
    %2099 = vmatpush1.msra.mxu0 %v1115
    %2100 = vmatprep.subr.mxu0 %v1122
    %2101 = vmatpush1.msra.mxu0 %v1121
    %2102 = vmatprep.subr.mxu0 %v1128
    %2103 = vmatpush1.msra.mxu0 %v1127
    %2104 = vmatprep.subr.mxu0 %v1134
    %2105 = vmatpush1.msra.mxu0 %v1133
    %2106 = vmatprep.subr.mxu0 %v1140
    %2107 = vmatpush1.msra.mxu0 %v1139
    %2108 = vmatprep.subr.mxu0 %v1146
    %2109 = vmatpush1.msra.mxu0 %v1145
    %2110 = vmatprep.subr.mxu0 %v1152
    %2111 = vmatpush1.msra.mxu0 %v1151
    %2112 = vmatprep.subr.mxu0 %v1158
    %2113 = vmatpush1.msra.mxu0 %v1157
    %2114 = vmatprep.subr.mxu0 %v1164
    %2115 = vmatpush1.msra.mxu0 %v1163
    %2116 = vmatprep.subr.mxu0 %v1170
    %2117 = vmatpush1.msra.mxu0 %v1169
    %2118 = vmatprep.subr.mxu0 %v1176
    %2119 = vmatpush1.msra.mxu0 %v1175
    %2120 = vmatprep.subr.mxu0 %v1182
    %2121 = vmatpush1.msra.mxu0 %v1181
    %2122 = vmatprep.subr.mxu0 %v1188
    %2123 = vmatpush1.msra.mxu0 %v1187
    %2124 = vmatprep.subr.mxu0 %v1194
    %2125 = vmatpush1.msra.mxu0 %v1193
    %2126 = vmatprep.subr.mxu0 0.0
    %2127 = vmatpush1.msra.mxu0 0.0
    %2128 = vmatprep.subr.mxu0 0.0
    %2129 = vmatpush1.msra.mxu0 0.0
    %2130 = vmatprep.subr.mxu0 0.0
    %2131 = vmatpush1.msra.mxu0 0.0
    %2132 = vmatprep.subr.mxu0 0.0
    %2133 = vmatpush1.msra.mxu0 0.0
    %2134 = vmatprep.subr.mxu0 0.0
    %2135 = vmatpush1.msra.mxu0 0.0
    %2136 = vmatprep.subr.mxu0 0.0
    %2137 = vmatpush1.msra.mxu0 0.0
    %2138 = vmatprep.subr.mxu0 0.0
    %2139 = vmatpush1.msra.mxu0 0.0
    %2140 = vmatprep.subr.mxu0 0.0
    %2141 = vmatpush1.msra.mxu0 0.0
    %2142 = vmatprep.mubr.f32.mxu0 %v1295
    %2143 = vmatmul.mubr.f32.gmra.mrb[0].mxu0 %v1280
    %v2144 = vpop.f32.mrb[0].mxu0
    %v2145 = vadd.f32 %v2074, %v2144
    %v2146 = vpop.f32.mrb[0].mxu0
    %v2147 = vadd.f32 %v2076, %v2146
    %2148 = vdwg.mxu0
    %2149 = vmatprep.subr.mxu0 %v98
    %2150 = vmatpush1.msra.mxu0 %v97
    %2151 = vmatprep.subr.mxu0 %v104
    %2152 = vmatpush1.msra.mxu0 %v103
    %2153 = vmatprep.subr.mxu0 %v110
    %2154 = vmatpush1.msra.mxu0 %v109
    %2155 = vmatprep.subr.mxu0 %v116
    %2156 = vmatpush1.msra.mxu0 %v115
    %2157 = vmatprep.subr.mxu0 %v122
    %2158 = vmatpush1.msra.mxu0 %v121
    %2159 = vmatprep.subr.mxu0 %v128
    %2160 = vmatpush1.msra.mxu0 %v127
    %2161 = vmatprep.subr.mxu0 %v134
    %2162 = vmatpush1.msra.mxu0 %v133
    %2163 = vmatprep.subr.mxu0 %v140
    %2164 = vmatpush1.msra.mxu0 %v139
    %2165 = vmatprep.subr.mxu0 %v146
    %2166 = vmatpush1.msra.mxu0 %v145
    %2167 = vmatprep.subr.mxu0 %v152
    %2168 = vmatpush1.msra.mxu0 %v151
    %2169 = vmatprep.subr.mxu0 %v158
    %2170 = vmatpush1.msra.mxu0 %v157
    %2171 = vmatprep.subr.mxu0 %v164
    %2172 = vmatpush1.msra.mxu0 %v163
    %2173 = vmatprep.subr.mxu0 %v170
    %2174 = vmatpush1.msra.mxu0 %v169
    %2175 = vmatprep.subr.mxu0 %v176
    %2176 = vmatpush1.msra.mxu0 %v175
    %2177 = vmatprep.subr.mxu0 %v182
    %2178 = vmatpush1.msra.mxu0 %v181
    %2179 = vmatprep.subr.mxu0 %v188
    %2180 = vmatpush1.msra.mxu0 %v187
    %2181 = vmatprep.subr.mxu0 %v194
    %2182 = vmatpush1.msra.mxu0 %v193
    %2183 = vmatprep.subr.mxu0 %v200
    %2184 = vmatpush1.msra.mxu0 %v199
    %2185 = vmatprep.subr.mxu0 %v206
    %2186 = vmatpush1.msra.mxu0 %v205
    %2187 = vmatprep.subr.mxu0 %v212
    %2188 = vmatpush1.msra.mxu0 %v211
    %2189 = vmatprep.subr.mxu0 %v218
    %2190 = vmatpush1.msra.mxu0 %v217
    %2191 = vmatprep.subr.mxu0 %v224
    %2192 = vmatpush1.msra.mxu0 %v223
    %2193 = vmatprep.subr.mxu0 %v230
    %2194 = vmatpush1.msra.mxu0 %v229
    %2195 = vmatprep.subr.mxu0 %v236
    %2196 = vmatpush1.msra.mxu0 %v235
    %2197 = vmatprep.subr.mxu0 %v242
    %2198 = vmatpush1.msra.mxu0 %v241
    %2199 = vmatprep.subr.mxu0 %v248
    %2200 = vmatpush1.msra.mxu0 %v247
    %2201 = vmatprep.subr.mxu0 %v254
    %2202 = vmatpush1.msra.mxu0 %v253
    %2203 = vmatprep.subr.mxu0 %v260
    %2204 = vmatpush1.msra.mxu0 %v259
    %2205 = vmatprep.subr.mxu0 %v266
    %2206 = vmatpush1.msra.mxu0 %v265
    %2207 = vmatprep.subr.mxu0 %v272
    %2208 = vmatpush1.msra.mxu0 %v271
    %2209 = vmatprep.subr.mxu0 %v278
    %2210 = vmatpush1.msra.mxu0 %v277
    %2211 = vmatprep.subr.mxu0 %v284
    %2212 = vmatpush1.msra.mxu0 %v283
    %2213 = vmatprep.mubr.f32.mxu0 %v1247
    %2214 = vmatmul.mubr.f32.gmra.mrb[0].mxu0 %v1239
    %v2215 = vpop.f32.mrb[0].mxu0
    %v2216 = vadd.f32 %v1218, %v2215
    %v2217 = vpop.f32.mrb[0].mxu0
    %v2218 = vadd.f32 %v1222, %v2217
    %2219 = vdwg.mxu0
    %2220 = vmatprep.subr.mxu0 %v290
    %2221 = vmatpush1.msra.mxu0 %v289
    %2222 = vmatprep.subr.mxu0 %v296
    %2223 = vmatpush1.msra.mxu0 %v295
    %2224 = vmatprep.subr.mxu0 %v302
    %2225 = vmatpush1.msra.mxu0 %v301
    %2226 = vmatprep.subr.mxu0 %v308
    %2227 = vmatpush1.msra.mxu0 %v307
    %2228 = vmatprep.subr.mxu0 %v314
    %2229 = vmatpush1.msra.mxu0 %v313
    %2230 = vmatprep.subr.mxu0 %v320
    %2231 = vmatpush1.msra.mxu0 %v319
    %2232 = vmatprep.subr.mxu0 %v326
    %2233 = vmatpush1.msra.mxu0 %v325
    %2234 = vmatprep.subr.mxu0 %v332
    %2235 = vmatpush1.msra.mxu0 %v331
    %2236 = vmatprep.subr.mxu0 %v338
    %2237 = vmatpush1.msra.mxu0 %v337
    %2238 = vmatprep.subr.mxu0 %v344
    %2239 = vmatpush1.msra.mxu0 %v343
    %2240 = vmatprep.subr.mxu0 %v350
    %2241 = vmatpush1.msra.mxu0 %v349
    %2242 = vmatprep.subr.mxu0 %v356
    %2243 = vmatpush1.msra.mxu0 %v355
    %2244 = vmatprep.subr.mxu0 %v362
    %2245 = vmatpush1.msra.mxu0 %v361
    %2246 = vmatprep.subr.mxu0 %v368
    %2247 = vmatpush1.msra.mxu0 %v367
    %2248 = vmatprep.subr.mxu0 %v374
    %2249 = vmatpush1.msra.mxu0 %v373
    %2250 = vmatprep.subr.mxu0 %v380
    %2251 = vmatpush1.msra.mxu0 %v379
    %2252 = vmatprep.subr.mxu0 %v386
    %2253 = vmatpush1.msra.mxu0 %v385
    %2254 = vmatprep.subr.mxu0 %v392
    %2255 = vmatpush1.msra.mxu0 %v391
    %2256 = vmatprep.subr.mxu0 %v398
    %2257 = vmatpush1.msra.mxu0 %v397
    %2258 = vmatprep.subr.mxu0 %v404
    %2259 = vmatpush1.msra.mxu0 %v403
    %2260 = vmatprep.subr.mxu0 %v410
    %2261 = vmatpush1.msra.mxu0 %v409
    %2262 = vmatprep.subr.mxu0 %v416
    %2263 = vmatpush1.msra.mxu0 %v415
    %2264 = vmatprep.subr.mxu0 %v422
    %2265 = vmatpush1.msra.mxu0 %v421
    %2266 = vmatprep.subr.mxu0 %v428
    %2267 = vmatpush1.msra.mxu0 %v427
    %2268 = vmatprep.subr.mxu0 %v434
    %2269 = vmatpush1.msra.mxu0 %v433
    %2270 = vmatprep.subr.mxu0 %v440
    %2271 = vmatpush1.msra.mxu0 %v439
    %2272 = vmatprep.subr.mxu0 %v446
    %2273 = vmatpush1.msra.mxu0 %v445
    %2274 = vmatprep.subr.mxu0 %v452
    %2275 = vmatpush1.msra.mxu0 %v451
    %2276 = vmatprep.subr.mxu0 %v458
    %2277 = vmatpush1.msra.mxu0 %v457
    %2278 = vmatprep.subr.mxu0 %v464
    %2279 = vmatpush1.msra.mxu0 %v463
    %2280 = vmatprep.subr.mxu0 %v470
    %2281 = vmatpush1.msra.mxu0 %v469
    %2282 = vmatprep.subr.mxu0 %v476
    %2283 = vmatpush1.msra.mxu0 %v475
    %2284 = vmatprep.mubr.f32.mxu0 %v1248
    %2285 = vmatmul.mubr.f32.gmra.mrb[0].mxu0 %v1246
    %v2286 = vpop.f32.mrb[0].mxu0
    %v2287 = vadd.f32 %v2216, %v2286
    %v2288 = vpop.f32.mrb[0].mxu0
    %v2289 = vadd.f32 %v2218, %v2288
    %2290 = vdwg.mxu0
    %2291 = vmatprep.subr.mxu0 %v482
    %2292 = vmatpush1.msra.mxu0 %v481
    %2293 = vmatprep.subr.mxu0 %v488
    %2294 = vmatpush1.msra.mxu0 %v487
    %2295 = vmatprep.subr.mxu0 %v494
    %2296 = vmatpush1.msra.mxu0 %v493
    %2297 = vmatprep.subr.mxu0 %v500
    %2298 = vmatpush1.msra.mxu0 %v499
    %2299 = vmatprep.subr.mxu0 %v506
    %2300 = vmatpush1.msra.mxu0 %v505
    %2301 = vmatprep.subr.mxu0 %v512
    %2302 = vmatpush1.msra.mxu0 %v511
    %2303 = vmatprep.subr.mxu0 %v518
    %2304 = vmatpush1.msra.mxu0 %v517
    %2305 = vmatprep.subr.mxu0 %v524
    %2306 = vmatpush1.msra.mxu0 %v523
    %2307 = vmatprep.subr.mxu0 %v530
    %2308 = vmatpush1.msra.mxu0 %v529
    %2309 = vmatprep.subr.mxu0 %v536
    %2310 = vmatpush1.msra.mxu0 %v535
    %2311 = vmatprep.subr.mxu0 %v542
    %2312 = vmatpush1.msra.mxu0 %v541
    %2313 = vmatprep.subr.mxu0 %v548
    %2314 = vmatpush1.msra.mxu0 %v547
    %2315 = vmatprep.subr.mxu0 %v554
    %2316 = vmatpush1.msra.mxu0 %v553
    %2317 = vmatprep.subr.mxu0 %v560
    %2318 = vmatpush1.msra.mxu0 %v559
    %2319 = vmatprep.subr.mxu0 %v566
    %2320 = vmatpush1.msra.mxu0 %v565
    %2321 = vmatprep.subr.mxu0 %v572
    %2322 = vmatpush1.msra.mxu0 %v571
    %2323 = vmatprep.subr.mxu0 %v578
    %2324 = vmatpush1.msra.mxu0 %v577
    %2325 = vmatprep.subr.mxu0 %v584
    %2326 = vmatpush1.msra.mxu0 %v583
    %2327 = vmatprep.subr.mxu0 %v590
    %2328 = vmatpush1.msra.mxu0 %v589
    %2329 = vmatprep.subr.mxu0 %v596
    %2330 = vmatpush1.msra.mxu0 %v595
    %2331 = vmatprep.subr.mxu0 %v602
    %2332 = vmatpush1.msra.mxu0 %v601
    %2333 = vmatprep.subr.mxu0 %v608
    %2334 = vmatpush1.msra.mxu0 %v607
    %2335 = vmatprep.subr.mxu0 %v614
    %2336 = vmatpush1.msra.mxu0 %v613
    %2337 = vmatprep.subr.mxu0 %v620
    %2338 = vmatpush1.msra.mxu0 %v619
    %2339 = vmatprep.subr.mxu0 %v626
    %2340 = vmatpush1.msra.mxu0 %v625
    %2341 = vmatprep.subr.mxu0 %v632
    %2342 = vmatpush1.msra.mxu0 %v631
    %2343 = vmatprep.subr.mxu0 %v638
    %2344 = vmatpush1.msra.mxu0 %v637
    %2345 = vmatprep.subr.mxu0 %v644
    %2346 = vmatpush1.msra.mxu0 %v643
    %2347 = vmatprep.subr.mxu0 %v650
    %2348 = vmatpush1.msra.mxu0 %v649
    %2349 = vmatprep.subr.mxu0 %v656
    %2350 = vmatpush1.msra.mxu0 %v655
    %2351 = vmatprep.subr.mxu0 %v662
    %2352 = vmatpush1.msra.mxu0 %v661
    %2353 = vmatprep.subr.mxu0 %v668
    %2354 = vmatpush1.msra.mxu0 %v667
    %2355 = vmatprep.mubr.f32.mxu0 %v1264
    %2356 = vmatmul.mubr.f32.gmra.mrb[0].mxu0 %v1256
    %v2357 = vpop.f32.mrb[0].mxu0
    %v2358 = vadd.f32 %v2287, %v2357
    %v2359 = vpop.f32.mrb[0].mxu0
    %v2360 = vadd.f32 %v2289, %v2359
    %2361 = vdwg.mxu0
    %2362 = vmatprep.subr.mxu0 %v674
    %2363 = vmatpush1.msra.mxu0 %v673
    %2364 = vmatprep.subr.mxu0 %v680
    %2365 = vmatpush1.msra.mxu0 %v679
    %2366 = vmatprep.subr.mxu0 %v686
    %2367 = vmatpush1.msra.mxu0 %v685
    %2368 = vmatprep.subr.mxu0 %v692
    %2369 = vmatpush1.msra.mxu0 %v691
    %2370 = vmatprep.subr.mxu0 %v698
    %2371 = vmatpush1.msra.mxu0 %v697
    %2372 = vmatprep.subr.mxu0 %v704
    %2373 = vmatpush1.msra.mxu0 %v703
    %2374 = vmatprep.subr.mxu0 %v710
    %2375 = vmatpush1.msra.mxu0 %v709
    %2376 = vmatprep.subr.mxu0 %v716
    %2377 = vmatpush1.msra.mxu0 %v715
    %2378 = vmatprep.subr.mxu0 %v722
    %2379 = vmatpush1.msra.mxu0 %v721
    %2380 = vmatprep.subr.mxu0 %v728
    %2381 = vmatpush1.msra.mxu0 %v727
    %2382 = vmatprep.subr.mxu0 %v734
    %2383 = vmatpush1.msra.mxu0 %v733
    %2384 = vmatprep.subr.mxu0 %v740
    %2385 = vmatpush1.msra.mxu0 %v739
    %2386 = vmatprep.subr.mxu0 %v746
    %2387 = vmatpush1.msra.mxu0 %v745
    %2388 = vmatprep.subr.mxu0 %v752
    %2389 = vmatpush1.msra.mxu0 %v751
    %2390 = vmatprep.subr.mxu0 %v758
    %2391 = vmatpush1.msra.mxu0 %v757
    %2392 = vmatprep.subr.mxu0 %v764
    %2393 = vmatpush1.msra.mxu0 %v763
    %2394 = vmatprep.subr.mxu0 %v770
    %2395 = vmatpush1.msra.mxu0 %v769
    %2396 = vmatprep.subr.mxu0 %v776
    %2397 = vmatpush1.msra.mxu0 %v775
    %2398 = vmatprep.subr.mxu0 %v782
    %2399 = vmatpush1.msra.mxu0 %v781
    %2400 = vmatprep.subr.mxu0 %v788
    %2401 = vmatpush1.msra.mxu0 %v787
    %2402 = vmatprep.subr.mxu0 %v794
    %2403 = vmatpush1.msra.mxu0 %v793
    %2404 = vmatprep.subr.mxu0 %v800
    %2405 = vmatpush1.msra.mxu0 %v799
    %2406 = vmatprep.subr.mxu0 %v806
    %2407 = vmatpush1.msra.mxu0 %v805
    %2408 = vmatprep.subr.mxu0 %v812
    %2409 = vmatpush1.msra.mxu0 %v811
    %2410 = vmatprep.subr.mxu0 %v818
    %2411 = vmatpush1.msra.mxu0 %v817
    %2412 = vmatprep.subr.mxu0 %v824
    %2413 = vmatpush1.msra.mxu0 %v823
    %2414 = vmatprep.subr.mxu0 %v830
    %2415 = vmatpush1.msra.mxu0 %v829
    %2416 = vmatprep.subr.mxu0 %v836
    %2417 = vmatpush1.msra.mxu0 %v835
    %2418 = vmatprep.subr.mxu0 %v842
    %2419 = vmatpush1.msra.mxu0 %v841
    %2420 = vmatprep.subr.mxu0 %v848
    %2421 = vmatpush1.msra.mxu0 %v847
    %2422 = vmatprep.subr.mxu0 %v854
    %2423 = vmatpush1.msra.mxu0 %v853
    %2424 = vmatprep.subr.mxu0 %v860
    %2425 = vmatpush1.msra.mxu0 %v859
    %2426 = vmatprep.mubr.f32.mxu0 %v1265
    %2427 = vmatmul.mubr.f32.gmra.mrb[0].mxu0 %v1263
    %v2428 = vpop.f32.mrb[0].mxu0
    %v2429 = vadd.f32 %v2358, %v2428
    %v2430 = vpop.f32.mrb[0].mxu0
    %v2431 = vadd.f32 %v2360, %v2430
    %2432 = vdwg.mxu0
    %2433 = vmatprep.subr.mxu0 %v866
    %2434 = vmatpush1.msra.mxu0 %v865
    %2435 = vmatprep.subr.mxu0 %v872
    %2436 = vmatpush1.msra.mxu0 %v871
    %2437 = vmatprep.subr.mxu0 %v878
    %2438 = vmatpush1.msra.mxu0 %v877
    %2439 = vmatprep.subr.mxu0 %v884
    %2440 = vmatpush1.msra.mxu0 %v883
    %2441 = vmatprep.subr.mxu0 %v890
    %2442 = vmatpush1.msra.mxu0 %v889
    %2443 = vmatprep.subr.mxu0 %v896
    %2444 = vmatpush1.msra.mxu0 %v895
    %2445 = vmatprep.subr.mxu0 %v902
    %2446 = vmatpush1.msra.mxu0 %v901
    %2447 = vmatprep.subr.mxu0 %v908
    %2448 = vmatpush1.msra.mxu0 %v907
    %2449 = vmatprep.subr.mxu0 %v914
    %2450 = vmatpush1.msra.mxu0 %v913
    %2451 = vmatprep.subr.mxu0 %v920
    %2452 = vmatpush1.msra.mxu0 %v919
    %2453 = vmatprep.subr.mxu0 %v926
    %2454 = vmatpush1.msra.mxu0 %v925
    %2455 = vmatprep.subr.mxu0 %v932
    %2456 = vmatpush1.msra.mxu0 %v931
    %2457 = vmatprep.subr.mxu0 %v938
    %2458 = vmatpush1.msra.mxu0 %v937
    %2459 = vmatprep.subr.mxu0 %v944
    %2460 = vmatpush1.msra.mxu0 %v943
    %2461 = vmatprep.subr.mxu0 %v950
    %2462 = vmatpush1.msra.mxu0 %v949
    %2463 = vmatprep.subr.mxu0 %v956
    %2464 = vmatpush1.msra.mxu0 %v955
    %2465 = vmatprep.subr.mxu0 %v962
    %2466 = vmatpush1.msra.mxu0 %v961
    %2467 = vmatprep.subr.mxu0 %v968
    %2468 = vmatpush1.msra.mxu0 %v967
    %2469 = vmatprep.subr.mxu0 %v974
    %2470 = vmatpush1.msra.mxu0 %v973
    %2471 = vmatprep.subr.mxu0 %v980
    %2472 = vmatpush1.msra.mxu0 %v979
    %2473 = vmatprep.subr.mxu0 %v986
    %2474 = vmatpush1.msra.mxu0 %v985
    %2475 = vmatprep.subr.mxu0 %v992
    %2476 = vmatpush1.msra.mxu0 %v991
    %2477 = vmatprep.subr.mxu0 %v998
    %2478 = vmatpush1.msra.mxu0 %v997
    %2479 = vmatprep.subr.mxu0 %v1004
    %2480 = vmatpush1.msra.mxu0 %v1003
    %2481 = vmatprep.subr.mxu0 %v1010
    %2482 = vmatpush1.msra.mxu0 %v1009
    %2483 = vmatprep.subr.mxu0 %v1016
    %2484 = vmatpush1.msra.mxu0 %v1015
    %2485 = vmatprep.subr.mxu0 %v1022
    %2486 = vmatpush1.msra.mxu0 %v1021
    %2487 = vmatprep.subr.mxu0 %v1028
    %2488 = vmatpush1.msra.mxu0 %v1027
    %2489 = vmatprep.subr.mxu0 %v1034
    %2490 = vmatpush1.msra.mxu0 %v1033
    %2491 = vmatprep.subr.mxu0 %v1040
    %2492 = vmatpush1.msra.mxu0 %v1039
    %2493 = vmatprep.subr.mxu0 %v1046
    %2494 = vmatpush1.msra.mxu0 %v1045
    %2495 = vmatprep.subr.mxu0 %v1052
    %2496 = vmatpush1.msra.mxu0 %v1051
    %2497 = vmatprep.mubr.f32.mxu0 %v1281
    %2498 = vmatmul.mubr.f32.gmra.mrb[0].mxu0 %v1273
    %v2499 = vpop.f32.mrb[0].mxu0
    %v2500 = vadd.f32 %v2429, %v2499
    %v2501 = vpop.f32.mrb[0].mxu0
    %v2502 = vadd.f32 %v2431, %v2501
    %2503 = vdwg.mxu0
    %2504 = vmatprep.subr.mxu0 %v1058
    %2505 = vmatpush1.msra.mxu0 %v1057
    %2506 = vmatprep.subr.mxu0 %v1064
    %2507 = vmatpush1.msra.mxu0 %v1063
    %2508 = vmatprep.subr.mxu0 %v1070
    %2509 = vmatpush1.msra.mxu0 %v1069
    %2510 = vmatprep.subr.mxu0 %v1076
    %2511 = vmatpush1.msra.mxu0 %v1075
    %2512 = vmatprep.subr.mxu0 %v1082
    %2513 = vmatpush1.msra.mxu0 %v1081
    %2514 = vmatprep.subr.mxu0 %v1088
    %2515 = vmatpush1.msra.mxu0 %v1087
    %2516 = vmatprep.subr.mxu0 %v1094
    %2517 = vmatpush1.msra.mxu0 %v1093
    %2518 = vmatprep.subr.mxu0 %v1100
    %2519 = vmatpush1.msra.mxu0 %v1099
    %2520 = vmatprep.subr.mxu0 %v1106
    %2521 = vmatpush1.msra.mxu0 %v1105
    %2522 = vmatprep.subr.mxu0 %v1112
    %2523 = vmatpush1.msra.mxu0 %v1111
    %2524 = vmatprep.subr.mxu0 %v1118
    %2525 = vmatpush1.msra.mxu0 %v1117
    %2526 = vmatprep.subr.mxu0 %v1124
    %2527 = vmatpush1.msra.mxu0 %v1123
    %2528 = vmatprep.subr.mxu0 %v1130
    %2529 = vmatpush1.msra.mxu0 %v1129
    %2530 = vmatprep.subr.mxu0 %v1136
    %2531 = vmatpush1.msra.mxu0 %v1135
    %2532 = vmatprep.subr.mxu0 %v1142
    %2533 = vmatpush1.msra.mxu0 %v1141
    %2534 = vmatprep.subr.mxu0 %v1148
    %2535 = vmatpush1.msra.mxu0 %v1147
    %2536 = vmatprep.subr.mxu0 %v1154
    %2537 = vmatpush1.msra.mxu0 %v1153
    %2538 = vmatprep.subr.mxu0 %v1160
    %2539 = vmatpush1.msra.mxu0 %v1159
    %2540 = vmatprep.subr.mxu0 %v1166
    %2541 = vmatpush1.msra.mxu0 %v1165
    %2542 = vmatprep.subr.mxu0 %v1172
    %2543 = vmatpush1.msra.mxu0 %v1171
    %2544 = vmatprep.subr.mxu0 %v1178
    %2545 = vmatpush1.msra.mxu0 %v1177
    %2546 = vmatprep.subr.mxu0 %v1184
    %2547 = vmatpush1.msra.mxu0 %v1183
    %2548 = vmatprep.subr.mxu0 %v1190
    %2549 = vmatpush1.msra.mxu0 %v1189
    %2550 = vmatprep.subr.mxu0 %v1196
    %2551 = vmatpush1.msra.mxu0 %v1195
    %2552 = vmatprep.subr.mxu0 0.0
    %2553 = vmatpush1.msra.mxu0 0.0
    %2554 = vmatprep.subr.mxu0 0.0
    %2555 = vmatpush1.msra.mxu0 0.0
    %2556 = vmatprep.subr.mxu0 0.0
    %2557 = vmatpush1.msra.mxu0 0.0
    %2558 = vmatprep.subr.mxu0 0.0
    %2559 = vmatpush1.msra.mxu0 0.0
    %2560 = vmatprep.subr.mxu0 0.0
    %2561 = vmatpush1.msra.mxu0 0.0
    %2562 = vmatprep.subr.mxu0 0.0
    %2563 = vmatpush1.msra.mxu0 0.0
    %2564 = vmatprep.subr.mxu0 0.0
    %2565 = vmatpush1.msra.mxu0 0.0
    %2566 = vmatprep.subr.mxu0 0.0
    %2567 = vmatpush1.msra.mxu0 0.0
    %2568 = vmatprep.mubr.f32.mxu0 %v1295
    %2569 = vmatmul.mubr.f32.gmra.mrb[0].mxu0 %v1280
    %v2570 = vpop.f32.mrb[0].mxu0
    %v2571 = vadd.f32 %v2500, %v2570
    %v2572 = vpop.f32.mrb[0].mxu0
    %v2573 = vadd.f32 %v2502, %v2572
    %2574 = vdwg.mxu0
    %v2575 = vmax.f32 %v1719, 0.0
    %v2576 = vmax.f32 %v1721, 0.0
    %v2577 = vmax.f32 %v2145, 0.0
    %v2578 = vmax.f32 %v2147, 0.0
    %v2579 = vmax.f32 %v2571, 0.0
    %v2580 = vmax.f32 %v2573, 0.0
    %v2581 = vld [vmem:[%s3] sm:$0xff]
    %v2582 = vld [vmem:[%s3 + $0x8] sm:$0xff]
    %v2583 = vld [vmem:[%s3 + $0x10] sm:$0xff]
    %v2584 = vld [vmem:[%s3 + $0x18] sm:$0xff]
    %v2585 = vld [vmem:[%s3 + $0x20] sm:$0xff]
    %v2586 = vld [vmem:[%s3 + $0x28] sm:$0xff]
    %v2587 = vld [vmem:[%s3 + $0x30] sm:$0xff]
    %v2588 = vld [vmem:[%s3 + $0x38] sm:$0xff]
    %v2589 = vld [vmem:[%s3 + $0x40] sm:$0xff]
    %v2590 = vld [vmem:[%s3 + $0x48] sm:$0xff]
    %v2591 = vld [vmem:[%s3 + $0x50] sm:$0xff]
    %v2592 = vld [vmem:[%s3 + $0x58] sm:$0xff]
    %v2593 = vld [vmem:[%s3 + $0x60] sm:$0xff]
    %v2594 = vld [vmem:[%s3 + $0x68] sm:$0xff]
    %v2595 = vld [vmem:[%s3 + $0x70] sm:$0xff]
    %v2596 = vld [vmem:[%s3 + $0x78] sm:$0xff]
    %v2597 = vld [vmem:[%s3 + $0x80] sm:$0xff]
    %v2598 = vld [vmem:[%s3 + $0x88] sm:$0xff]
    %v2599 = vld [vmem:[%s3 + $0x90] sm:$0xff]
    %v2600 = vld [vmem:[%s3 + $0x98] sm:$0xff]
    %v2601 = vld [vmem:[%s3 + $0xa0] sm:$0xff]
    %v2602 = vld [vmem:[%s3 + $0xa8] sm:$0xff]
    %v2603 = vld [vmem:[%s3 + $0xb0] sm:$0xff]
    %v2604 = vld [vmem:[%s3 + $0xb8] sm:$0xff]
    %v2605 = vld [vmem:[%s3 + $0xc0] sm:$0xff]
    %v2606 = vld [vmem:[%s3 + $0xc8] sm:$0xff]
    %v2607 = vld [vmem:[%s3 + $0xd0] sm:$0xff]
    %v2608 = vld [vmem:[%s3 + $0xd8] sm:$0xff]
    %v2609 = vld [vmem:[%s3 + $0xe0] sm:$0xff]
    %v2610 = vld [vmem:[%s3 + $0xe8] sm:$0xff]
    %v2611 = vld [vmem:[%s3 + $0xf0] sm:$0xff]
    %v2612 = vld [vmem:[%s3 + $0xf8] sm:$0xff]
    %v2613 = vld [vmem:[%s3 + $0x100] sm:$0xff]
    %v2614 = vld [vmem:[%s3 + $0x108] sm:$0xff]
    %v2615 = vld [vmem:[%s3 + $0x110] sm:$0xff]
    %v2616 = vld [vmem:[%s3 + $0x118] sm:$0xff]
    %v2617 = vld [vmem:[%s3 + $0x120] sm:$0xff]
    %v2618 = vld [vmem:[%s3 + $0x128] sm:$0xff]
    %v2619 = vld [vmem:[%s3 + $0x130] sm:$0xff]
    %v2620 = vld [vmem:[%s3 + $0x138] sm:$0xff]
    %v2621 = vld [vmem:[%s3 + $0x140] sm:$0xff]
    %v2622 = vld [vmem:[%s3 + $0x148] sm:$0xff]
    %v2623 = vld [vmem:[%s3 + $0x150] sm:$0xff]
    %v2624 = vld [vmem:[%s3 + $0x158] sm:$0xff]
    %v2625 = vld [vmem:[%s3 + $0x160] sm:$0xff]
    %v2626 = vld [vmem:[%s3 + $0x168] sm:$0xff]
    %v2627 = vld [vmem:[%s3 + $0x170] sm:$0xff]
    %v2628 = vld [vmem:[%s3 + $0x178] sm:$0xff]
    %v2629 = vld [vmem:[%s3 + $0x180] sm:$0xff]
    %v2630 = vld [vmem:[%s3 + $0x188] sm:$0xff]
    %v2631 = vld [vmem:[%s3 + $0x190] sm:$0xff]
    %v2632 = vld [vmem:[%s3 + $0x198] sm:$0xff]
    %v2633 = vld [vmem:[%s3 + $0x1a0] sm:$0xff]
    %v2634 = vld [vmem:[%s3 + $0x1a8] sm:$0xff]
    %v2635 = vld [vmem:[%s3 + $0x1b0] sm:$0xff]
    %v2636 = vld [vmem:[%s3 + $0x1b8] sm:$0xff]
    %v2637 = vld [vmem:[%s3 + $0x1c0] sm:$0xff]
    %v2638 = vld [vmem:[%s3 + $0x1c8] sm:$0xff]
    %v2639 = vld [vmem:[%s3 + $0x1d0] sm:$0xff]
    %v2640 = vld [vmem:[%s3 + $0x1d8] sm:$0xff]
    %v2641 = vld [vmem:[%s3 + $0x1e0] sm:$0xff]
    %v2642 = vld [vmem:[%s3 + $0x1e8] sm:$0xff]
    %v2643 = vld [vmem:[%s3 + $0x1f0] sm:$0xff]
    %v2644 = vld [vmem:[%s3 + $0x1f8] sm:$0xff]
    %v2645 = vld [vmem:[%s3 + $0x200] sm:$0xff]
    %v2646 = vld [vmem:[%s3 + $0x208] sm:$0xff]
    %v2647 = vld [vmem:[%s3 + $0x210] sm:$0xff]
    %v2648 = vld [vmem:[%s3 + $0x218] sm:$0xff]
    %v2649 = vld [vmem:[%s3 + $0x220] sm:$0xff]
    %v2650 = vld [vmem:[%s3 + $0x228] sm:$0xff]
    %v2651 = vld [vmem:[%s3 + $0x230] sm:$0xff]
    %v2652 = vld [vmem:[%s3 + $0x238] sm:$0xff]
    %v2653 = vld [vmem:[%s3 + $0x240] sm:$0xff]
    %v2654 = vld [vmem:[%s3 + $0x248] sm:$0xff]
    %v2655 = vld [vmem:[%s3 + $0x250] sm:$0xff]
    %v2656 = vld [vmem:[%s3 + $0x258] sm:$0xff]
    %v2657 = vld [vmem:[%s3 + $0x260] sm:$0xff]
    %v2658 = vld [vmem:[%s3 + $0x268] sm:$0xff]
    %v2659 = vld [vmem:[%s3 + $0x270] sm:$0xff]
    %v2660 = vld [vmem:[%s3 + $0x278] sm:$0xff]
    %v2661 = vld [vmem:[%s3 + $0x280] sm:$0xff]
    %v2662 = vld [vmem:[%s3 + $0x288] sm:$0xff]
    %v2663 = vld [vmem:[%s3 + $0x290] sm:$0xff]
    %v2664 = vld [vmem:[%s3 + $0x298] sm:$0xff]
    %v2665 = vld [vmem:[%s3 + $0x2a0] sm:$0xff]
    %v2666 = vld [vmem:[%s3 + $0x2a8] sm:$0xff]
    %v2667 = vld [vmem:[%s3 + $0x2b0] sm:$0xff]
    %v2668 = vld [vmem:[%s3 + $0x2b8] sm:$0xff]
    %v2669 = vld [vmem:[%s3 + $0x2c0] sm:$0xff]
    %v2670 = vld [vmem:[%s3 + $0x2c8] sm:$0xff]
    %v2671 = vld [vmem:[%s3 + $0x2d0] sm:$0xff]
    %v2672 = vld [vmem:[%s3 + $0x2d8] sm:$0xff]
    %v2673 = vld [vmem:[%s3 + $0x2e0] sm:$0xff]
    %v2674 = vld [vmem:[%s3 + $0x2e8] sm:$0xff]
    %v2675 = vld [vmem:[%s3 + $0x2f0] sm:$0xff]
    %v2676 = vld [vmem:[%s3 + $0x2f8] sm:$0xff]
    %v2677 = vld [vmem:[%s3 + $0x300] sm:$0xff]
    %v2678 = vld [vmem:[%s3 + $0x308] sm:$0xff]
    %v2679 = vld [vmem:[%s3 + $0x310] sm:$0xff]
    %v2680 = vld [vmem:[%s3 + $0x318] sm:$0xff]
    %v2681 = vld [vmem:[%s3 + $0x320] sm:$0xff]
    %v2682 = vld [vmem:[%s3 + $0x328] sm:$0xff]
    %v2683 = vld [vmem:[%s3 + $0x330] sm:$0xff]
    %v2684 = vld [vmem:[%s3 + $0x338] sm:$0xff]
    %v2685 = vld [vmem:[%s3 + $0x340] sm:$0xff]
    %v2686 = vld [vmem:[%s3 + $0x348] sm:$0xff]
    %v2687 = vld [vmem:[%s3 + $0x350] sm:$0xff]
    %v2688 = vld [vmem:[%s3 + $0x358] sm:$0xff]
    %v2689 = vld [vmem:[%s3 + $0x360] sm:$0xff]
    %v2690 = vld [vmem:[%s3 + $0x368] sm:$0xff]
    %v2691 = vld [vmem:[%s3 + $0x370] sm:$0xff]
    %v2692 = vld [vmem:[%s3 + $0x378] sm:$0xff]
    %v2693 = vld [vmem:[%s3 + $0x380] sm:$0xff]
    %v2694 = vld [vmem:[%s3 + $0x388] sm:$0xff]
    %v2695 = vld [vmem:[%s3 + $0x390] sm:$0xff]
    %v2696 = vld [vmem:[%s3 + $0x398] sm:$0xff]
    %v2697 = vld [vmem:[%s3 + $0x3a0] sm:$0xff]
    %v2698 = vld [vmem:[%s3 + $0x3a8] sm:$0xff]
    %v2699 = vld [vmem:[%s3 + $0x3b0] sm:$0xff]
    %v2700 = vld [vmem:[%s3 + $0x3b8] sm:$0xff]
    %v2701 = vld [vmem:[%s3 + $0x3c0] sm:$0xff]
    %v2702 = vld [vmem:[%s3 + $0x3c8] sm:$0xff]
    %v2703 = vld [vmem:[%s3 + $0x3d0] sm:$0xff]
    %v2704 = vld [vmem:[%s3 + $0x3d8] sm:$0xff]
    %v2705 = vld [vmem:[%s3 + $0x3e0] sm:$0xff]
    %v2706 = vld [vmem:[%s3 + $0x3e8] sm:$0xff]
    %v2707 = vld [vmem:[%s3 + $0x3f0] sm:$0xff]
    %v2708 = vld [vmem:[%s3 + $0x3f8] sm:$0xff]
    %v2709 = vld [vmem:[%s3 + $0x400] sm:$0xff]
    %v2710 = vld [vmem:[%s3 + $0x408] sm:$0xff]
    %v2711 = vld [vmem:[%s3 + $0x410] sm:$0xff]
    %v2712 = vld [vmem:[%s3 + $0x418] sm:$0xff]
    %v2713 = vld [vmem:[%s3 + $0x420] sm:$0xff]
    %v2714 = vld [vmem:[%s3 + $0x428] sm:$0xff]
    %v2715 = vld [vmem:[%s3 + $0x430] sm:$0xff]
    %v2716 = vld [vmem:[%s3 + $0x438] sm:$0xff]
    %v2717 = vld [vmem:[%s3 + $0x440] sm:$0xff]
    %v2718 = vld [vmem:[%s3 + $0x448] sm:$0xff]
    %v2719 = vld [vmem:[%s3 + $0x450] sm:$0xff]
    %v2720 = vld [vmem:[%s3 + $0x458] sm:$0xff]
    %v2721 = vld [vmem:[%s3 + $0x460] sm:$0xff]
    %v2722 = vld [vmem:[%s3 + $0x468] sm:$0xff]
    %v2723 = vld [vmem:[%s3 + $0x470] sm:$0xff]
    %v2724 = vld [vmem:[%s3 + $0x478] sm:$0xff]
    %v2725 = vld [vmem:[%s3 + $0x480] sm:$0xff]
    %v2726 = vld [vmem:[%s3 + $0x488] sm:$0xff]
    %v2727 = vld [vmem:[%s3 + $0x490] sm:$0xff]
    %v2728 = vld [vmem:[%s3 + $0x498] sm:$0xff]
    %v2729 = vld [vmem:[%s3 + $0x4a0] sm:$0xff]
    %v2730 = vld [vmem:[%s3 + $0x4a8] sm:$0xff]
    %v2731 = vld [vmem:[%s3 + $0x4b0] sm:$0xff]
    %v2732 = vld [vmem:[%s3 + $0x4b8] sm:$0xff]
    %v2733 = vld [vmem:[%s3 + $0x4c0] sm:$0xff]
    %v2734 = vld [vmem:[%s3 + $0x4c8] sm:$0xff]
    %v2735 = vld [vmem:[%s3 + $0x4d0] sm:$0xff]
    %v2736 = vld [vmem:[%s3 + $0x4d8] sm:$0xff]
    %v2737 = vld [vmem:[%s3 + $0x4e0] sm:$0xff]
    %v2738 = vld [vmem:[%s3 + $0x4e8] sm:$0xff]
    %v2739 = vld [vmem:[%s3 + $0x4f0] sm:$0xff]
    %v2740 = vld [vmem:[%s3 + $0x4f8] sm:$0xff]
    %v2741 = vld [vmem:[%s3 + $0x500] sm:$0xff]
    %v2742 = vld [vmem:[%s3 + $0x508] sm:$0xff]
    %v2743 = vld [vmem:[%s3 + $0x510] sm:$0xff]
    %v2744 = vld [vmem:[%s3 + $0x518] sm:$0xff]
    %v2745 = vld [vmem:[%s3 + $0x520] sm:$0xff]
    %v2746 = vld [vmem:[%s3 + $0x528] sm:$0xff]
    %v2747 = vld [vmem:[%s3 + $0x530] sm:$0xff]
    %v2748 = vld [vmem:[%s3 + $0x538] sm:$0xff]
    %v2749 = vld [vmem:[%s3 + $0x540] sm:$0xff]
    %v2750 = vld [vmem:[%s3 + $0x548] sm:$0xff]
    %v2751 = vld [vmem:[%s3 + $0x550] sm:$0xff]
    %v2752 = vld [vmem:[%s3 + $0x558] sm:$0xff]
    %v2753 = vld [vmem:[%s3 + $0x560] sm:$0xff]
    %v2754 = vld [vmem:[%s3 + $0x568] sm:$0xff]
    %v2755 = vld [vmem:[%s3 + $0x570] sm:$0xff]
    %v2756 = vld [vmem:[%s3 + $0x578] sm:$0xff]
    %v2757 = vld [vmem:[%s3 + $0x580] sm:$0xff]
    %v2758 = vld [vmem:[%s3 + $0x588] sm:$0xff]
    %v2759 = vld [vmem:[%s3 + $0x590] sm:$0xff]
    %v2760 = vld [vmem:[%s3 + $0x598] sm:$0xff]
    %v2761 = vld [vmem:[%s3 + $0x5a0] sm:$0xff]
    %v2762 = vld [vmem:[%s3 + $0x5a8] sm:$0xff]
    %v2763 = vld [vmem:[%s3 + $0x5b0] sm:$0xff]
    %v2764 = vld [vmem:[%s3 + $0x5b8] sm:$0xff]
    %v2765 = vld [vmem:[#allocation8] sm:$0x3]
    %v2767 = vlaneseq
    %v2768 = vshrl.u32 %v2767, 7
    %v2769 = vsub.s32 0, %v2768
    %v2770 = vrot.slane %v2765, %v2769
    %v2771 = vlaneseq
    %v2772 = vshrl.u32 %v2771, 7
    %v2773 = vsub.s32 1, %v2772
    %v2774 = vrot.slane %v2765, %v2773
    %vm2777 = vcmask 785408
    %v2779 = vsel %vm2777, %v2580, 0
    %2781 = vmatprep.subr.mxu0 %v2582
    %2782 = vmatpush1.msra.mxu0 %v2581
    %2783 = vmatprep.subr.mxu0 %v2584
    %2784 = vmatpush1.msra.mxu0 %v2583
    %2785 = vmatprep.subr.mxu0 %v2586
    %2786 = vmatpush1.msra.mxu0 %v2585
    %2787 = vmatprep.subr.mxu0 %v2588
    %2788 = vmatpush1.msra.mxu0 %v2587
    %2789 = vmatprep.subr.mxu0 %v2590
    %2790 = vmatpush1.msra.mxu0 %v2589
    %2791 = vmatprep.subr.mxu0 %v2592
    %2792 = vmatpush1.msra.mxu0 %v2591
    %2793 = vmatprep.subr.mxu0 %v2594
    %2794 = vmatpush1.msra.mxu0 %v2593
    %2795 = vmatprep.subr.mxu0 %v2596
    %2796 = vmatpush1.msra.mxu0 %v2595
    %2797 = vmatprep.subr.mxu0 %v2598
    %2798 = vmatpush1.msra.mxu0 %v2597
    %2799 = vmatprep.subr.mxu0 %v2600
    %2800 = vmatpush1.msra.mxu0 %v2599
    %2801 = vmatprep.subr.mxu0 %v2602
    %2802 = vmatpush1.msra.mxu0 %v2601
    %2803 = vmatprep.subr.mxu0 %v2604
    %2804 = vmatpush1.msra.mxu0 %v2603
    %2805 = vmatprep.subr.mxu0 %v2606
    %2806 = vmatpush1.msra.mxu0 %v2605
    %2807 = vmatprep.subr.mxu0 %v2608
    %2808 = vmatpush1.msra.mxu0 %v2607
    %2809 = vmatprep.subr.mxu0 %v2610
    %2810 = vmatpush1.msra.mxu0 %v2609
    %2811 = vmatprep.subr.mxu0 %v2612
    %2812 = vmatpush1.msra.mxu0 %v2611
    %2813 = vmatprep.subr.mxu0 %v2614
    %2814 = vmatpush1.msra.mxu0 %v2613
    %2815 = vmatprep.subr.mxu0 %v2616
    %2816 = vmatpush1.msra.mxu0 %v2615
    %2817 = vmatprep.subr.mxu0 %v2618
    %2818 = vmatpush1.msra.mxu0 %v2617
    %2819 = vmatprep.subr.mxu0 %v2620
    %2820 = vmatpush1.msra.mxu0 %v2619
    %2821 = vmatprep.subr.mxu0 %v2622
    %2822 = vmatpush1.msra.mxu0 %v2621
    %2823 = vmatprep.subr.mxu0 %v2624
    %2824 = vmatpush1.msra.mxu0 %v2623
    %2825 = vmatprep.subr.mxu0 %v2626
    %2826 = vmatpush1.msra.mxu0 %v2625
    %2827 = vmatprep.subr.mxu0 %v2628
    %2828 = vmatpush1.msra.mxu0 %v2627
    %2829 = vmatprep.subr.mxu0 %v2630
    %2830 = vmatpush1.msra.mxu0 %v2629
    %2831 = vmatprep.subr.mxu0 %v2632
    %2832 = vmatpush1.msra.mxu0 %v2631
    %2833 = vmatprep.subr.mxu0 %v2634
    %2834 = vmatpush1.msra.mxu0 %v2633
    %2835 = vmatprep.subr.mxu0 %v2636
    %2836 = vmatpush1.msra.mxu0 %v2635
    %2837 = vmatprep.subr.mxu0 %v2638
    %2838 = vmatpush1.msra.mxu0 %v2637
    %2839 = vmatprep.subr.mxu0 %v2640
    %2840 = vmatpush1.msra.mxu0 %v2639
    %2841 = vmatprep.subr.mxu0 %v2642
    %2842 = vmatpush1.msra.mxu0 %v2641
    %2843 = vmatprep.subr.mxu0 %v2644
    %2844 = vmatpush1.msra.mxu0 %v2643
    %2845 = vmatprep.mubr.f32.mxu0 %v2576
    %2846 = vmatmul.mubr.f32.gmra.mrb[0].mxu0 %v2575
    %v2847 = vpop.f32.mrb[0].mxu0
    %v2848 = vadd.f32 %v2770, %v2847
    %v2849 = vpop.f32.mrb[0].mxu0
    %v2850 = vadd.f32 %v2774, %v2849
    %2851 = vdwg.mxu0
    %2852 = vmatprep.subr.mxu0 %v2646
    %2853 = vmatpush1.msra.mxu0 %v2645
    %2854 = vmatprep.subr.mxu0 %v2648
    %2855 = vmatpush1.msra.mxu0 %v2647
    %2856 = vmatprep.subr.mxu0 %v2650
    %2857 = vmatpush1.msra.mxu0 %v2649
    %2858 = vmatprep.subr.mxu0 %v2652
    %2859 = vmatpush1.msra.mxu0 %v2651
    %2860 = vmatprep.subr.mxu0 %v2654
    %2861 = vmatpush1.msra.mxu0 %v2653
    %2862 = vmatprep.subr.mxu0 %v2656
    %2863 = vmatpush1.msra.mxu0 %v2655
    %2864 = vmatprep.subr.mxu0 %v2658
    %2865 = vmatpush1.msra.mxu0 %v2657
    %2866 = vmatprep.subr.mxu0 %v2660
    %2867 = vmatpush1.msra.mxu0 %v2659
    %2868 = vmatprep.subr.mxu0 %v2662
    %2869 = vmatpush1.msra.mxu0 %v2661
    %2870 = vmatprep.subr.mxu0 %v2664
    %2871 = vmatpush1.msra.mxu0 %v2663
    %2872 = vmatprep.subr.mxu0 %v2666
    %2873 = vmatpush1.msra.mxu0 %v2665
    %2874 = vmatprep.subr.mxu0 %v2668
    %2875 = vmatpush1.msra.mxu0 %v2667
    %2876 = vmatprep.subr.mxu0 %v2670
    %2877 = vmatpush1.msra.mxu0 %v2669
    %2878 = vmatprep.subr.mxu0 %v2672
    %2879 = vmatpush1.msra.mxu0 %v2671
    %2880 = vmatprep.subr.mxu0 %v2674
    %2881 = vmatpush1.msra.mxu0 %v2673
    %2882 = vmatprep.subr.mxu0 %v2676
    %2883 = vmatpush1.msra.mxu0 %v2675
    %2884 = vmatprep.subr.mxu0 %v2678
    %2885 = vmatpush1.msra.mxu0 %v2677
    %2886 = vmatprep.subr.mxu0 %v2680
    %2887 = vmatpush1.msra.mxu0 %v2679
    %2888 = vmatprep.subr.mxu0 %v2682
    %2889 = vmatpush1.msra.mxu0 %v2681
    %2890 = vmatprep.subr.mxu0 %v2684
    %2891 = vmatpush1.msra.mxu0 %v2683
    %2892 = vmatprep.subr.mxu0 %v2686
    %2893 = vmatpush1.msra.mxu0 %v2685
    %2894 = vmatprep.subr.mxu0 %v2688
    %2895 = vmatpush1.msra.mxu0 %v2687
    %2896 = vmatprep.subr.mxu0 %v2690
    %2897 = vmatpush1.msra.mxu0 %v2689
    %2898 = vmatprep.subr.mxu0 %v2692
    %2899 = vmatpush1.msra.mxu0 %v2691
    %2900 = vmatprep.subr.mxu0 %v2694
    %2901 = vmatpush1.msra.mxu0 %v2693
    %2902 = vmatprep.subr.mxu0 %v2696
    %2903 = vmatpush1.msra.mxu0 %v2695
    %2904 = vmatprep.subr.mxu0 %v2698
    %2905 = vmatpush1.msra.mxu0 %v2697
    %2906 = vmatprep.subr.mxu0 %v2700
    %2907 = vmatpush1.msra.mxu0 %v2699
    %2908 = vmatprep.subr.mxu0 %v2702
    %2909 = vmatpush1.msra.mxu0 %v2701
    %2910 = vmatprep.subr.mxu0 %v2704
    %2911 = vmatpush1.msra.mxu0 %v2703
    %2912 = vmatprep.subr.mxu0 %v2706
    %2913 = vmatpush1.msra.mxu0 %v2705
    %2914 = vmatprep.subr.mxu0 %v2708
    %2915 = vmatpush1.msra.mxu0 %v2707
    %2916 = vmatprep.mubr.f32.mxu0 %v2578
    %2917 = vmatmul.mubr.f32.gmra.mrb[0].mxu0 %v2577
    %v2918 = vpop.f32.mrb[0].mxu0
    %v2919 = vadd.f32 %v2848, %v2918
    %v2920 = vpop.f32.mrb[0].mxu0
    %v2921 = vadd.f32 %v2850, %v2920
    %2922 = vdwg.mxu0
    %2923 = vmatprep.subr.mxu0 %v2710
    %2924 = vmatpush1.msra.mxu0 %v2709
    %2925 = vmatprep.subr.mxu0 %v2712
    %2926 = vmatpush1.msra.mxu0 %v2711
    %2927 = vmatprep.subr.mxu0 %v2714
    %2928 = vmatpush1.msra.mxu0 %v2713
    %2929 = vmatprep.subr.mxu0 %v2716
    %2930 = vmatpush1.msra.mxu0 %v2715
    %2931 = vmatprep.subr.mxu0 %v2718
    %2932 = vmatpush1.msra.mxu0 %v2717
    %2933 = vmatprep.subr.mxu0 %v2720
    %2934 = vmatpush1.msra.mxu0 %v2719
    %2935 = vmatprep.subr.mxu0 %v2722
    %2936 = vmatpush1.msra.mxu0 %v2721
    %2937 = vmatprep.subr.mxu0 %v2724
    %2938 = vmatpush1.msra.mxu0 %v2723
    %2939 = vmatprep.subr.mxu0 %v2726
    %2940 = vmatpush1.msra.mxu0 %v2725
    %2941 = vmatprep.subr.mxu0 %v2728
    %2942 = vmatpush1.msra.mxu0 %v2727
    %2943 = vmatprep.subr.mxu0 %v2730
    %2944 = vmatpush1.msra.mxu0 %v2729
    %2945 = vmatprep.subr.mxu0 %v2732
    %2946 = vmatpush1.msra.mxu0 %v2731
    %2947 = vmatprep.subr.mxu0 %v2734
    %2948 = vmatpush1.msra.mxu0 %v2733
    %2949 = vmatprep.subr.mxu0 %v2736
    %2950 = vmatpush1.msra.mxu0 %v2735
    %2951 = vmatprep.subr.mxu0 %v2738
    %2952 = vmatpush1.msra.mxu0 %v2737
    %2953 = vmatprep.subr.mxu0 %v2740
    %2954 = vmatpush1.msra.mxu0 %v2739
    %2955 = vmatprep.subr.mxu0 %v2742
    %2956 = vmatpush1.msra.mxu0 %v2741
    %2957 = vmatprep.subr.mxu0 %v2744
    %2958 = vmatpush1.msra.mxu0 %v2743
    %2959 = vmatprep.subr.mxu0 %v2746
    %2960 = vmatpush1.msra.mxu0 %v2745
    %2961 = vmatprep.subr.mxu0 %v2748
    %2962 = vmatpush1.msra.mxu0 %v2747
    %2963 = vmatprep.subr.mxu0 %v2750
    %2964 = vmatpush1.msra.mxu0 %v2749
    %2965 = vmatprep.subr.mxu0 %v2752
    %2966 = vmatpush1.msra.mxu0 %v2751
    %2967 = vmatprep.subr.mxu0 %v2754
    %2968 = vmatpush1.msra.mxu0 %v2753
    %2969 = vmatprep.subr.mxu0 %v2756
    %2970 = vmatpush1.msra.mxu0 %v2755
    %2971 = vmatprep.subr.mxu0 %v2758
    %2972 = vmatpush1.msra.mxu0 %v2757
    %2973 = vmatprep.subr.mxu0 %v2760
    %2974 = vmatpush1.msra.mxu0 %v2759
    %2975 = vmatprep.subr.mxu0 %v2762
    %2976 = vmatpush1.msra.mxu0 %v2761
    %2977 = vmatprep.subr.mxu0 %v2764
    %2978 = vmatpush1.msra.mxu0 %v2763
    %2979 = vmatprep.subr.mxu0 0.0
    %2980 = vmatpush1.msra.mxu0 0.0
    %2981 = vmatprep.subr.mxu0 0.0
    %2982 = vmatpush1.msra.mxu0 0.0
    %2983 = vmatprep.subr.mxu0 0.0
    %2984 = vmatpush1.msra.mxu0 0.0
    %2985 = vmatprep.subr.mxu0 0.0
    %2986 = vmatpush1.msra.mxu0 0.0
    %2987 = vmatprep.mubr.f32.mxu0 %v2779
    %2988 = vmatmul.mubr.f32.gmra.mrb[0].mxu0 %v2579
    %v2989 = vpop.f32.mrb[0].mxu0
    %v2990 = vadd.f32 %v2919, %v2989
    %v2991 = vpop.f32.mrb[0].mxu0
    %v2992 = vadd.f32 %v2921, %v2991
    %2993 = vdwg.mxu0
    %v2996 = vcombine.low %v2990, %v2992
    %v2998 = vunpack.c.l.s4 1983009808
    %v2999 = vunpack.c.0.s8 %v2998
    %v3000 = vlaneseq
    %v3001 = vshrl.u32 %v3000, 7
    %v3002 = vsub.s32 %v2999, %v3001
    %v3003 = vrot.slane %v2996, %v3002
    %vm3005 = vcmask 1041408
    %vm3006 = vcmask 453634
    %vm3007 = vmor %vm3006, %vm3005
    %3008 = vst.msk [vmem:[#allocation11] sm:$0xf] %vm3007, %v3003
    %v3009 = vmul.f32 %v2990, %v2990
    %v3010 = vmul.f32 %v2992, %v2992
    %v3011 = vsel %vm3005, %v3009, 0.0
    %vm3012 = vcmask 451584
    %v3013 = vsel %vm3012, %v3010, 0.0
    %v3014 = vadd.f32 %v3011, %v3013
    %3015 = vadd.xlane.f32.xlu0 %v3014
    %v3016 = vpop.xlane.xlu0 %3015
    %v3017 = vld [vmem:[%s5] sm:$0xff]
    %v3018 = vld [vmem:[%s5 + $0x8] sm:$0xff]
    %v3019 = vld [vmem:[%s5 + $0x10] sm:$0xff]
    %v3020 = vld [vmem:[%s5 + $0x18] sm:$0xff]
    %v3021 = vld [vmem:[%s5 + $0x20] sm:$0xff]
    %v3022 = vld [vmem:[%s5 + $0x28] sm:$0xff]
    %v3023 = vld [vmem:[%s5 + $0x30] sm:$0xff]
    %v3024 = vld [vmem:[%s5 + $0x38] sm:$0xff]
    %v3025 = vld [vmem:[%s5 + $0x40] sm:$0xff]
    %v3026 = vld [vmem:[%s5 + $0x48] sm:$0xff]
    %v3027 = vld [vmem:[%s5 + $0x50] sm:$0xff]
    %v3028 = vld [vmem:[%s5 + $0x58] sm:$0xff]
    %v3029 = vld [vmem:[%s5 + $0x60] sm:$0xff]
    %v3030 = vld [vmem:[%s5 + $0x68] sm:$0xff]
    %v3031 = vld [vmem:[%s5 + $0x70] sm:$0xff]
    %v3032 = vld [vmem:[%s5 + $0x78] sm:$0xff]
    %v3033 = vld [vmem:[%s5 + $0x80] sm:$0xff]
    %v3034 = vld [vmem:[%s5 + $0x88] sm:$0xff]
    %v3035 = vld [vmem:[%s5 + $0x90] sm:$0xff]
    %v3036 = vld [vmem:[%s5 + $0x98] sm:$0xff]
    %v3037 = vld [vmem:[%s5 + $0xa0] sm:$0xff]
    %v3038 = vld [vmem:[%s5 + $0xa8] sm:$0xff]
    %v3039 = vld [vmem:[%s5 + $0xb0] sm:$0xff]
    %vm3040 = vcmask 457728
    %v3041 = vsel %vm3040, %v2992, 0
    %3043 = vmatprep.subr.mxu0 0.0
    %3044 = vmatpush1.msra.mxu0 %v3017
    %3045 = vmatprep.subr.mxu0 0.0
    %3046 = vmatpush1.msra.mxu0 %v3018
    %3047 = vmatprep.subr.mxu0 0.0
    %3048 = vmatpush1.msra.mxu0 %v3019
    %3049 = vmatprep.subr.mxu0 0.0
    %3050 = vmatpush1.msra.mxu0 %v3020
    %3051 = vmatprep.subr.mxu0 0.0
    %3052 = vmatpush1.msra.mxu0 %v3021
    %3053 = vmatprep.subr.mxu0 0.0
    %3054 = vmatpush1.msra.mxu0 %v3022
    %3055 = vmatprep.subr.mxu0 0.0
    %3056 = vmatpush1.msra.mxu0 %v3023
    %3057 = vmatprep.subr.mxu0 0.0
    %3058 = vmatpush1.msra.mxu0 %v3024
    %3059 = vmatprep.subr.mxu0 0.0
    %3060 = vmatpush1.msra.mxu0 %v3025
    %3061 = vmatprep.subr.mxu0 0.0
    %3062 = vmatpush1.msra.mxu0 %v3026
    %3063 = vmatprep.subr.mxu0 0.0
    %3064 = vmatpush1.msra.mxu0 %v3027
    %3065 = vmatprep.subr.mxu0 0.0
    %3066 = vmatpush1.msra.mxu0 %v3028
    %3067 = vmatprep.subr.mxu0 0.0
    %3068 = vmatpush1.msra.mxu0 %v3029
    %3069 = vmatprep.subr.mxu0 0.0
    %3070 = vmatpush1.msra.mxu0 %v3030
    %3071 = vmatprep.subr.mxu0 0.0
    %3072 = vmatpush1.msra.mxu0 %v3031
    %3073 = vmatprep.subr.mxu0 0.0
    %3074 = vmatpush1.msra.mxu0 %v3032
    %3075 = vmatprep.subr.mxu0 0.0
    %3076 = vmatpush1.msra.mxu0 %v3033
    %3077 = vmatprep.subr.mxu0 0.0
    %3078 = vmatpush1.msra.mxu0 %v3034
    %3079 = vmatprep.subr.mxu0 0.0
    %3080 = vmatpush1.msra.mxu0 %v3035
    %3081 = vmatprep.subr.mxu0 0.0
    %3082 = vmatpush1.msra.mxu0 %v3036
    %3083 = vmatprep.subr.mxu0 0.0
    %3084 = vmatpush1.msra.mxu0 %v3037
    %3085 = vmatprep.subr.mxu0 0.0
    %3086 = vmatpush1.msra.mxu0 %v3038
    %3087 = vmatprep.subr.mxu0 0.0
    %3088 = vmatpush1.msra.mxu0 %v3039
    %3089 = vmatprep.subr.mxu0 0.0
    %3090 = vmatpush1.msra.mxu0 0.0
    %3091 = vmatprep.subr.mxu0 0.0
    %3092 = vmatpush1.msra.mxu0 0.0
    %3093 = vmatprep.subr.mxu0 0.0
    %3094 = vmatpush1.msra.mxu0 0.0
    %3095 = vmatprep.subr.mxu0 0.0
    %3096 = vmatpush1.msra.mxu0 0.0
    %3097 = vmatprep.subr.mxu0 0.0
    %3098 = vmatpush1.msra.mxu0 0.0
    %3099 = vmatprep.subr.mxu0 0.0
    %3100 = vmatpush1.msra.mxu0 0.0
    %3101 = vmatprep.subr.mxu0 0.0
    %3102 = vmatpush1.msra.mxu0 0.0
    %3103 = vmatprep.subr.mxu0 0.0
    %3104 = vmatpush1.msra.mxu0 0.0
    %3105 = vmatprep.subr.mxu0 0.0
    %3106 = vmatpush1.msra.mxu0 0.0
    %3107 = vmatprep.mubr.f32.mxu0 %v3041
    %3108 = vmatmul.mubr.f32.gmra.mrb[0].mxu0 %v2990
    %v3109 = vpop.f32.mrb[0].mxu0
    %v3110 = vadd.f32 0.0, %v3109
    %v3111 = vpop.f32.mrb[0].mxu0
    %3112 = vdwg.mxu0
    %v3113 = vld [vmem:[#allocation10] sm:$0x1]
    %v3115 = vlaneseq
    %v3116 = vshrl.u32 %v3115, 7
    %v3117 = vsub.s32 0, %v3116
    %v3118 = vrot.slane %v3113, %v3117
    %v3120 = vadd.f32 %v3016, %v3118
    %v3121 = vmul.f32 %v3110, 2.0
    %v3122 = vsub.f32 %v3120, %v3121
    %v3123 = vmax.f32 %v3122, 0.0
    %v3124 = vadd.f32 %v3123, 1.0
    %v3125 = vrcp.pop %v3124
    %v3126 = vmul.f32 %v3125, %v3125
    %vm3127 = vcmask 25600
    %v3128 = vsel %vm3127, %v3126, 0.0
    %3129 = vadd.xlane.f32.xlu0 %v3128
    %v3130 = vpop.xlane.xlu0 %3129
    %v3131 = vrcp.pop %v3130
    %v3132 = vmul.f32 %v3126, %v3131
    %3133 = vst.msk [vmem:[#allocation12] sm:$0x3] %vm3127, %v3132
    // Predicated region
    $region50: #{tpu_custom_call.1} parent=1 // pred_check
      _
    $region51: #{tpu_custom_call.1} parent=1 // pred_check_branch
      %3135 = sbr.rel (0) target = $region53
    $region52: #{tpu_custom_call.1} parent=1 // pred_region
      %s3137 = ssub.s32 64, 64
      %3138 = vsyncadd [#allocation4], %s3137
      %s3140 = sshll.u32 [#allocation11], 4
      %s3141 = int_to_ptr.vmem [resolvable:$true] %s3140
      %3143 = dma.vmem_to_hbm [thread:$0]  %s3141, 64, %s7, [#allocation4]
    $region53: #{tpu_custom_call.1} parent=1 // pred_fallthru
      _
    // Predicated region
    $region54: #{tpu_custom_call.1} parent=1 // pred_check
      _
    $region55: #{tpu_custom_call.1} parent=1 // pred_check_branch
      %3145 = sbr.rel (0) target = $region57
    $region56: #{tpu_custom_call.1} parent=1 // pred_region
      %s3147 = ssub.s32 32, 32
      %3148 = vsyncadd [#allocation13], %s3147
      %s3150 = sshll.u32 [#allocation12], 4
      %s3151 = int_to_ptr.vmem [resolvable:$true] %s3150
      %3153 = dma.vmem_to_hbm [thread:$0]  %s3151, 32, %s8, [#allocation13]
    $region57: #{tpu_custom_call.1} parent=1 // pred_fallthru
      _
    // Predicated region
    $region58: #{tpu_custom_call.1} parent=1 // pred_check
      _
    $region59: #{tpu_custom_call.1} parent=1 // pred_check_branch
      %3155 = sbr.rel (0) target = $region61
    $region60: #{tpu_custom_call.1} parent=1 // pred_region
      %3156 = dma.done [#allocation4], 64
    $region61: #{tpu_custom_call.1} parent=1 // pred_fallthru
      _
    // Predicated region
    $region62: #{tpu_custom_call.1} parent=1 // pred_check
      _
    $region63: #{tpu_custom_call.1} parent=1 // pred_check_branch
      %3158 = sbr.rel (0) target = $region65
    $region64: #{tpu_custom_call.1} parent=1 // pred_region
      %3159 = dma.done [#allocation13], 32
    $region65: #{tpu_custom_call.1} parent=1 // pred_fallthru
      _
    %3160 = vsyncpa [#allocation3], 1
    %3161 = vsyncpa [#allocation6], 1
    %3162 = vsyncpa [#allocation9], 1
    %3163 = vsyncpa [#allocation4], 1
    %3164 = vsyncpa [#allocation13], 1

</llo_original>
